<compile_context>
chip_gen: v6e
topology: v6e:2x2x1
jax: 0.10.0
libtpu: 0.0.40
codegen_flags: <defaults>
</compile_context>

<pallas_src>
import functools

import jax
import jax.numpy as jnp
from jax.experimental import pallas as pl
from jax.experimental.pallas import tpu as pltpu


# ----------------------------------------------------------------------------
# Fused Pallas kernel: both GRU directional passes for a block of `bb`
# batch elements (bb = 1 on v7x, bb = B on single-TC chips).
#   h_ref     : (bb, H, W, HD)  f32 hidden state
#   x_ref     : (bb, H, W, ID)  bf16 input features
#   whzr*_ref : (5*HD, 2*HD)    h-rows of fused z||r im2col weights (bf16)
#   whq*_ref  : (5*HD, HD)      h-rows of q im2col weights (bf16)
#   wx*_ref   : (5*ID, 3*HD)    x-rows of fused z||r||q im2col weights (bf16)
#   bzr*_ref  : (1, 2*HD)       fused z||r bias (f32)
#   bq*_ref   : (1, HD)         q bias (f32)
#   o_ref     : (bb, H, W, HD)  updated hidden state
# ----------------------------------------------------------------------------
def sepconv_gru_fused_kernel(h_ref, x_ref,
                             whzr1_ref, whq1_ref, wx1_ref, bzr1_ref, bq1_ref,
                             whzr2_ref, whq2_ref, wx2_ref, bzr2_ref, bq2_ref,
                             o_ref, *, HD):
    h = h_ref[...].astype(jnp.float32)          # (bb, H, W, HD) f32
    x = x_ref[...]                              # (bb, H, W, ID) bf16
    bb, H, W, _ = h.shape
    M = H * W

    def im2col(t, axis):
        # 5-tap zero-padded gather along spatial `axis` (0: H, 1: W), built
        # per batch element so H-axis padding never leaks across the batch.
        # t: (bb, H, W, Cc) bf16  ->  (bb*M, 5*Cc) bf16
        Cc = t.shape[-1]
        rows = []
        for b in range(bb):
            tb = t[b]
            if axis == 0:
                pad = jnp.zeros((2, W, Cc), t.dtype)
                tp = jnp.concatenate([pad, tb, pad], axis=0)   # (H+4, W, Cc)
                cols = [tp[k:k + H, :, :] for k in range(5)]
            else:
                pad = jnp.zeros((H, 2, Cc), t.dtype)
                tp = jnp.concatenate([pad, tb, pad], axis=1)   # (H, W+4, Cc)
                cols = [tp[:, k:k + W, :] for k in range(5)]
            rows.append(jnp.concatenate(cols, axis=-1).reshape(M, 5 * Cc))
        return rows[0] if bb == 1 else jnp.concatenate(rows, axis=0)

    def mm(a, w_ref):
        return jnp.dot(a, w_ref[...], preferred_element_type=jnp.float32)

    h_flat = h.reshape(bb * M, HD)

    def directional_pass(h, h_flat, axis, whzr_ref, whq_ref, wx_ref,
                         bzr_ref, bq_ref):
        # x never changes between the zr conv and the q conv of one pass:
        # build its im2col once and fuse its z/r/q weight columns (N = 3*HD).
        col_x = im2col(x, axis)                                  # (bbM, 5*ID)
        xc = mm(col_x, wx_ref)                                   # (bbM, 3*HD)

        col_h = im2col(h.astype(jnp.bfloat16), axis)             # (bbM, 5*HD)
        zr = jax.nn.sigmoid(mm(col_h, whzr_ref)
                            + xc[:, :2 * HD] + bzr_ref[...])     # (bbM, 2*HD)
        z, r = zr[:, :HD], zr[:, HD:]

        rh = (r.reshape(bb, H, W, HD) * h).astype(jnp.bfloat16)
        col_rh = im2col(rh, axis)                                # (bbM, 5*HD)
        q = jnp.tanh(mm(col_rh, whq_ref) + xc[:, 2 * HD:] + bq_ref[...])

        h_flat = (1.0 - z) * h_flat + z * q                      # f32 blend
        return h_flat.reshape(bb, H, W, HD), h_flat

    # horizontal pass: (1,5) conv along W
    h, h_flat = directional_pass(h, h_flat, 1, whzr1_ref, whq1_ref, wx1_ref,
                                 bzr1_ref, bq1_ref)
    # vertical pass: (5,1) conv along H
    h, h_flat = directional_pass(h, h_flat, 0, whzr2_ref, whq2_ref, wx2_ref,
                                 bzr2_ref, bq2_ref)

    o_ref[...] = h.astype(o_ref.dtype)


# ----------------------------------------------------------------------------
# Wrapper: NCHW in / NCHW out, single pallas_call for the whole module.
# ----------------------------------------------------------------------------
def sepconv_gru_coarsest(h, x, params, batch_fold=None):
    B, HD, H, W = h.shape
    ID = x.shape[1]

    # NCHW -> NHWC.  x only ever feeds bf16 matmuls -> cast once here to
    # halve its input DMA; h stays f32 (state blend precision).
    h_nhwc = jnp.transpose(h, (0, 2, 3, 1))
    x_nhwc = jnp.transpose(x, (0, 2, 3, 1)).astype(jnp.bfloat16)

    if batch_fold is None:
        try:
            kind = jax.devices()[0].device_kind.lower()
        except Exception:  # pragma: no cover - defensive
            kind = ""
        # Dual-TC v7x: keep grid=(B,) "parallel" so both cores get work.
        # Single-TC v5e/v6e: fold batch into M to halve matmul/grid count.
        batch_fold = not ("v7" in kind or "7x" in kind)
    bb = B if (batch_fold and B > 1) else 1
    if B % bb != 0:
        bb = 1
    grid = (B // bb,)

    kernel = functools.partial(sepconv_gru_fused_kernel, HD=HD)

    def full_spec(arr):
        return pl.BlockSpec(arr.shape, lambda g: (0,) * arr.ndim)

    param_order = ["whzr1", "whq1", "wx1", "bzr1", "bq1",
                   "whzr2", "whq2", "wx2", "bzr2", "bq2"]
    param_vals = [params[k] for k in param_order]

    out = pl.pallas_call(
        kernel,
        out_shape=jax.ShapeDtypeStruct((B, H, W, HD), h.dtype),
        grid_spec=pltpu.PrefetchScalarGridSpec(
            num_scalar_prefetch=0,
            grid=grid,
            in_specs=[pl.BlockSpec((bb, H, W, HD), lambda g: (g, 0, 0, 0)),
                      pl.BlockSpec((bb, H, W, ID), lambda g: (g, 0, 0, 0))]
                     + [full_spec(a) for a in param_vals],
            out_specs=pl.BlockSpec((bb, H, W, HD), lambda g: (g, 0, 0, 0)),
        ),
        compiler_params=pltpu.CompilerParams(
            dimension_semantics=("parallel",)),
    )(h_nhwc, x_nhwc, *param_vals)

    # NHWC -> NCHW
    return jnp.transpose(out, (0, 3, 1, 2))


# ----------------------------------------------------------------------------
# Reference implementation in plain JAX (NCHW conv), for validation.
# ----------------------------------------------------------------------------
def ref_forward(h, x, torch_params):
    def conv(inp, w, b, pad):
        out = jax.lax.conv_general_dilated(
            inp, w, window_strides=(1, 1), padding=pad,
            dimension_numbers=("NCHW", "OIHW", "NCHW"))
        return out + b[None, :, None, None]

    (wz1, bz1), (wr1, br1), (wq1, bq1) = (torch_params[k] for k in
                                          ("convz1", "convr1", "convq1"))
    (wz2, bz2), (wr2, br2), (wq2, bq2) = (torch_params[k] for k in
                                          ("convz2", "convr2", "convq2"))
    pw = ((0, 0), (2, 2))
    ph = ((2, 2), (0, 0))

    hx = jnp.concatenate([h, x], axis=1)
    z = jax.nn.sigmoid(conv(hx, wz1, bz1, pw))
    r = jax.nn.sigmoid(conv(hx, wr1, br1, pw))
    q = jnp.tanh(conv(jnp.concatenate([r * h, x], axis=1), wq1, bq1, pw))
    h = (1 - z) * h + z * q

    hx = jnp.concatenate([h, x], axis=1)
    z = jax.nn.sigmoid(conv(hx, wz2, bz2, ph))
    r = jax.nn.sigmoid(conv(hx, wr2, br2, ph))
    q = jnp.tanh(conv(jnp.concatenate([r * h, x], axis=1), wq2, bq2, ph))
    h = (1 - z) * h + z * q
    return h


# ----------------------------------------------------------------------------
# Parameter construction (deterministic, synthetic).
# ----------------------------------------------------------------------------
def make_params(key, hidden_dim, input_dim):
    C = hidden_dim + input_dim
    names = ["convz1", "convr1", "convq1", "convz2", "convr2", "convq2"]
    torch_params = {}
    keys = jax.random.split(key, 2 * len(names))
    for i, name in enumerate(names):
        kh, kw = (1, 5) if name.endswith("1") else (5, 1)
        w = 0.05 * jax.random.normal(keys[2 * i], (hidden_dim, C, kh, kw),
                                     jnp.float32)
        b = 0.05 * jax.random.normal(keys[2 * i + 1], (hidden_dim,),
                                     jnp.float32)
        torch_params[name] = (w, b)

    # PyTorch OIHW -> im2col layout, split into h-rows and x-rows.
    # Rows are tap-major, cin-minor: row index = tap * Cc + c.
    def split_hx(w):
        w5 = w[:, :, 0, :] if w.shape[2] == 1 else w[:, :, :, 0]   # (O, C, 5)
        wh = jnp.transpose(w5[:, :hidden_dim, :], (2, 1, 0)).reshape(
            5 * hidden_dim, hidden_dim)
        wx = jnp.transpose(w5[:, hidden_dim:, :], (2, 1, 0)).reshape(
            5 * input_dim, hidden_dim)
        return wh, wx

    kp = {}
    for suf in ("1", "2"):
        (wz, bz) = torch_params["convz" + suf]
        (wr, br) = torch_params["convr" + suf]
        (wq, bq) = torch_params["convq" + suf]
        whz, wxz = split_hx(wz)
        whr, wxr = split_hx(wr)
        whq, wxq = split_hx(wq)
        kp["whzr" + suf] = jnp.concatenate([whz, whr], axis=-1).astype(jnp.bfloat16)
        kp["whq" + suf] = whq.astype(jnp.bfloat16)
        kp["wx" + suf] = jnp.concatenate([wxz, wxr, wxq], axis=-1).astype(jnp.bfloat16)
        kp["bzr" + suf] = jnp.concatenate([bz, br]).reshape(1, 2 * hidden_dim)
        kp["bq" + suf] = bq.reshape(1, hidden_dim)
    return torch_params, kp


if __name__ == "__main__":
    B, HD, ID, H, W = 2, 32, 32, 8, 16
    key = jax.random.PRNGKey(0)
    k_h, k_x, k_p = jax.random.split(key, 3)

    h0 = jax.random.normal(k_h, (B, HD, H, W), jnp.float32)
    x0 = jax.random.normal(k_x, (B, ID, H, W), jnp.float32)
    torch_params, kernel_params = make_params(k_p, HD, ID)

    out = jax.jit(functools.partial(sepconv_gru_coarsest,
                                    params=kernel_params))(h0, x0)
    out = jax.block_until_ready(out)

    ref = jax.block_until_ready(ref_forward(h0, x0, torch_params))

    assert out.shape == (B, HD, H, W)
    max_err = float(jnp.max(jnp.abs(out - ref)))
    # bf16 matmul operands (f32 accumulation) -> relaxed tolerance vs pure f32.
    assert max_err < 5e-2, max_err
    print("KERNEL_OK")
</pallas_src>

<mosaic_0001>
module attributes {stable_mosaic.version = 11 : i64} {
  func.func @sepconv_gru_fused_kernel(%arg0: i32, %arg1: memref<2x8x16x32xf32, #tpu.memory_space<vmem>>, %arg2: memref<2x8x16x32xbf16, #tpu.memory_space<vmem>>, %arg3: memref<160x64xbf16, #tpu.memory_space<vmem>>, %arg4: memref<160x32xbf16, #tpu.memory_space<vmem>>, %arg5: memref<160x96xbf16, #tpu.memory_space<vmem>>, %arg6: memref<1x64xf32, #tpu.memory_space<vmem>>, %arg7: memref<1x32xf32, #tpu.memory_space<vmem>>, %arg8: memref<160x64xbf16, #tpu.memory_space<vmem>>, %arg9: memref<160x32xbf16, #tpu.memory_space<vmem>>, %arg10: memref<160x96xbf16, #tpu.memory_space<vmem>>, %arg11: memref<1x64xf32, #tpu.memory_space<vmem>>, %arg12: memref<1x32xf32, #tpu.memory_space<vmem>>, %arg13: memref<2x8x16x32xf32, #tpu.memory_space<vmem>>) attributes {dimension_semantics = [#tpu.dimension_semantics<parallel>], iteration_bounds = array<i64: 1>, scalar_prefetch = 0 : i64, scratch_operands = 0 : i64, tpu.core_type = #tpu.core_type<tc>, window_params = [{transform_indices = @transform_0, window_bounds = array<i64: 2, 8, 16, 32>}, {transform_indices = @transform_1, window_bounds = array<i64: 2, 8, 16, 32>}, {pipeline_mode = #tpu.pipeline_mode<synchronous>, transform_indices = @transform_2, window_bounds = array<i64: 160, 64>}, {pipeline_mode = #tpu.pipeline_mode<synchronous>, transform_indices = @transform_3, window_bounds = array<i64: 160, 32>}, {pipeline_mode = #tpu.pipeline_mode<synchronous>, transform_indices = @transform_4, window_bounds = array<i64: 160, 96>}, {pipeline_mode = #tpu.pipeline_mode<synchronous>, transform_indices = @transform_5, window_bounds = array<i64: 1, 64>}, {pipeline_mode = #tpu.pipeline_mode<synchronous>, transform_indices = @transform_6, window_bounds = array<i64: 1, 32>}, {pipeline_mode = #tpu.pipeline_mode<synchronous>, transform_indices = @transform_7, window_bounds = array<i64: 160, 64>}, {pipeline_mode = #tpu.pipeline_mode<synchronous>, transform_indices = @transform_8, window_bounds = array<i64: 160, 32>}, {pipeline_mode = #tpu.pipeline_mode<synchronous>, transform_indices = @transform_9, window_bounds = array<i64: 160, 96>}, {pipeline_mode = #tpu.pipeline_mode<synchronous>, transform_indices = @transform_10, window_bounds = array<i64: 1, 64>}, {pipeline_mode = #tpu.pipeline_mode<synchronous>, transform_indices = @transform_11, window_bounds = array<i64: 1, 32>}, {transform_indices = @transform_12, window_bounds = array<i64: 2, 8, 16, 32>}]} {
    %c0 = arith.constant 0 : index
    %c0_0 = arith.constant 0 : index
    %c0_1 = arith.constant 0 : index
    %c0_2 = arith.constant 0 : index
    %0 = vector.load %arg1[%c0, %c0_0, %c0_1, %c0_2] : memref<2x8x16x32xf32, #tpu.memory_space<vmem>>, vector<2x8x16x32xf32>
    %c0_3 = arith.constant 0 : index
    %c0_4 = arith.constant 0 : index
    %c0_5 = arith.constant 0 : index
    %c0_6 = arith.constant 0 : index
    %1 = vector.load %arg2[%c0_3, %c0_4, %c0_5, %c0_6] : memref<2x8x16x32xbf16, #tpu.memory_space<vmem>>, vector<2x8x16x32xbf16>
    %2 = vector.shape_cast %0 : vector<2x8x16x32xf32> to vector<256x32xf32>
    %3 = vector.extract_strided_slice %1 {offsets = [0, 0, 0, 0], sizes = [1, 8, 16, 32], strides = [1, 1, 1, 1]} : vector<2x8x16x32xbf16> to vector<1x8x16x32xbf16>
    %4 = vector.shape_cast %3 : vector<1x8x16x32xbf16> to vector<8x16x32xbf16>
    %cst = arith.constant 0.000000e+00 : bf16
    %5 = vector.broadcast %cst : bf16 to vector<8x2x32xbf16>
    %6 = tpu.concatenate %5, %4, %5 in 1 : vector<8x2x32xbf16>, vector<8x16x32xbf16>, vector<8x2x32xbf16> -> vector<8x20x32xbf16>
    %7 = vector.extract_strided_slice %6 {offsets = [0, 0, 0], sizes = [8, 16, 32], strides = [1, 1, 1]} : vector<8x20x32xbf16> to vector<8x16x32xbf16>
    %8 = vector.extract_strided_slice %6 {offsets = [0, 1, 0], sizes = [8, 16, 32], strides = [1, 1, 1]} : vector<8x20x32xbf16> to vector<8x16x32xbf16>
    %9 = vector.extract_strided_slice %6 {offsets = [0, 2, 0], sizes = [8, 16, 32], strides = [1, 1, 1]} : vector<8x20x32xbf16> to vector<8x16x32xbf16>
    %10 = vector.extract_strided_slice %6 {offsets = [0, 3, 0], sizes = [8, 16, 32], strides = [1, 1, 1]} : vector<8x20x32xbf16> to vector<8x16x32xbf16>
    %11 = vector.extract_strided_slice %6 {offsets = [0, 4, 0], sizes = [8, 16, 32], strides = [1, 1, 1]} : vector<8x20x32xbf16> to vector<8x16x32xbf16>
    %12 = tpu.concatenate %7, %8, %9, %10, %11 in 2 : vector<8x16x32xbf16>, vector<8x16x32xbf16>, vector<8x16x32xbf16>, vector<8x16x32xbf16>, vector<8x16x32xbf16> -> vector<8x16x160xbf16>
    %13 = vector.shape_cast %12 : vector<8x16x160xbf16> to vector<128x160xbf16>
    %14 = vector.extract_strided_slice %1 {offsets = [1, 0, 0, 0], sizes = [1, 8, 16, 32], strides = [1, 1, 1, 1]} : vector<2x8x16x32xbf16> to vector<1x8x16x32xbf16>
    %15 = vector.shape_cast %14 : vector<1x8x16x32xbf16> to vector<8x16x32xbf16>
    %cst_7 = arith.constant 0.000000e+00 : bf16
    %16 = vector.broadcast %cst_7 : bf16 to vector<8x2x32xbf16>
    %17 = tpu.concatenate %16, %15, %16 in 1 : vector<8x2x32xbf16>, vector<8x16x32xbf16>, vector<8x2x32xbf16> -> vector<8x20x32xbf16>
    %18 = vector.extract_strided_slice %17 {offsets = [0, 0, 0], sizes = [8, 16, 32], strides = [1, 1, 1]} : vector<8x20x32xbf16> to vector<8x16x32xbf16>
    %19 = vector.extract_strided_slice %17 {offsets = [0, 1, 0], sizes = [8, 16, 32], strides = [1, 1, 1]} : vector<8x20x32xbf16> to vector<8x16x32xbf16>
    %20 = vector.extract_strided_slice %17 {offsets = [0, 2, 0], sizes = [8, 16, 32], strides = [1, 1, 1]} : vector<8x20x32xbf16> to vector<8x16x32xbf16>
    %21 = vector.extract_strided_slice %17 {offsets = [0, 3, 0], sizes = [8, 16, 32], strides = [1, 1, 1]} : vector<8x20x32xbf16> to vector<8x16x32xbf16>
    %22 = vector.extract_strided_slice %17 {offsets = [0, 4, 0], sizes = [8, 16, 32], strides = [1, 1, 1]} : vector<8x20x32xbf16> to vector<8x16x32xbf16>
    %23 = tpu.concatenate %18, %19, %20, %21, %22 in 2 : vector<8x16x32xbf16>, vector<8x16x32xbf16>, vector<8x16x32xbf16>, vector<8x16x32xbf16>, vector<8x16x32xbf16> -> vector<8x16x160xbf16>
    %24 = vector.shape_cast %23 : vector<8x16x160xbf16> to vector<128x160xbf16>
    %25 = tpu.concatenate %13, %24 in 0 : vector<128x160xbf16>, vector<128x160xbf16> -> vector<256x160xbf16>
    %c0_8 = arith.constant 0 : index
    %c0_9 = arith.constant 0 : index
    %26 = vector.load %arg5[%c0_8, %c0_9] : memref<160x96xbf16, #tpu.memory_space<vmem>>, vector<160x96xbf16>
    %cst_10 = arith.constant dense<0.000000e+00> : vector<256x96xf32>
    %27 = tpu.matmul %25, %26, %cst_10 {dimension_numbers = #tpu.dot_dimension_numbers<[1], [0], [0], [1], [0, 0, 1, 1], [], []>} : vector<256x160xbf16>, vector<160x96xbf16>, vector<256x96xf32> -> vector<256x96xf32>
    %28 = arith.truncf %0 : vector<2x8x16x32xf32> to vector<2x8x16x32xbf16>
    %29 = vector.extract_strided_slice %28 {offsets = [0, 0, 0, 0], sizes = [1, 8, 16, 32], strides = [1, 1, 1, 1]} : vector<2x8x16x32xbf16> to vector<1x8x16x32xbf16>
    %30 = vector.shape_cast %29 : vector<1x8x16x32xbf16> to vector<8x16x32xbf16>
    %cst_11 = arith.constant 0.000000e+00 : bf16
    %31 = vector.broadcast %cst_11 : bf16 to vector<8x2x32xbf16>
    %32 = tpu.concatenate %31, %30, %31 in 1 : vector<8x2x32xbf16>, vector<8x16x32xbf16>, vector<8x2x32xbf16> -> vector<8x20x32xbf16>
    %33 = vector.extract_strided_slice %32 {offsets = [0, 0, 0], sizes = [8, 16, 32], strides = [1, 1, 1]} : vector<8x20x32xbf16> to vector<8x16x32xbf16>
    %34 = vector.extract_strided_slice %32 {offsets = [0, 1, 0], sizes = [8, 16, 32], strides = [1, 1, 1]} : vector<8x20x32xbf16> to vector<8x16x32xbf16>
    %35 = vector.extract_strided_slice %32 {offsets = [0, 2, 0], sizes = [8, 16, 32], strides = [1, 1, 1]} : vector<8x20x32xbf16> to vector<8x16x32xbf16>
    %36 = vector.extract_strided_slice %32 {offsets = [0, 3, 0], sizes = [8, 16, 32], strides = [1, 1, 1]} : vector<8x20x32xbf16> to vector<8x16x32xbf16>
    %37 = vector.extract_strided_slice %32 {offsets = [0, 4, 0], sizes = [8, 16, 32], strides = [1, 1, 1]} : vector<8x20x32xbf16> to vector<8x16x32xbf16>
    %38 = tpu.concatenate %33, %34, %35, %36, %37 in 2 : vector<8x16x32xbf16>, vector<8x16x32xbf16>, vector<8x16x32xbf16>, vector<8x16x32xbf16>, vector<8x16x32xbf16> -> vector<8x16x160xbf16>
    %39 = vector.shape_cast %38 : vector<8x16x160xbf16> to vector<128x160xbf16>
    %40 = vector.extract_strided_slice %28 {offsets = [1, 0, 0, 0], sizes = [1, 8, 16, 32], strides = [1, 1, 1, 1]} : vector<2x8x16x32xbf16> to vector<1x8x16x32xbf16>
    %41 = vector.shape_cast %40 : vector<1x8x16x32xbf16> to vector<8x16x32xbf16>
    %cst_12 = arith.constant 0.000000e+00 : bf16
    %42 = vector.broadcast %cst_12 : bf16 to vector<8x2x32xbf16>
    %43 = tpu.concatenate %42, %41, %42 in 1 : vector<8x2x32xbf16>, vector<8x16x32xbf16>, vector<8x2x32xbf16> -> vector<8x20x32xbf16>
    %44 = vector.extract_strided_slice %43 {offsets = [0, 0, 0], sizes = [8, 16, 32], strides = [1, 1, 1]} : vector<8x20x32xbf16> to vector<8x16x32xbf16>
    %45 = vector.extract_strided_slice %43 {offsets = [0, 1, 0], sizes = [8, 16, 32], strides = [1, 1, 1]} : vector<8x20x32xbf16> to vector<8x16x32xbf16>
    %46 = vector.extract_strided_slice %43 {offsets = [0, 2, 0], sizes = [8, 16, 32], strides = [1, 1, 1]} : vector<8x20x32xbf16> to vector<8x16x32xbf16>
    %47 = vector.extract_strided_slice %43 {offsets = [0, 3, 0], sizes = [8, 16, 32], strides = [1, 1, 1]} : vector<8x20x32xbf16> to vector<8x16x32xbf16>
    %48 = vector.extract_strided_slice %43 {offsets = [0, 4, 0], sizes = [8, 16, 32], strides = [1, 1, 1]} : vector<8x20x32xbf16> to vector<8x16x32xbf16>
    %49 = tpu.concatenate %44, %45, %46, %47, %48 in 2 : vector<8x16x32xbf16>, vector<8x16x32xbf16>, vector<8x16x32xbf16>, vector<8x16x32xbf16>, vector<8x16x32xbf16> -> vector<8x16x160xbf16>
    %50 = vector.shape_cast %49 : vector<8x16x160xbf16> to vector<128x160xbf16>
    %51 = tpu.concatenate %39, %50 in 0 : vector<128x160xbf16>, vector<128x160xbf16> -> vector<256x160xbf16>
    %c0_13 = arith.constant 0 : index
    %c0_14 = arith.constant 0 : index
    %52 = vector.load %arg3[%c0_13, %c0_14] : memref<160x64xbf16, #tpu.memory_space<vmem>>, vector<160x64xbf16>
    %cst_15 = arith.constant dense<0.000000e+00> : vector<256x64xf32>
    %53 = tpu.matmul %51, %52, %cst_15 {dimension_numbers = #tpu.dot_dimension_numbers<[1], [0], [0], [1], [0, 0, 1, 1], [], []>} : vector<256x160xbf16>, vector<160x64xbf16>, vector<256x64xf32> -> vector<256x64xf32>
    %54 = vector.extract_strided_slice %27 {offsets = [0, 0], sizes = [256, 64], strides = [1, 1]} : vector<256x96xf32> to vector<256x64xf32>
    %55 = arith.addf %53, %54 : vector<256x64xf32>
    %c0_16 = arith.constant 0 : index
    %c0_17 = arith.constant 0 : index
    %56 = vector.load %arg6[%c0_16, %c0_17] : memref<1x64xf32, #tpu.memory_space<vmem>>, vector<1x64xf32>
    %57 = vector.broadcast %56 : vector<1x64xf32> to vector<256x64xf32>
    %58 = arith.addf %55, %57 : vector<256x64xf32>
    %59 = arith.negf %58 : vector<256x64xf32>
    %60 = math.exp %59 : vector<256x64xf32>
    %cst_18 = arith.constant 1.000000e+00 : f32
    %61 = vector.broadcast %cst_18 : f32 to vector<256x64xf32>
    %62 = arith.addf %61, %60 : vector<256x64xf32>
    %63 = arith.divf %61, %62 : vector<256x64xf32>
    %64 = vector.extract_strided_slice %63 {offsets = [0, 0], sizes = [256, 32], strides = [1, 1]} : vector<256x64xf32> to vector<256x32xf32>
    %65 = vector.extract_strided_slice %63 {offsets = [0, 32], sizes = [256, 32], strides = [1, 1]} : vector<256x64xf32> to vector<256x32xf32>
    %66 = vector.shape_cast %65 : vector<256x32xf32> to vector<2x8x16x32xf32>
    %67 = arith.mulf %66, %0 : vector<2x8x16x32xf32>
    %68 = arith.truncf %67 : vector<2x8x16x32xf32> to vector<2x8x16x32xbf16>
    %69 = vector.extract_strided_slice %68 {offsets = [0, 0, 0, 0], sizes = [1, 8, 16, 32], strides = [1, 1, 1, 1]} : vector<2x8x16x32xbf16> to vector<1x8x16x32xbf16>
    %70 = vector.shape_cast %69 : vector<1x8x16x32xbf16> to vector<8x16x32xbf16>
    %cst_19 = arith.constant 0.000000e+00 : bf16
    %71 = vector.broadcast %cst_19 : bf16 to vector<8x2x32xbf16>
    %72 = tpu.concatenate %71, %70, %71 in 1 : vector<8x2x32xbf16>, vector<8x16x32xbf16>, vector<8x2x32xbf16> -> vector<8x20x32xbf16>
    %73 = vector.extract_strided_slice %72 {offsets = [0, 0, 0], sizes = [8, 16, 32], strides = [1, 1, 1]} : vector<8x20x32xbf16> to vector<8x16x32xbf16>
    %74 = vector.extract_strided_slice %72 {offsets = [0, 1, 0], sizes = [8, 16, 32], strides = [1, 1, 1]} : vector<8x20x32xbf16> to vector<8x16x32xbf16>
    %75 = vector.extract_strided_slice %72 {offsets = [0, 2, 0], sizes = [8, 16, 32], strides = [1, 1, 1]} : vector<8x20x32xbf16> to vector<8x16x32xbf16>
    %76 = vector.extract_strided_slice %72 {offsets = [0, 3, 0], sizes = [8, 16, 32], strides = [1, 1, 1]} : vector<8x20x32xbf16> to vector<8x16x32xbf16>
    %77 = vector.extract_strided_slice %72 {offsets = [0, 4, 0], sizes = [8, 16, 32], strides = [1, 1, 1]} : vector<8x20x32xbf16> to vector<8x16x32xbf16>
    %78 = tpu.concatenate %73, %74, %75, %76, %77 in 2 : vector<8x16x32xbf16>, vector<8x16x32xbf16>, vector<8x16x32xbf16>, vector<8x16x32xbf16>, vector<8x16x32xbf16> -> vector<8x16x160xbf16>
    %79 = vector.shape_cast %78 : vector<8x16x160xbf16> to vector<128x160xbf16>
    %80 = vector.extract_strided_slice %68 {offsets = [1, 0, 0, 0], sizes = [1, 8, 16, 32], strides = [1, 1, 1, 1]} : vector<2x8x16x32xbf16> to vector<1x8x16x32xbf16>
    %81 = vector.shape_cast %80 : vector<1x8x16x32xbf16> to vector<8x16x32xbf16>
    %cst_20 = arith.constant 0.000000e+00 : bf16
    %82 = vector.broadcast %cst_20 : bf16 to vector<8x2x32xbf16>
    %83 = tpu.concatenate %82, %81, %82 in 1 : vector<8x2x32xbf16>, vector<8x16x32xbf16>, vector<8x2x32xbf16> -> vector<8x20x32xbf16>
    %84 = vector.extract_strided_slice %83 {offsets = [0, 0, 0], sizes = [8, 16, 32], strides = [1, 1, 1]} : vector<8x20x32xbf16> to vector<8x16x32xbf16>
    %85 = vector.extract_strided_slice %83 {offsets = [0, 1, 0], sizes = [8, 16, 32], strides = [1, 1, 1]} : vector<8x20x32xbf16> to vector<8x16x32xbf16>
    %86 = vector.extract_strided_slice %83 {offsets = [0, 2, 0], sizes = [8, 16, 32], strides = [1, 1, 1]} : vector<8x20x32xbf16> to vector<8x16x32xbf16>
    %87 = vector.extract_strided_slice %83 {offsets = [0, 3, 0], sizes = [8, 16, 32], strides = [1, 1, 1]} : vector<8x20x32xbf16> to vector<8x16x32xbf16>
    %88 = vector.extract_strided_slice %83 {offsets = [0, 4, 0], sizes = [8, 16, 32], strides = [1, 1, 1]} : vector<8x20x32xbf16> to vector<8x16x32xbf16>
    %89 = tpu.concatenate %84, %85, %86, %87, %88 in 2 : vector<8x16x32xbf16>, vector<8x16x32xbf16>, vector<8x16x32xbf16>, vector<8x16x32xbf16>, vector<8x16x32xbf16> -> vector<8x16x160xbf16>
    %90 = vector.shape_cast %89 : vector<8x16x160xbf16> to vector<128x160xbf16>
    %91 = tpu.concatenate %79, %90 in 0 : vector<128x160xbf16>, vector<128x160xbf16> -> vector<256x160xbf16>
    %c0_21 = arith.constant 0 : index
    %c0_22 = arith.constant 0 : index
    %92 = vector.load %arg4[%c0_21, %c0_22] : memref<160x32xbf16, #tpu.memory_space<vmem>>, vector<160x32xbf16>
    %cst_23 = arith.constant dense<0.000000e+00> : vector<256x32xf32>
    %93 = tpu.matmul %91, %92, %cst_23 {dimension_numbers = #tpu.dot_dimension_numbers<[1], [0], [0], [1], [0, 0, 1, 1], [], []>} : vector<256x160xbf16>, vector<160x32xbf16>, vector<256x32xf32> -> vector<256x32xf32>
    %94 = vector.extract_strided_slice %27 {offsets = [0, 64], sizes = [256, 32], strides = [1, 1]} : vector<256x96xf32> to vector<256x32xf32>
    %95 = arith.addf %93, %94 : vector<256x32xf32>
    %c0_24 = arith.constant 0 : index
    %c0_25 = arith.constant 0 : index
    %96 = vector.load %arg7[%c0_24, %c0_25] : memref<1x32xf32, #tpu.memory_space<vmem>>, vector<1x32xf32>
    %97 = vector.broadcast %96 : vector<1x32xf32> to vector<256x32xf32>
    %98 = arith.addf %95, %97 : vector<256x32xf32>
    %99 = math.tanh %98 : vector<256x32xf32>
    %cst_26 = arith.constant 1.000000e+00 : f32
    %100 = vector.broadcast %cst_26 : f32 to vector<256x32xf32>
    %101 = arith.subf %100, %64 : vector<256x32xf32>
    %102 = arith.mulf %101, %2 : vector<256x32xf32>
    %103 = arith.mulf %64, %99 : vector<256x32xf32>
    %104 = arith.addf %102, %103 : vector<256x32xf32>
    %105 = vector.shape_cast %104 : vector<256x32xf32> to vector<2x8x16x32xf32>
    %106 = vector.extract_strided_slice %1 {offsets = [0, 0, 0, 0], sizes = [1, 8, 16, 32], strides = [1, 1, 1, 1]} : vector<2x8x16x32xbf16> to vector<1x8x16x32xbf16>
    %107 = vector.shape_cast %106 : vector<1x8x16x32xbf16> to vector<8x16x32xbf16>
    %cst_27 = arith.constant 0.000000e+00 : bf16
    %108 = vector.broadcast %cst_27 : bf16 to vector<2x16x32xbf16>
    %109 = tpu.concatenate %108, %107, %108 in 0 : vector<2x16x32xbf16>, vector<8x16x32xbf16>, vector<2x16x32xbf16> -> vector<12x16x32xbf16>
    %110 = vector.extract_strided_slice %109 {offsets = [0, 0, 0], sizes = [8, 16, 32], strides = [1, 1, 1]} : vector<12x16x32xbf16> to vector<8x16x32xbf16>
    %111 = vector.extract_strided_slice %109 {offsets = [1, 0, 0], sizes = [8, 16, 32], strides = [1, 1, 1]} : vector<12x16x32xbf16> to vector<8x16x32xbf16>
    %112 = vector.extract_strided_slice %109 {offsets = [2, 0, 0], sizes = [8, 16, 32], strides = [1, 1, 1]} : vector<12x16x32xbf16> to vector<8x16x32xbf16>
    %113 = vector.extract_strided_slice %109 {offsets = [3, 0, 0], sizes = [8, 16, 32], strides = [1, 1, 1]} : vector<12x16x32xbf16> to vector<8x16x32xbf16>
    %114 = vector.extract_strided_slice %109 {offsets = [4, 0, 0], sizes = [8, 16, 32], strides = [1, 1, 1]} : vector<12x16x32xbf16> to vector<8x16x32xbf16>
    %115 = tpu.concatenate %110, %111, %112, %113, %114 in 2 : vector<8x16x32xbf16>, vector<8x16x32xbf16>, vector<8x16x32xbf16>, vector<8x16x32xbf16>, vector<8x16x32xbf16> -> vector<8x16x160xbf16>
    %116 = vector.shape_cast %115 : vector<8x16x160xbf16> to vector<128x160xbf16>
    %117 = vector.extract_strided_slice %1 {offsets = [1, 0, 0, 0], sizes = [1, 8, 16, 32], strides = [1, 1, 1, 1]} : vector<2x8x16x32xbf16> to vector<1x8x16x32xbf16>
    %118 = vector.shape_cast %117 : vector<1x8x16x32xbf16> to vector<8x16x32xbf16>
    %cst_28 = arith.constant 0.000000e+00 : bf16
    %119 = vector.broadcast %cst_28 : bf16 to vector<2x16x32xbf16>
    %120 = tpu.concatenate %119, %118, %119 in 0 : vector<2x16x32xbf16>, vector<8x16x32xbf16>, vector<2x16x32xbf16> -> vector<12x16x32xbf16>
    %121 = vector.extract_strided_slice %120 {offsets = [0, 0, 0], sizes = [8, 16, 32], strides = [1, 1, 1]} : vector<12x16x32xbf16> to vector<8x16x32xbf16>
    %122 = vector.extract_strided_slice %120 {offsets = [1, 0, 0], sizes = [8, 16, 32], strides = [1, 1, 1]} : vector<12x16x32xbf16> to vector<8x16x32xbf16>
    %123 = vector.extract_strided_slice %120 {offsets = [2, 0, 0], sizes = [8, 16, 32], strides = [1, 1, 1]} : vector<12x16x32xbf16> to vector<8x16x32xbf16>
    %124 = vector.extract_strided_slice %120 {offsets = [3, 0, 0], sizes = [8, 16, 32], strides = [1, 1, 1]} : vector<12x16x32xbf16> to vector<8x16x32xbf16>
    %125 = vector.extract_strided_slice %120 {offsets = [4, 0, 0], sizes = [8, 16, 32], strides = [1, 1, 1]} : vector<12x16x32xbf16> to vector<8x16x32xbf16>
    %126 = tpu.concatenate %121, %122, %123, %124, %125 in 2 : vector<8x16x32xbf16>, vector<8x16x32xbf16>, vector<8x16x32xbf16>, vector<8x16x32xbf16>, vector<8x16x32xbf16> -> vector<8x16x160xbf16>
    %127 = vector.shape_cast %126 : vector<8x16x160xbf16> to vector<128x160xbf16>
    %128 = tpu.concatenate %116, %127 in 0 : vector<128x160xbf16>, vector<128x160xbf16> -> vector<256x160xbf16>
    %c0_29 = arith.constant 0 : index
    %c0_30 = arith.constant 0 : index
    %129 = vector.load %arg10[%c0_29, %c0_30] : memref<160x96xbf16, #tpu.memory_space<vmem>>, vector<160x96xbf16>
    %cst_31 = arith.constant dense<0.000000e+00> : vector<256x96xf32>
    %130 = tpu.matmul %128, %129, %cst_31 {dimension_numbers = #tpu.dot_dimension_numbers<[1], [0], [0], [1], [0, 0, 1, 1], [], []>} : vector<256x160xbf16>, vector<160x96xbf16>, vector<256x96xf32> -> vector<256x96xf32>
    %131 = arith.truncf %105 : vector<2x8x16x32xf32> to vector<2x8x16x32xbf16>
    %132 = vector.extract_strided_slice %131 {offsets = [0, 0, 0, 0], sizes = [1, 8, 16, 32], strides = [1, 1, 1, 1]} : vector<2x8x16x32xbf16> to vector<1x8x16x32xbf16>
    %133 = vector.shape_cast %132 : vector<1x8x16x32xbf16> to vector<8x16x32xbf16>
    %cst_32 = arith.constant 0.000000e+00 : bf16
    %134 = vector.broadcast %cst_32 : bf16 to vector<2x16x32xbf16>
    %135 = tpu.concatenate %134, %133, %134 in 0 : vector<2x16x32xbf16>, vector<8x16x32xbf16>, vector<2x16x32xbf16> -> vector<12x16x32xbf16>
    %136 = vector.extract_strided_slice %135 {offsets = [0, 0, 0], sizes = [8, 16, 32], strides = [1, 1, 1]} : vector<12x16x32xbf16> to vector<8x16x32xbf16>
    %137 = vector.extract_strided_slice %135 {offsets = [1, 0, 0], sizes = [8, 16, 32], strides = [1, 1, 1]} : vector<12x16x32xbf16> to vector<8x16x32xbf16>
    %138 = vector.extract_strided_slice %135 {offsets = [2, 0, 0], sizes = [8, 16, 32], strides = [1, 1, 1]} : vector<12x16x32xbf16> to vector<8x16x32xbf16>
    %139 = vector.extract_strided_slice %135 {offsets = [3, 0, 0], sizes = [8, 16, 32], strides = [1, 1, 1]} : vector<12x16x32xbf16> to vector<8x16x32xbf16>
    %140 = vector.extract_strided_slice %135 {offsets = [4, 0, 0], sizes = [8, 16, 32], strides = [1, 1, 1]} : vector<12x16x32xbf16> to vector<8x16x32xbf16>
    %141 = tpu.concatenate %136, %137, %138, %139, %140 in 2 : vector<8x16x32xbf16>, vector<8x16x32xbf16>, vector<8x16x32xbf16>, vector<8x16x32xbf16>, vector<8x16x32xbf16> -> vector<8x16x160xbf16>
    %142 = vector.shape_cast %141 : vector<8x16x160xbf16> to vector<128x160xbf16>
    %143 = vector.extract_strided_slice %131 {offsets = [1, 0, 0, 0], sizes = [1, 8, 16, 32], strides = [1, 1, 1, 1]} : vector<2x8x16x32xbf16> to vector<1x8x16x32xbf16>
    %144 = vector.shape_cast %143 : vector<1x8x16x32xbf16> to vector<8x16x32xbf16>
    %cst_33 = arith.constant 0.000000e+00 : bf16
    %145 = vector.broadcast %cst_33 : bf16 to vector<2x16x32xbf16>
    %146 = tpu.concatenate %145, %144, %145 in 0 : vector<2x16x32xbf16>, vector<8x16x32xbf16>, vector<2x16x32xbf16> -> vector<12x16x32xbf16>
    %147 = vector.extract_strided_slice %146 {offsets = [0, 0, 0], sizes = [8, 16, 32], strides = [1, 1, 1]} : vector<12x16x32xbf16> to vector<8x16x32xbf16>
    %148 = vector.extract_strided_slice %146 {offsets = [1, 0, 0], sizes = [8, 16, 32], strides = [1, 1, 1]} : vector<12x16x32xbf16> to vector<8x16x32xbf16>
    %149 = vector.extract_strided_slice %146 {offsets = [2, 0, 0], sizes = [8, 16, 32], strides = [1, 1, 1]} : vector<12x16x32xbf16> to vector<8x16x32xbf16>
    %150 = vector.extract_strided_slice %146 {offsets = [3, 0, 0], sizes = [8, 16, 32], strides = [1, 1, 1]} : vector<12x16x32xbf16> to vector<8x16x32xbf16>
    %151 = vector.extract_strided_slice %146 {offsets = [4, 0, 0], sizes = [8, 16, 32], strides = [1, 1, 1]} : vector<12x16x32xbf16> to vector<8x16x32xbf16>
    %152 = tpu.concatenate %147, %148, %149, %150, %151 in 2 : vector<8x16x32xbf16>, vector<8x16x32xbf16>, vector<8x16x32xbf16>, vector<8x16x32xbf16>, vector<8x16x32xbf16> -> vector<8x16x160xbf16>
    %153 = vector.shape_cast %152 : vector<8x16x160xbf16> to vector<128x160xbf16>
    %154 = tpu.concatenate %142, %153 in 0 : vector<128x160xbf16>, vector<128x160xbf16> -> vector<256x160xbf16>
    %c0_34 = arith.constant 0 : index
    %c0_35 = arith.constant 0 : index
    %155 = vector.load %arg8[%c0_34, %c0_35] : memref<160x64xbf16, #tpu.memory_space<vmem>>, vector<160x64xbf16>
    %cst_36 = arith.constant dense<0.000000e+00> : vector<256x64xf32>
    %156 = tpu.matmul %154, %155, %cst_36 {dimension_numbers = #tpu.dot_dimension_numbers<[1], [0], [0], [1], [0, 0, 1, 1], [], []>} : vector<256x160xbf16>, vector<160x64xbf16>, vector<256x64xf32> -> vector<256x64xf32>
    %157 = vector.extract_strided_slice %130 {offsets = [0, 0], sizes = [256, 64], strides = [1, 1]} : vector<256x96xf32> to vector<256x64xf32>
    %158 = arith.addf %156, %157 : vector<256x64xf32>
    %c0_37 = arith.constant 0 : index
    %c0_38 = arith.constant 0 : index
    %159 = vector.load %arg11[%c0_37, %c0_38] : memref<1x64xf32, #tpu.memory_space<vmem>>, vector<1x64xf32>
    %160 = vector.broadcast %159 : vector<1x64xf32> to vector<256x64xf32>
    %161 = arith.addf %158, %160 : vector<256x64xf32>
    %162 = arith.negf %161 : vector<256x64xf32>
    %163 = math.exp %162 : vector<256x64xf32>
    %cst_39 = arith.constant 1.000000e+00 : f32
    %164 = vector.broadcast %cst_39 : f32 to vector<256x64xf32>
    %165 = arith.addf %164, %163 : vector<256x64xf32>
    %166 = arith.divf %164, %165 : vector<256x64xf32>
    %167 = vector.extract_strided_slice %166 {offsets = [0, 0], sizes = [256, 32], strides = [1, 1]} : vector<256x64xf32> to vector<256x32xf32>
    %168 = vector.extract_strided_slice %166 {offsets = [0, 32], sizes = [256, 32], strides = [1, 1]} : vector<256x64xf32> to vector<256x32xf32>
    %169 = vector.shape_cast %168 : vector<256x32xf32> to vector<2x8x16x32xf32>
    %170 = arith.mulf %169, %105 : vector<2x8x16x32xf32>
    %171 = arith.truncf %170 : vector<2x8x16x32xf32> to vector<2x8x16x32xbf16>
    %172 = vector.extract_strided_slice %171 {offsets = [0, 0, 0, 0], sizes = [1, 8, 16, 32], strides = [1, 1, 1, 1]} : vector<2x8x16x32xbf16> to vector<1x8x16x32xbf16>
    %173 = vector.shape_cast %172 : vector<1x8x16x32xbf16> to vector<8x16x32xbf16>
    %cst_40 = arith.constant 0.000000e+00 : bf16
    %174 = vector.broadcast %cst_40 : bf16 to vector<2x16x32xbf16>
    %175 = tpu.concatenate %174, %173, %174 in 0 : vector<2x16x32xbf16>, vector<8x16x32xbf16>, vector<2x16x32xbf16> -> vector<12x16x32xbf16>
    %176 = vector.extract_strided_slice %175 {offsets = [0, 0, 0], sizes = [8, 16, 32], strides = [1, 1, 1]} : vector<12x16x32xbf16> to vector<8x16x32xbf16>
    %177 = vector.extract_strided_slice %175 {offsets = [1, 0, 0], sizes = [8, 16, 32], strides = [1, 1, 1]} : vector<12x16x32xbf16> to vector<8x16x32xbf16>
    %178 = vector.extract_strided_slice %175 {offsets = [2, 0, 0], sizes = [8, 16, 32], strides = [1, 1, 1]} : vector<12x16x32xbf16> to vector<8x16x32xbf16>
    %179 = vector.extract_strided_slice %175 {offsets = [3, 0, 0], sizes = [8, 16, 32], strides = [1, 1, 1]} : vector<12x16x32xbf16> to vector<8x16x32xbf16>
    %180 = vector.extract_strided_slice %175 {offsets = [4, 0, 0], sizes = [8, 16, 32], strides = [1, 1, 1]} : vector<12x16x32xbf16> to vector<8x16x32xbf16>
    %181 = tpu.concatenate %176, %177, %178, %179, %180 in 2 : vector<8x16x32xbf16>, vector<8x16x32xbf16>, vector<8x16x32xbf16>, vector<8x16x32xbf16>, vector<8x16x32xbf16> -> vector<8x16x160xbf16>
    %182 = vector.shape_cast %181 : vector<8x16x160xbf16> to vector<128x160xbf16>
    %183 = vector.extract_strided_slice %171 {offsets = [1, 0, 0, 0], sizes = [1, 8, 16, 32], strides = [1, 1, 1, 1]} : vector<2x8x16x32xbf16> to vector<1x8x16x32xbf16>
    %184 = vector.shape_cast %183 : vector<1x8x16x32xbf16> to vector<8x16x32xbf16>
    %cst_41 = arith.constant 0.000000e+00 : bf16
    %185 = vector.broadcast %cst_41 : bf16 to vector<2x16x32xbf16>
    %186 = tpu.concatenate %185, %184, %185 in 0 : vector<2x16x32xbf16>, vector<8x16x32xbf16>, vector<2x16x32xbf16> -> vector<12x16x32xbf16>
    %187 = vector.extract_strided_slice %186 {offsets = [0, 0, 0], sizes = [8, 16, 32], strides = [1, 1, 1]} : vector<12x16x32xbf16> to vector<8x16x32xbf16>
    %188 = vector.extract_strided_slice %186 {offsets = [1, 0, 0], sizes = [8, 16, 32], strides = [1, 1, 1]} : vector<12x16x32xbf16> to vector<8x16x32xbf16>
    %189 = vector.extract_strided_slice %186 {offsets = [2, 0, 0], sizes = [8, 16, 32], strides = [1, 1, 1]} : vector<12x16x32xbf16> to vector<8x16x32xbf16>
    %190 = vector.extract_strided_slice %186 {offsets = [3, 0, 0], sizes = [8, 16, 32], strides = [1, 1, 1]} : vector<12x16x32xbf16> to vector<8x16x32xbf16>
    %191 = vector.extract_strided_slice %186 {offsets = [4, 0, 0], sizes = [8, 16, 32], strides = [1, 1, 1]} : vector<12x16x32xbf16> to vector<8x16x32xbf16>
    %192 = tpu.concatenate %187, %188, %189, %190, %191 in 2 : vector<8x16x32xbf16>, vector<8x16x32xbf16>, vector<8x16x32xbf16>, vector<8x16x32xbf16>, vector<8x16x32xbf16> -> vector<8x16x160xbf16>
    %193 = vector.shape_cast %192 : vector<8x16x160xbf16> to vector<128x160xbf16>
    %194 = tpu.concatenate %182, %193 in 0 : vector<128x160xbf16>, vector<128x160xbf16> -> vector<256x160xbf16>
    %c0_42 = arith.constant 0 : index
    %c0_43 = arith.constant 0 : index
    %195 = vector.load %arg9[%c0_42, %c0_43] : memref<160x32xbf16, #tpu.memory_space<vmem>>, vector<160x32xbf16>
    %cst_44 = arith.constant dense<0.000000e+00> : vector<256x32xf32>
    %196 = tpu.matmul %194, %195, %cst_44 {dimension_numbers = #tpu.dot_dimension_numbers<[1], [0], [0], [1], [0, 0, 1, 1], [], []>} : vector<256x160xbf16>, vector<160x32xbf16>, vector<256x32xf32> -> vector<256x32xf32>
    %197 = vector.extract_strided_slice %130 {offsets = [0, 64], sizes = [256, 32], strides = [1, 1]} : vector<256x96xf32> to vector<256x32xf32>
    %198 = arith.addf %196, %197 : vector<256x32xf32>
    %c0_45 = arith.constant 0 : index
    %c0_46 = arith.constant 0 : index
    %199 = vector.load %arg12[%c0_45, %c0_46] : memref<1x32xf32, #tpu.memory_space<vmem>>, vector<1x32xf32>
    %200 = vector.broadcast %199 : vector<1x32xf32> to vector<256x32xf32>
    %201 = arith.addf %198, %200 : vector<256x32xf32>
    %202 = math.tanh %201 : vector<256x32xf32>
    %cst_47 = arith.constant 1.000000e+00 : f32
    %203 = vector.broadcast %cst_47 : f32 to vector<256x32xf32>
    %204 = arith.subf %203, %167 : vector<256x32xf32>
    %205 = arith.mulf %204, %104 : vector<256x32xf32>
    %206 = arith.mulf %167, %202 : vector<256x32xf32>
    %207 = arith.addf %205, %206 : vector<256x32xf32>
    %208 = vector.shape_cast %207 : vector<256x32xf32> to vector<2x8x16x32xf32>
    %c0_48 = arith.constant 0 : index
    %c0_49 = arith.constant 0 : index
    %c0_50 = arith.constant 0 : index
    %c0_51 = arith.constant 0 : index
    %209 = vector.load %arg13[%c0_48, %c0_49, %c0_50, %c0_51] : memref<2x8x16x32xf32, #tpu.memory_space<vmem>>, vector<2x8x16x32xf32>
    tpu.vector_store %arg13[%c0_48, %c0_49, %c0_50, %c0_51], %208 {strides = array<i32>} : memref<2x8x16x32xf32, #tpu.memory_space<vmem>>, vector<2x8x16x32xf32>,
    return
  }
  func.func @transform_0(%arg0: i32) -> (i32, i32, i32, i32) {
    %c0_i32 = arith.constant 0 : i32
    %c0_i32_0 = arith.constant 0 : i32
    %c0_i32_1 = arith.constant 0 : i32
    %c0_i32_2 = arith.constant 0 : i32
    return %arg0, %c0_i32, %c0_i32_0, %c0_i32_1 : i32, i32, i32, i32
  }
  func.func @transform_1(%arg0: i32) -> (i32, i32, i32, i32) {
    %c0_i32 = arith.constant 0 : i32
    %c0_i32_0 = arith.constant 0 : i32
    %c0_i32_1 = arith.constant 0 : i32
    %c0_i32_2 = arith.constant 0 : i32
    return %arg0, %c0_i32, %c0_i32_0, %c0_i32_1 : i32, i32, i32, i32
  }
  func.func @transform_2(%arg0: i32) -> (i32, i32) {
    %c0_i32 = arith.constant 0 : i32
    %c0_i32_0 = arith.constant 0 : i32
    %c0_i32_1 = arith.constant 0 : i32
    return %c0_i32, %c0_i32_0 : i32, i32
  }
  func.func @transform_3(%arg0: i32) -> (i32, i32) {
    %c0_i32 = arith.constant 0 : i32
    %c0_i32_0 = arith.constant 0 : i32
    %c0_i32_1 = arith.constant 0 : i32
    return %c0_i32, %c0_i32_0 : i32, i32
  }
  func.func @transform_4(%arg0: i32) -> (i32, i32) {
    %c0_i32 = arith.constant 0 : i32
    %c0_i32_0 = arith.constant 0 : i32
    %c0_i32_1 = arith.constant 0 : i32
    return %c0_i32, %c0_i32_0 : i32, i32
  }
  func.func @transform_5(%arg0: i32) -> (i32, i32) {
    %c0_i32 = arith.constant 0 : i32
    %c0_i32_0 = arith.constant 0 : i32
    %c0_i32_1 = arith.constant 0 : i32
    return %c0_i32, %c0_i32_0 : i32, i32
  }
  func.func @transform_6(%arg0: i32) -> (i32, i32) {
    %c0_i32 = arith.constant 0 : i32
    %c0_i32_0 = arith.constant 0 : i32
    %c0_i32_1 = arith.constant 0 : i32
    return %c0_i32, %c0_i32_0 : i32, i32
  }
  func.func @transform_7(%arg0: i32) -> (i32, i32) {
    %c0_i32 = arith.constant 0 : i32
    %c0_i32_0 = arith.constant 0 : i32
    %c0_i32_1 = arith.constant 0 : i32
    return %c0_i32, %c0_i32_0 : i32, i32
  }
  func.func @transform_8(%arg0: i32) -> (i32, i32) {
    %c0_i32 = arith.constant 0 : i32
    %c0_i32_0 = arith.constant 0 : i32
    %c0_i32_1 = arith.constant 0 : i32
    return %c0_i32, %c0_i32_0 : i32, i32
  }
  func.func @transform_9(%arg0: i32) -> (i32, i32) {
    %c0_i32 = arith.constant 0 : i32
    %c0_i32_0 = arith.constant 0 : i32
    %c0_i32_1 = arith.constant 0 : i32
    return %c0_i32, %c0_i32_0 : i32, i32
  }
  func.func @transform_10(%arg0: i32) -> (i32, i32) {
    %c0_i32 = arith.constant 0 : i32
    %c0_i32_0 = arith.constant 0 : i32
    %c0_i32_1 = arith.constant 0 : i32
    return %c0_i32, %c0_i32_0 : i32, i32
  }
  func.func @transform_11(%arg0: i32) -> (i32, i32) {
    %c0_i32 = arith.constant 0 : i32
    %c0_i32_0 = arith.constant 0 : i32
    %c0_i32_1 = arith.constant 0 : i32
    return %c0_i32, %c0_i32_0 : i32, i32
  }
  func.func @transform_12(%arg0: i32) -> (i32, i32, i32, i32) {
    %c0_i32 = arith.constant 0 : i32
    %c0_i32_0 = arith.constant 0 : i32
    %c0_i32_1 = arith.constant 0 : i32
    %c0_i32_2 = arith.constant 0 : i32
    return %arg0, %c0_i32, %c0_i32_0, %c0_i32_1 : i32, i32, i32, i32
  }
}

</mosaic_0001>

<llo_original>
// kernel: sepconv_gru_coarsest.1
$region0: #{sepconv_gru_coarsest.1}
  #allocation0 [shape = 'u32[]', space=smem, size = 0x4, offset = 0x4, fixed_abs, tag = 'smem constant byte address 0x4 - core index']
  #allocation1 [shape = 'u32[144,128]{1,0:T(1,128)}', space=vmem, size = 0x12000, scoped, tag = 'internal scratch']
  %s0 = inlined_call_operand.vmem [shape: f32[2,8,16,32], index: 0, kind: input, shape index: {}]
  %s1 = inlined_call_operand.vmem [shape: bf16[2,8,16,32], index: 1, kind: input, shape index: {}]
  %s2 = inlined_call_operand.hbm [shape: bf16[160,64], index: 2, kind: input, shape index: {}]
  %s3 = inlined_call_operand.hbm [shape: bf16[160,32], index: 3, kind: input, shape index: {}]
  %s4 = inlined_call_operand.hbm [shape: bf16[160,96], index: 4, kind: input, shape index: {}]
  %s5 = inlined_call_operand.vmem [shape: f32[1,64], index: 5, kind: input, shape index: {}]
  %s6 = inlined_call_operand.vmem [shape: f32[1,32], index: 6, kind: input, shape index: {}]
  %s7 = inlined_call_operand.hbm [shape: bf16[160,64], index: 7, kind: input, shape index: {}]
  %s8 = inlined_call_operand.hbm [shape: bf16[160,32], index: 8, kind: input, shape index: {}]
  %s9 = inlined_call_operand.vmem [shape: bf16[160,96], index: 9, kind: input, shape index: {}]
  %s10 = inlined_call_operand.vmem [shape: f32[1,64], index: 10, kind: input, shape index: {}]
  %s11 = inlined_call_operand.vmem [shape: f32[1,32], index: 11, kind: input, shape index: {}]
  %s12 = inlined_call_operand.hbm [shape: f32[2,8,16,32], index: 12, kind: output, shape index: {}]
  %s13 = sld [smem:[#allocation0]]
  $region78: #{sepconv_gru_coarsest.1} parent=0
    _
  %s15 = ssub.s32 1, %s13
  %s16 = scalar_select 0, %s15, %s13
  $region1: #{sepconv_gru_coarsest.1} parent=0
    #allocation2 [shape = 'u8[40960]{0}', space=vmem, size = 0xa000, scoped, tag = 'input window, operand 2, single buffered']
    #allocation3 [shape = 's32[1]{0}', space=sflag, size = 0x4, scoped, tag = 'scoped memory for sepconv_gru_coarsest.1']
    #allocation4 [shape = 's32[1]{0}', space=sflag, size = 0x4, scoped, tag = 'scoped memory for sepconv_gru_coarsest.1']
    #allocation5 [shape = 'u8[40960]{0}', space=vmem, size = 0xa000, scoped, tag = 'input window, operand 3, single buffered']
    #allocation6 [shape = 's32[1]{0}', space=sflag, size = 0x4, scoped, tag = 'scoped memory for sepconv_gru_coarsest.1']
    #allocation7 [shape = 'u8[40960]{0}', space=vmem, size = 0xa000, scoped, tag = 'input window, operand 4, single buffered']
    #allocation8 [shape = 'u8[40960]{0}', space=vmem, size = 0xa000, scoped, tag = 'input window, operand 7, single buffered']
    #allocation9 [shape = 's32[1]{0}', space=sflag, size = 0x4, scoped, tag = 'scoped memory for sepconv_gru_coarsest.1']
    #allocation10 [shape = 'u8[40960]{0}', space=vmem, size = 0xa000, scoped, tag = 'input window, operand 8, single buffered']
    #allocation11 [shape = 'u8[131072]{0}', space=vmem, size = 0x20000, scoped, tag = 'output window, operand 0, single buffered']
    %17 = vsyncpa [#allocation3], 0
    %18 = vsyncpa [#allocation6], 0
    %19 = vsyncpa [#allocation9], 0
    %20 = vsyncpa [#allocation4], 0
    // Predicated region
    $region2: #{sepconv_gru_coarsest.1} parent=1 // pred_check
      _
    $region3: #{sepconv_gru_coarsest.1} parent=1 // pred_check_branch
      %22 = sbr.rel (0) target = $region5
    $region4: #{sepconv_gru_coarsest.1} parent=1 // pred_region
      _
    $region5: #{sepconv_gru_coarsest.1} parent=1 // pred_fallthru
      _
    // Predicated region
    $region6: #{sepconv_gru_coarsest.1} parent=1 // pred_check
      _
    $region7: #{sepconv_gru_coarsest.1} parent=1 // pred_check_branch
      %24 = sbr.rel (0) target = $region9
    $region8: #{sepconv_gru_coarsest.1} parent=1 // pred_region
      _
    $region9: #{sepconv_gru_coarsest.1} parent=1 // pred_fallthru
      _
    // Predicated region
    $region10: #{sepconv_gru_coarsest.1} parent=1 // pred_check
      _
    $region11: #{sepconv_gru_coarsest.1} parent=1 // pred_check_branch
      %26 = sbr.rel (0) target = $region13
    $region12: #{sepconv_gru_coarsest.1} parent=1 // pred_region
      %s28 = ssub.s32 1280, 1280
      %29 = vsyncadd [#allocation3], %s28
      %s30 = sshll.u32 [#allocation2], 4
      %s31 = int_to_ptr.vmem [resolvable:$true] %s30
      %36 = dma.hbm_to_vmem [thread:$0]  %s2, 1280, %s31, [#allocation3], 64, 64, 4
    $region13: #{sepconv_gru_coarsest.1} parent=1 // pred_fallthru
      _
    // Predicated region
    $region14: #{sepconv_gru_coarsest.1} parent=1 // pred_check
      _
    $region15: #{sepconv_gru_coarsest.1} parent=1 // pred_check_branch
      %38 = sbr.rel (0) target = $region17
    $region16: #{sepconv_gru_coarsest.1} parent=1 // pred_region
      %s40 = ssub.s32 1280, 1280
      %41 = vsyncadd [#allocation6], %s40
      %s42 = sshll.u32 [#allocation5], 4
      %s43 = int_to_ptr.vmem [resolvable:$true] %s42
      %48 = dma.hbm_to_vmem [thread:$0]  %s3, 1280, %s43, [#allocation6], 64, 64, 4
    $region17: #{sepconv_gru_coarsest.1} parent=1 // pred_fallthru
      _
    // Predicated region
    $region18: #{sepconv_gru_coarsest.1} parent=1 // pred_check
      _
    $region19: #{sepconv_gru_coarsest.1} parent=1 // pred_check_branch
      %50 = sbr.rel (0) target = $region21
    $region20: #{sepconv_gru_coarsest.1} parent=1 // pred_region
      %s52 = ssub.s32 1280, 1280
      %53 = vsyncadd [#allocation6], %s52
      %s54 = sshll.u32 [#allocation7], 4
      %s55 = int_to_ptr.vmem [resolvable:$true] %s54
      %60 = dma.hbm_to_vmem [thread:$0]  %s4, 1280, %s55, [#allocation6], 64, 64, 4
    $region21: #{sepconv_gru_coarsest.1} parent=1 // pred_fallthru
      _
    // Predicated region
    $region22: #{sepconv_gru_coarsest.1} parent=1 // pred_check
      _
    $region23: #{sepconv_gru_coarsest.1} parent=1 // pred_check_branch
      %62 = sbr.rel (0) target = $region25
    $region24: #{sepconv_gru_coarsest.1} parent=1 // pred_region
      _
    $region25: #{sepconv_gru_coarsest.1} parent=1 // pred_fallthru
      _
    // Predicated region
    $region26: #{sepconv_gru_coarsest.1} parent=1 // pred_check
      _
    $region27: #{sepconv_gru_coarsest.1} parent=1 // pred_check_branch
      %64 = sbr.rel (0) target = $region29
    $region28: #{sepconv_gru_coarsest.1} parent=1 // pred_region
      _
    $region29: #{sepconv_gru_coarsest.1} parent=1 // pred_fallthru
      _
    // Predicated region
    $region30: #{sepconv_gru_coarsest.1} parent=1 // pred_check
      _
    $region31: #{sepconv_gru_coarsest.1} parent=1 // pred_check_branch
      %66 = sbr.rel (0) target = $region33
    $region32: #{sepconv_gru_coarsest.1} parent=1 // pred_region
      %s68 = ssub.s32 1280, 1280
      %69 = vsyncadd [#allocation9], %s68
      %s70 = sshll.u32 [#allocation8], 4
      %s71 = int_to_ptr.vmem [resolvable:$true] %s70
      %76 = dma.hbm_to_vmem [thread:$0]  %s7, 1280, %s71, [#allocation9], 64, 64, 4
    $region33: #{sepconv_gru_coarsest.1} parent=1 // pred_fallthru
      _
    // Predicated region
    $region34: #{sepconv_gru_coarsest.1} parent=1 // pred_check
      _
    $region35: #{sepconv_gru_coarsest.1} parent=1 // pred_check_branch
      %78 = sbr.rel (0) target = $region37
    $region36: #{sepconv_gru_coarsest.1} parent=1 // pred_region
      %s80 = ssub.s32 1280, 1280
      %81 = vsyncadd [#allocation9], %s80
      %s82 = sshll.u32 [#allocation10], 4
      %s83 = int_to_ptr.vmem [resolvable:$true] %s82
      %88 = dma.hbm_to_vmem [thread:$0]  %s8, 1280, %s83, [#allocation9], 64, 64, 4
    $region37: #{sepconv_gru_coarsest.1} parent=1 // pred_fallthru
      _
    // Predicated region
    $region38: #{sepconv_gru_coarsest.1} parent=1 // pred_check
      _
    $region39: #{sepconv_gru_coarsest.1} parent=1 // pred_check_branch
      %90 = sbr.rel (0) target = $region41
    $region40: #{sepconv_gru_coarsest.1} parent=1 // pred_region
      _
    $region41: #{sepconv_gru_coarsest.1} parent=1 // pred_fallthru
      _
    // Predicated region
    $region42: #{sepconv_gru_coarsest.1} parent=1 // pred_check
      _
    $region43: #{sepconv_gru_coarsest.1} parent=1 // pred_check_branch
      %92 = sbr.rel (0) target = $region45
    $region44: #{sepconv_gru_coarsest.1} parent=1 // pred_region
      _
    $region45: #{sepconv_gru_coarsest.1} parent=1 // pred_fallthru
      _
    // Predicated region
    $region46: #{sepconv_gru_coarsest.1} parent=1 // pred_check
      _
    $region47: #{sepconv_gru_coarsest.1} parent=1 // pred_check_branch
      %94 = sbr.rel (0) target = $region49
    $region48: #{sepconv_gru_coarsest.1} parent=1 // pred_region
      _
    $region49: #{sepconv_gru_coarsest.1} parent=1 // pred_fallthru
      _
    // Predicated region
    $region50: #{sepconv_gru_coarsest.1} parent=1 // pred_check
      _
    $region51: #{sepconv_gru_coarsest.1} parent=1 // pred_check_branch
      %96 = sbr.rel (0) target = $region53
    $region52: #{sepconv_gru_coarsest.1} parent=1 // pred_region
      %97 = dma.done [#allocation3], 1280
    $region53: #{sepconv_gru_coarsest.1} parent=1 // pred_fallthru
      _
    // Predicated region
    $region54: #{sepconv_gru_coarsest.1} parent=1 // pred_check
      _
    $region55: #{sepconv_gru_coarsest.1} parent=1 // pred_check_branch
      %99 = sbr.rel (0) target = $region57
    $region56: #{sepconv_gru_coarsest.1} parent=1 // pred_region
      %100 = dma.done [#allocation6], 1280
    $region57: #{sepconv_gru_coarsest.1} parent=1 // pred_fallthru
      _
    // Predicated region
    $region58: #{sepconv_gru_coarsest.1} parent=1 // pred_check
      _
    $region59: #{sepconv_gru_coarsest.1} parent=1 // pred_check_branch
      %102 = sbr.rel (0) target = $region61
    $region60: #{sepconv_gru_coarsest.1} parent=1 // pred_region
      %103 = dma.done [#allocation6], 1280
    $region61: #{sepconv_gru_coarsest.1} parent=1 // pred_fallthru
      _
    // Predicated region
    $region62: #{sepconv_gru_coarsest.1} parent=1 // pred_check
      _
    $region63: #{sepconv_gru_coarsest.1} parent=1 // pred_check_branch
      %105 = sbr.rel (0) target = $region65
    $region64: #{sepconv_gru_coarsest.1} parent=1 // pred_region
      %106 = dma.done [#allocation9], 1280
    $region65: #{sepconv_gru_coarsest.1} parent=1 // pred_fallthru
      _
    // Predicated region
    $region66: #{sepconv_gru_coarsest.1} parent=1 // pred_check
      _
    $region67: #{sepconv_gru_coarsest.1} parent=1 // pred_check_branch
      %108 = sbr.rel (0) target = $region69
    $region68: #{sepconv_gru_coarsest.1} parent=1 // pred_region
      %109 = dma.done [#allocation9], 1280
    $region69: #{sepconv_gru_coarsest.1} parent=1 // pred_fallthru
      _
    %v111 = vld [vmem:[%s0] sm:$0xff]
    %v112 = vld [vmem:[%s0 + $0x8] sm:$0xff]
    %v113 = vld [vmem:[%s0 + $0x10] sm:$0xff]
    %v114 = vld [vmem:[%s0 + $0x18] sm:$0xff]
    %v115 = vld [vmem:[%s0 + $0x20] sm:$0xff]
    %v116 = vld [vmem:[%s0 + $0x28] sm:$0xff]
    %v117 = vld [vmem:[%s0 + $0x30] sm:$0xff]
    %v118 = vld [vmem:[%s0 + $0x38] sm:$0xff]
    %v119 = vld [vmem:[%s0 + $0x40] sm:$0xff]
    %v120 = vld [vmem:[%s0 + $0x48] sm:$0xff]
    %v121 = vld [vmem:[%s0 + $0x50] sm:$0xff]
    %v122 = vld [vmem:[%s0 + $0x58] sm:$0xff]
    %v123 = vld [vmem:[%s0 + $0x60] sm:$0xff]
    %v124 = vld [vmem:[%s0 + $0x68] sm:$0xff]
    %v125 = vld [vmem:[%s0 + $0x70] sm:$0xff]
    %v126 = vld [vmem:[%s0 + $0x78] sm:$0xff]
    %v127 = vld [vmem:[%s0 + $0x80] sm:$0xff]
    %v128 = vld [vmem:[%s0 + $0x88] sm:$0xff]
    %v129 = vld [vmem:[%s0 + $0x90] sm:$0xff]
    %v130 = vld [vmem:[%s0 + $0x98] sm:$0xff]
    %v131 = vld [vmem:[%s0 + $0xa0] sm:$0xff]
    %v132 = vld [vmem:[%s0 + $0xa8] sm:$0xff]
    %v133 = vld [vmem:[%s0 + $0xb0] sm:$0xff]
    %v134 = vld [vmem:[%s0 + $0xb8] sm:$0xff]
    %v135 = vld [vmem:[%s0 + $0xc0] sm:$0xff]
    %v136 = vld [vmem:[%s0 + $0xc8] sm:$0xff]
    %v137 = vld [vmem:[%s0 + $0xd0] sm:$0xff]
    %v138 = vld [vmem:[%s0 + $0xd8] sm:$0xff]
    %v139 = vld [vmem:[%s0 + $0xe0] sm:$0xff]
    %v140 = vld [vmem:[%s0 + $0xe8] sm:$0xff]
    %v141 = vld [vmem:[%s0 + $0xf0] sm:$0xff]
    %v142 = vld [vmem:[%s0 + $0xf8] sm:$0xff]
    %v143 = vld [vmem:[%s1] sm:$0xf]
    %v144 = vld [vmem:[%s1 + $0x4] sm:$0xf]
    %v145 = vld [vmem:[%s1 + $0x8] sm:$0xf]
    %v146 = vld [vmem:[%s1 + $0xc] sm:$0xf]
    %v147 = vld [vmem:[%s1 + $0x10] sm:$0xf]
    %v148 = vld [vmem:[%s1 + $0x14] sm:$0xf]
    %v149 = vld [vmem:[%s1 + $0x18] sm:$0xf]
    %v150 = vld [vmem:[%s1 + $0x1c] sm:$0xf]
    %v151 = vld [vmem:[%s1 + $0x20] sm:$0xf]
    %v152 = vld [vmem:[%s1 + $0x24] sm:$0xf]
    %v153 = vld [vmem:[%s1 + $0x28] sm:$0xf]
    %v154 = vld [vmem:[%s1 + $0x2c] sm:$0xf]
    %v155 = vld [vmem:[%s1 + $0x30] sm:$0xf]
    %v156 = vld [vmem:[%s1 + $0x34] sm:$0xf]
    %v157 = vld [vmem:[%s1 + $0x38] sm:$0xf]
    %v158 = vld [vmem:[%s1 + $0x3c] sm:$0xf]
    %v159 = vld [vmem:[%s1 + $0x40] sm:$0xf]
    %v160 = vld [vmem:[%s1 + $0x44] sm:$0xf]
    %v161 = vld [vmem:[%s1 + $0x48] sm:$0xf]
    %v162 = vld [vmem:[%s1 + $0x4c] sm:$0xf]
    %v163 = vld [vmem:[%s1 + $0x50] sm:$0xf]
    %v164 = vld [vmem:[%s1 + $0x54] sm:$0xf]
    %v165 = vld [vmem:[%s1 + $0x58] sm:$0xf]
    %v166 = vld [vmem:[%s1 + $0x5c] sm:$0xf]
    %v167 = vld [vmem:[%s1 + $0x60] sm:$0xf]
    %v168 = vld [vmem:[%s1 + $0x64] sm:$0xf]
    %v169 = vld [vmem:[%s1 + $0x68] sm:$0xf]
    %v170 = vld [vmem:[%s1 + $0x6c] sm:$0xf]
    %v171 = vld [vmem:[%s1 + $0x70] sm:$0xf]
    %v172 = vld [vmem:[%s1 + $0x74] sm:$0xf]
    %v173 = vld [vmem:[%s1 + $0x78] sm:$0xf]
    %v174 = vld [vmem:[%s1 + $0x7c] sm:$0xf]
    %v191 = vunpack.c.l.b16 %v143
    %v192 = vunpack.c.l.b16 %v144
    %v193 = vunpack.c.l.b16 %v145
    %v194 = vunpack.c.l.b16 %v146
    %v195 = vunpack.c.l.b16 %v147
    %v196 = vunpack.c.l.b16 %v148
    %v197 = vunpack.c.l.b16 %v149
    %v198 = vunpack.c.l.b16 %v150
    %v199 = vunpack.c.l.b16 %v151
    %v200 = vunpack.c.l.b16 %v152
    %v201 = vunpack.c.l.b16 %v153
    %v202 = vunpack.c.l.b16 %v154
    %v203 = vunpack.c.l.b16 %v155
    %v204 = vunpack.c.l.b16 %v156
    %v205 = vunpack.c.l.b16 %v157
    %v206 = vunpack.c.l.b16 %v158
    %v207 = vpack.c.b16 %v192, %v191
    %v208 = vpack.c.b16 %v194, %v193
    %v209 = vpack.c.b16 %v196, %v195
    %v210 = vpack.c.b16 %v198, %v197
    %v211 = vpack.c.b16 %v200, %v199
    %v212 = vpack.c.b16 %v202, %v201
    %v213 = vpack.c.b16 %v204, %v203
    %v214 = vpack.c.b16 %v206, %v205
    %v215 = vrot.slane %v207, 7
    %v216 = vrot.slane %v208, 7
    %v217 = vrot.slane %v209, 7
    %v218 = vrot.slane %v210, 7
    %v219 = vrot.slane %v211, 7
    %v220 = vrot.slane %v212, 7
    %v221 = vrot.slane %v213, 7
    %v222 = vrot.slane %v214, 7
    %vm223 = vcmask 1040384
    %v226 = vsel %vm223, 0, %v215
    %v228 = vsel %vm223, 0, %v216
    %v230 = vsel %vm223, 0, %v217
    %v232 = vsel %vm223, 0, %v218
    %v234 = vsel %vm223, 0, %v219
    %v236 = vsel %vm223, 0, %v220
    %v238 = vsel %vm223, 0, %v221
    %v240 = vsel %vm223, 0, %v222
    %v241 = vsel %vm223, %v215, 0
    %v242 = vsel %vm223, %v216, 0
    %v243 = vsel %vm223, %v217, 0
    %v244 = vsel %vm223, %v218, 0
    %v245 = vsel %vm223, %v219, 0
    %v246 = vsel %vm223, %v220, 0
    %v247 = vsel %vm223, %v221, 0
    %v248 = vsel %vm223, %v222, 0
    %vm249 = vsmask.f32 7424
    %v250 = vshrl.u32 %v226, 16
    %v252 = vshll.u32 %v226, 16
    %v254 = vrot.slane %v252, 1
    %v255 = vor.u32 %v250, %v254
    %v256 = vshll.u32 %v241, 16
    %v258 = vrot.slane %v256, 1
    %v259 = vsel %vm249, %v255, %v258
    %v260 = vshrl.u32 %v228, 16
    %v262 = vshll.u32 %v228, 16
    %v264 = vrot.slane %v262, 1
    %v265 = vor.u32 %v260, %v264
    %v266 = vshll.u32 %v242, 16
    %v268 = vrot.slane %v266, 1
    %v269 = vsel %vm249, %v265, %v268
    %v270 = vshrl.u32 %v230, 16
    %v272 = vshll.u32 %v230, 16
    %v274 = vrot.slane %v272, 1
    %v275 = vor.u32 %v270, %v274
    %v276 = vshll.u32 %v243, 16
    %v278 = vrot.slane %v276, 1
    %v279 = vsel %vm249, %v275, %v278
    %v280 = vshrl.u32 %v232, 16
    %v282 = vshll.u32 %v232, 16
    %v284 = vrot.slane %v282, 1
    %v285 = vor.u32 %v280, %v284
    %v286 = vshll.u32 %v244, 16
    %v288 = vrot.slane %v286, 1
    %v289 = vsel %vm249, %v285, %v288
    %v290 = vshrl.u32 %v234, 16
    %v292 = vshll.u32 %v234, 16
    %v294 = vrot.slane %v292, 1
    %v295 = vor.u32 %v290, %v294
    %v296 = vshll.u32 %v245, 16
    %v298 = vrot.slane %v296, 1
    %v299 = vsel %vm249, %v295, %v298
    %v300 = vshrl.u32 %v236, 16
    %v302 = vshll.u32 %v236, 16
    %v304 = vrot.slane %v302, 1
    %v305 = vor.u32 %v300, %v304
    %v306 = vshll.u32 %v246, 16
    %v308 = vrot.slane %v306, 1
    %v309 = vsel %vm249, %v305, %v308
    %v310 = vshrl.u32 %v238, 16
    %v312 = vshll.u32 %v238, 16
    %v314 = vrot.slane %v312, 1
    %v315 = vor.u32 %v310, %v314
    %v316 = vshll.u32 %v247, 16
    %v318 = vrot.slane %v316, 1
    %v319 = vsel %vm249, %v315, %v318
    %v320 = vshrl.u32 %v240, 16
    %v322 = vshll.u32 %v240, 16
    %v324 = vrot.slane %v322, 1
    %v325 = vor.u32 %v320, %v324
    %v326 = vshll.u32 %v248, 16
    %v328 = vrot.slane %v326, 1
    %v329 = vsel %vm249, %v325, %v328
    %330 = vrot.lane.b32.xlu0 %v259, 32
    %v331 = vpop.permute.xlu0 %330
    %332 = vrot.lane.b32.xlu0 %v269, 32
    %v333 = vpop.permute.xlu0 %332
    %334 = vrot.lane.b32.xlu0 %v279, 32
    %v335 = vpop.permute.xlu0 %334
    %336 = vrot.lane.b32.xlu0 %v289, 32
    %v337 = vpop.permute.xlu0 %336
    %338 = vrot.lane.b32.xlu0 %v299, 32
    %v339 = vpop.permute.xlu0 %338
    %340 = vrot.lane.b32.xlu0 %v309, 32
    %v341 = vpop.permute.xlu0 %340
    %342 = vrot.lane.b32.xlu0 %v319, 32
    %v343 = vpop.permute.xlu0 %342
    %344 = vrot.lane.b32.xlu0 %v329, 32
    %v345 = vpop.permute.xlu0 %344
    %vm362 = vcmask 1046528
    %v363 = vrot.slane %v226, 1
    %v364 = vrot.slane %v241, 1
    %v365 = vsel %vm362, %v363, %v364
    %v366 = vrot.slane %v228, 1
    %v367 = vrot.slane %v242, 1
    %v368 = vsel %vm362, %v366, %v367
    %v369 = vrot.slane %v230, 1
    %v370 = vrot.slane %v243, 1
    %v371 = vsel %vm362, %v369, %v370
    %v372 = vrot.slane %v232, 1
    %v373 = vrot.slane %v244, 1
    %v374 = vsel %vm362, %v372, %v373
    %v375 = vrot.slane %v234, 1
    %v376 = vrot.slane %v245, 1
    %v377 = vsel %vm362, %v375, %v376
    %v378 = vrot.slane %v236, 1
    %v379 = vrot.slane %v246, 1
    %v380 = vsel %vm362, %v378, %v379
    %v381 = vrot.slane %v238, 1
    %v382 = vrot.slane %v247, 1
    %v383 = vsel %vm362, %v381, %v382
    %v384 = vrot.slane %v240, 1
    %v385 = vrot.slane %v248, 1
    %v386 = vsel %vm362, %v384, %v385
    %387 = vrot.lane.b32.xlu0 %v365, 64
    %v388 = vpop.permute.xlu0 %387
    %389 = vrot.lane.b32.xlu0 %v368, 64
    %v390 = vpop.permute.xlu0 %389
    %391 = vrot.lane.b32.xlu0 %v371, 64
    %v392 = vpop.permute.xlu0 %391
    %393 = vrot.lane.b32.xlu0 %v374, 64
    %v394 = vpop.permute.xlu0 %393
    %395 = vrot.lane.b32.xlu0 %v377, 64
    %v396 = vpop.permute.xlu0 %395
    %397 = vrot.lane.b32.xlu0 %v380, 64
    %v398 = vpop.permute.xlu0 %397
    %399 = vrot.lane.b32.xlu0 %v383, 64
    %v400 = vpop.permute.xlu0 %399
    %401 = vrot.lane.b32.xlu0 %v386, 64
    %v402 = vpop.permute.xlu0 %401
    %vm403 = vsmask.f32 6400
    %v404 = vrot.slane %v250, 1
    %v405 = vrot.slane %v252, 2
    %v406 = vor.u32 %v404, %v405
    %v407 = vshrl.u32 %v241, 16
    %v409 = vrot.slane %v407, 1
    %v410 = vrot.slane %v256, 2
    %v411 = vor.u32 %v409, %v410
    %v412 = vsel %vm403, %v406, %v411
    %v413 = vrot.slane %v260, 1
    %v414 = vrot.slane %v262, 2
    %v415 = vor.u32 %v413, %v414
    %v416 = vshrl.u32 %v242, 16
    %v418 = vrot.slane %v416, 1
    %v419 = vrot.slane %v266, 2
    %v420 = vor.u32 %v418, %v419
    %v421 = vsel %vm403, %v415, %v420
    %v422 = vrot.slane %v270, 1
    %v423 = vrot.slane %v272, 2
    %v424 = vor.u32 %v422, %v423
    %v425 = vshrl.u32 %v243, 16
    %v427 = vrot.slane %v425, 1
    %v428 = vrot.slane %v276, 2
    %v429 = vor.u32 %v427, %v428
    %v430 = vsel %vm403, %v424, %v429
    %v431 = vrot.slane %v280, 1
    %v432 = vrot.slane %v282, 2
    %v433 = vor.u32 %v431, %v432
    %v434 = vshrl.u32 %v244, 16
    %v436 = vrot.slane %v434, 1
    %v437 = vrot.slane %v286, 2
    %v438 = vor.u32 %v436, %v437
    %v439 = vsel %vm403, %v433, %v438
    %v440 = vrot.slane %v290, 1
    %v441 = vrot.slane %v292, 2
    %v442 = vor.u32 %v440, %v441
    %v443 = vshrl.u32 %v245, 16
    %v445 = vrot.slane %v443, 1
    %v446 = vrot.slane %v296, 2
    %v447 = vor.u32 %v445, %v446
    %v448 = vsel %vm403, %v442, %v447
    %v449 = vrot.slane %v300, 1
    %v450 = vrot.slane %v302, 2
    %v451 = vor.u32 %v449, %v450
    %v452 = vshrl.u32 %v246, 16
    %v454 = vrot.slane %v452, 1
    %v455 = vrot.slane %v306, 2
    %v456 = vor.u32 %v454, %v455
    %v457 = vsel %vm403, %v451, %v456
    %v458 = vrot.slane %v310, 1
    %v459 = vrot.slane %v312, 2
    %v460 = vor.u32 %v458, %v459
    %v461 = vshrl.u32 %v247, 16
    %v463 = vrot.slane %v461, 1
    %v464 = vrot.slane %v316, 2
    %v465 = vor.u32 %v463, %v464
    %v466 = vsel %vm403, %v460, %v465
    %v467 = vrot.slane %v320, 1
    %v468 = vrot.slane %v322, 2
    %v469 = vor.u32 %v467, %v468
    %v470 = vshrl.u32 %v248, 16
    %v472 = vrot.slane %v470, 1
    %v473 = vrot.slane %v326, 2
    %v474 = vor.u32 %v472, %v473
    %v475 = vsel %vm403, %v469, %v474
    %476 = vrot.lane.b32.xlu0 %v412, 96
    %v477 = vpop.permute.xlu0 %476
    %478 = vrot.lane.b32.xlu0 %v421, 96
    %v479 = vpop.permute.xlu0 %478
    %480 = vrot.lane.b32.xlu0 %v430, 96
    %v481 = vpop.permute.xlu0 %480
    %482 = vrot.lane.b32.xlu0 %v439, 96
    %v483 = vpop.permute.xlu0 %482
    %484 = vrot.lane.b32.xlu0 %v448, 96
    %v485 = vpop.permute.xlu0 %484
    %486 = vrot.lane.b32.xlu0 %v457, 96
    %v487 = vpop.permute.xlu0 %486
    %488 = vrot.lane.b32.xlu0 %v466, 96
    %v489 = vpop.permute.xlu0 %488
    %490 = vrot.lane.b32.xlu0 %v475, 96
    %v491 = vpop.permute.xlu0 %490
    %vm492 = vcmask 1045504
    %v493 = vrot.slane %v226, 2
    %v494 = vrot.slane %v241, 2
    %v495 = vsel %vm492, %v493, %v494
    %v496 = vrot.slane %v228, 2
    %v497 = vrot.slane %v242, 2
    %v498 = vsel %vm492, %v496, %v497
    %v499 = vrot.slane %v230, 2
    %v500 = vrot.slane %v243, 2
    %v501 = vsel %vm492, %v499, %v500
    %v502 = vrot.slane %v232, 2
    %v503 = vrot.slane %v244, 2
    %v504 = vsel %vm492, %v502, %v503
    %v505 = vrot.slane %v234, 2
    %v506 = vrot.slane %v245, 2
    %v507 = vsel %vm492, %v505, %v506
    %v508 = vrot.slane %v236, 2
    %v509 = vrot.slane %v246, 2
    %v510 = vsel %vm492, %v508, %v509
    %v511 = vrot.slane %v238, 2
    %v512 = vrot.slane %v247, 2
    %v513 = vsel %vm492, %v511, %v512
    %v514 = vrot.slane %v240, 2
    %v515 = vrot.slane %v248, 2
    %v516 = vsel %vm492, %v514, %v515
    %vm517 = vcmask 261120
    %v519 = vsel %vm517, %v226, %v331
    %v521 = vsel %vm517, %v228, %v333
    %v523 = vsel %vm517, %v230, %v335
    %v525 = vsel %vm517, %v232, %v337
    %v527 = vsel %vm517, %v234, %v339
    %v529 = vsel %vm517, %v236, %v341
    %v531 = vsel %vm517, %v238, %v343
    %v533 = vsel %vm517, %v240, %v345
    %vm534 = vcmask 523264
    %v536 = vsel %vm534, %v519, %v388
    %v538 = vsel %vm534, %v521, %v390
    %v540 = vsel %vm534, %v523, %v392
    %v542 = vsel %vm534, %v525, %v394
    %v544 = vsel %vm534, %v527, %v396
    %v546 = vsel %vm534, %v529, %v398
    %v548 = vsel %vm534, %v531, %v400
    %v550 = vsel %vm534, %v533, %v402
    %vm551 = vcmask 785408
    %v553 = vsel %vm551, %v536, %v477
    %v556 = vsel %vm551, %v538, %v479
    %v559 = vsel %vm551, %v540, %v481
    %v562 = vsel %vm551, %v542, %v483
    %v565 = vsel %vm551, %v544, %v485
    %v568 = vsel %vm551, %v546, %v487
    %v571 = vsel %vm551, %v548, %v489
    %v574 = vsel %vm551, %v550, %v491
    %v592 = vunpack.c.l.b16 %v159
    %v593 = vunpack.c.l.b16 %v160
    %v594 = vunpack.c.l.b16 %v161
    %v595 = vunpack.c.l.b16 %v162
    %v596 = vunpack.c.l.b16 %v163
    %v597 = vunpack.c.l.b16 %v164
    %v598 = vunpack.c.l.b16 %v165
    %v599 = vunpack.c.l.b16 %v166
    %v600 = vunpack.c.l.b16 %v167
    %v601 = vunpack.c.l.b16 %v168
    %v602 = vunpack.c.l.b16 %v169
    %v603 = vunpack.c.l.b16 %v170
    %v604 = vunpack.c.l.b16 %v171
    %v605 = vunpack.c.l.b16 %v172
    %v606 = vunpack.c.l.b16 %v173
    %v607 = vunpack.c.l.b16 %v174
    %v608 = vpack.c.b16 %v593, %v592
    %v609 = vpack.c.b16 %v595, %v594
    %v610 = vpack.c.b16 %v597, %v596
    %v611 = vpack.c.b16 %v599, %v598
    %v612 = vpack.c.b16 %v601, %v600
    %v613 = vpack.c.b16 %v603, %v602
    %v614 = vpack.c.b16 %v605, %v604
    %v615 = vpack.c.b16 %v607, %v606
    %v616 = vrot.slane %v608, 7
    %v617 = vrot.slane %v609, 7
    %v618 = vrot.slane %v610, 7
    %v619 = vrot.slane %v611, 7
    %v620 = vrot.slane %v612, 7
    %v621 = vrot.slane %v613, 7
    %v622 = vrot.slane %v614, 7
    %v623 = vrot.slane %v615, 7
    %v625 = vsel %vm223, 0, %v616
    %v627 = vsel %vm223, 0, %v617
    %v629 = vsel %vm223, 0, %v618
    %v631 = vsel %vm223, 0, %v619
    %v633 = vsel %vm223, 0, %v620
    %v635 = vsel %vm223, 0, %v621
    %v637 = vsel %vm223, 0, %v622
    %v639 = vsel %vm223, 0, %v623
    %v640 = vsel %vm223, %v616, 0
    %v641 = vsel %vm223, %v617, 0
    %v642 = vsel %vm223, %v618, 0
    %v643 = vsel %vm223, %v619, 0
    %v644 = vsel %vm223, %v620, 0
    %v645 = vsel %vm223, %v621, 0
    %v646 = vsel %vm223, %v622, 0
    %v647 = vsel %vm223, %v623, 0
    %v648 = vshrl.u32 %v625, 16
    %v650 = vshll.u32 %v625, 16
    %v652 = vrot.slane %v650, 1
    %v653 = vor.u32 %v648, %v652
    %v654 = vshll.u32 %v640, 16
    %v656 = vrot.slane %v654, 1
    %v657 = vsel %vm249, %v653, %v656
    %v658 = vshrl.u32 %v627, 16
    %v660 = vshll.u32 %v627, 16
    %v662 = vrot.slane %v660, 1
    %v663 = vor.u32 %v658, %v662
    %v664 = vshll.u32 %v641, 16
    %v666 = vrot.slane %v664, 1
    %v667 = vsel %vm249, %v663, %v666
    %v668 = vshrl.u32 %v629, 16
    %v670 = vshll.u32 %v629, 16
    %v672 = vrot.slane %v670, 1
    %v673 = vor.u32 %v668, %v672
    %v674 = vshll.u32 %v642, 16
    %v676 = vrot.slane %v674, 1
    %v677 = vsel %vm249, %v673, %v676
    %v678 = vshrl.u32 %v631, 16
    %v680 = vshll.u32 %v631, 16
    %v682 = vrot.slane %v680, 1
    %v683 = vor.u32 %v678, %v682
    %v684 = vshll.u32 %v643, 16
    %v686 = vrot.slane %v684, 1
    %v687 = vsel %vm249, %v683, %v686
    %v688 = vshrl.u32 %v633, 16
    %v690 = vshll.u32 %v633, 16
    %v692 = vrot.slane %v690, 1
    %v693 = vor.u32 %v688, %v692
    %v694 = vshll.u32 %v644, 16
    %v696 = vrot.slane %v694, 1
    %v697 = vsel %vm249, %v693, %v696
    %v698 = vshrl.u32 %v635, 16
    %v700 = vshll.u32 %v635, 16
    %v702 = vrot.slane %v700, 1
    %v703 = vor.u32 %v698, %v702
    %v704 = vshll.u32 %v645, 16
    %v706 = vrot.slane %v704, 1
    %v707 = vsel %vm249, %v703, %v706
    %v708 = vshrl.u32 %v637, 16
    %v710 = vshll.u32 %v637, 16
    %v712 = vrot.slane %v710, 1
    %v713 = vor.u32 %v708, %v712
    %v714 = vshll.u32 %v646, 16
    %v716 = vrot.slane %v714, 1
    %v717 = vsel %vm249, %v713, %v716
    %v718 = vshrl.u32 %v639, 16
    %v720 = vshll.u32 %v639, 16
    %v722 = vrot.slane %v720, 1
    %v723 = vor.u32 %v718, %v722
    %v724 = vshll.u32 %v647, 16
    %v726 = vrot.slane %v724, 1
    %v727 = vsel %vm249, %v723, %v726
    %728 = vrot.lane.b32.xlu0 %v657, 32
    %v729 = vpop.permute.xlu0 %728
    %730 = vrot.lane.b32.xlu0 %v667, 32
    %v731 = vpop.permute.xlu0 %730
    %732 = vrot.lane.b32.xlu0 %v677, 32
    %v733 = vpop.permute.xlu0 %732
    %734 = vrot.lane.b32.xlu0 %v687, 32
    %v735 = vpop.permute.xlu0 %734
    %736 = vrot.lane.b32.xlu0 %v697, 32
    %v737 = vpop.permute.xlu0 %736
    %738 = vrot.lane.b32.xlu0 %v707, 32
    %v739 = vpop.permute.xlu0 %738
    %740 = vrot.lane.b32.xlu0 %v717, 32
    %v741 = vpop.permute.xlu0 %740
    %742 = vrot.lane.b32.xlu0 %v727, 32
    %v743 = vpop.permute.xlu0 %742
    %v760 = vrot.slane %v625, 1
    %v761 = vrot.slane %v640, 1
    %v762 = vsel %vm362, %v760, %v761
    %v763 = vrot.slane %v627, 1
    %v764 = vrot.slane %v641, 1
    %v765 = vsel %vm362, %v763, %v764
    %v766 = vrot.slane %v629, 1
    %v767 = vrot.slane %v642, 1
    %v768 = vsel %vm362, %v766, %v767
    %v769 = vrot.slane %v631, 1
    %v770 = vrot.slane %v643, 1
    %v771 = vsel %vm362, %v769, %v770
    %v772 = vrot.slane %v633, 1
    %v773 = vrot.slane %v644, 1
    %v774 = vsel %vm362, %v772, %v773
    %v775 = vrot.slane %v635, 1
    %v776 = vrot.slane %v645, 1
    %v777 = vsel %vm362, %v775, %v776
    %v778 = vrot.slane %v637, 1
    %v779 = vrot.slane %v646, 1
    %v780 = vsel %vm362, %v778, %v779
    %v781 = vrot.slane %v639, 1
    %v782 = vrot.slane %v647, 1
    %v783 = vsel %vm362, %v781, %v782
    %784 = vrot.lane.b32.xlu0 %v762, 64
    %v785 = vpop.permute.xlu0 %784
    %786 = vrot.lane.b32.xlu0 %v765, 64
    %v787 = vpop.permute.xlu0 %786
    %788 = vrot.lane.b32.xlu0 %v768, 64
    %v789 = vpop.permute.xlu0 %788
    %790 = vrot.lane.b32.xlu0 %v771, 64
    %v791 = vpop.permute.xlu0 %790
    %792 = vrot.lane.b32.xlu0 %v774, 64
    %v793 = vpop.permute.xlu0 %792
    %794 = vrot.lane.b32.xlu0 %v777, 64
    %v795 = vpop.permute.xlu0 %794
    %796 = vrot.lane.b32.xlu0 %v780, 64
    %v797 = vpop.permute.xlu0 %796
    %798 = vrot.lane.b32.xlu0 %v783, 64
    %v799 = vpop.permute.xlu0 %798
    %v800 = vrot.slane %v648, 1
    %v801 = vrot.slane %v650, 2
    %v802 = vor.u32 %v800, %v801
    %v803 = vshrl.u32 %v640, 16
    %v805 = vrot.slane %v803, 1
    %v806 = vrot.slane %v654, 2
    %v807 = vor.u32 %v805, %v806
    %v808 = vsel %vm403, %v802, %v807
    %v809 = vrot.slane %v658, 1
    %v810 = vrot.slane %v660, 2
    %v811 = vor.u32 %v809, %v810
    %v812 = vshrl.u32 %v641, 16
    %v814 = vrot.slane %v812, 1
    %v815 = vrot.slane %v664, 2
    %v816 = vor.u32 %v814, %v815
    %v817 = vsel %vm403, %v811, %v816
    %v818 = vrot.slane %v668, 1
    %v819 = vrot.slane %v670, 2
    %v820 = vor.u32 %v818, %v819
    %v821 = vshrl.u32 %v642, 16
    %v823 = vrot.slane %v821, 1
    %v824 = vrot.slane %v674, 2
    %v825 = vor.u32 %v823, %v824
    %v826 = vsel %vm403, %v820, %v825
    %v827 = vrot.slane %v678, 1
    %v828 = vrot.slane %v680, 2
    %v829 = vor.u32 %v827, %v828
    %v830 = vshrl.u32 %v643, 16
    %v832 = vrot.slane %v830, 1
    %v833 = vrot.slane %v684, 2
    %v834 = vor.u32 %v832, %v833
    %v835 = vsel %vm403, %v829, %v834
    %v836 = vrot.slane %v688, 1
    %v837 = vrot.slane %v690, 2
    %v838 = vor.u32 %v836, %v837
    %v839 = vshrl.u32 %v644, 16
    %v841 = vrot.slane %v839, 1
    %v842 = vrot.slane %v694, 2
    %v843 = vor.u32 %v841, %v842
    %v844 = vsel %vm403, %v838, %v843
    %v845 = vrot.slane %v698, 1
    %v846 = vrot.slane %v700, 2
    %v847 = vor.u32 %v845, %v846
    %v848 = vshrl.u32 %v645, 16
    %v850 = vrot.slane %v848, 1
    %v851 = vrot.slane %v704, 2
    %v852 = vor.u32 %v850, %v851
    %v853 = vsel %vm403, %v847, %v852
    %v854 = vrot.slane %v708, 1
    %v855 = vrot.slane %v710, 2
    %v856 = vor.u32 %v854, %v855
    %v857 = vshrl.u32 %v646, 16
    %v859 = vrot.slane %v857, 1
    %v860 = vrot.slane %v714, 2
    %v861 = vor.u32 %v859, %v860
    %v862 = vsel %vm403, %v856, %v861
    %v863 = vrot.slane %v718, 1
    %v864 = vrot.slane %v720, 2
    %v865 = vor.u32 %v863, %v864
    %v866 = vshrl.u32 %v647, 16
    %v868 = vrot.slane %v866, 1
    %v869 = vrot.slane %v724, 2
    %v870 = vor.u32 %v868, %v869
    %v871 = vsel %vm403, %v865, %v870
    %872 = vrot.lane.b32.xlu0 %v808, 96
    %v873 = vpop.permute.xlu0 %872
    %874 = vrot.lane.b32.xlu0 %v817, 96
    %v875 = vpop.permute.xlu0 %874
    %876 = vrot.lane.b32.xlu0 %v826, 96
    %v877 = vpop.permute.xlu0 %876
    %878 = vrot.lane.b32.xlu0 %v835, 96
    %v879 = vpop.permute.xlu0 %878
    %880 = vrot.lane.b32.xlu0 %v844, 96
    %v881 = vpop.permute.xlu0 %880
    %882 = vrot.lane.b32.xlu0 %v853, 96
    %v883 = vpop.permute.xlu0 %882
    %884 = vrot.lane.b32.xlu0 %v862, 96
    %v885 = vpop.permute.xlu0 %884
    %886 = vrot.lane.b32.xlu0 %v871, 96
    %v887 = vpop.permute.xlu0 %886
    %v888 = vrot.slane %v625, 2
    %v889 = vrot.slane %v640, 2
    %v890 = vsel %vm492, %v888, %v889
    %v891 = vrot.slane %v627, 2
    %v892 = vrot.slane %v641, 2
    %v893 = vsel %vm492, %v891, %v892
    %v894 = vrot.slane %v629, 2
    %v895 = vrot.slane %v642, 2
    %v896 = vsel %vm492, %v894, %v895
    %v897 = vrot.slane %v631, 2
    %v898 = vrot.slane %v643, 2
    %v899 = vsel %vm492, %v897, %v898
    %v900 = vrot.slane %v633, 2
    %v901 = vrot.slane %v644, 2
    %v902 = vsel %vm492, %v900, %v901
    %v903 = vrot.slane %v635, 2
    %v904 = vrot.slane %v645, 2
    %v905 = vsel %vm492, %v903, %v904
    %v906 = vrot.slane %v637, 2
    %v907 = vrot.slane %v646, 2
    %v908 = vsel %vm492, %v906, %v907
    %v909 = vrot.slane %v639, 2
    %v910 = vrot.slane %v647, 2
    %v911 = vsel %vm492, %v909, %v910
    %v913 = vsel %vm517, %v625, %v729
    %v915 = vsel %vm517, %v627, %v731
    %v917 = vsel %vm517, %v629, %v733
    %v919 = vsel %vm517, %v631, %v735
    %v921 = vsel %vm517, %v633, %v737
    %v923 = vsel %vm517, %v635, %v739
    %v925 = vsel %vm517, %v637, %v741
    %v927 = vsel %vm517, %v639, %v743
    %v929 = vsel %vm534, %v913, %v785
    %v931 = vsel %vm534, %v915, %v787
    %v933 = vsel %vm534, %v917, %v789
    %v935 = vsel %vm534, %v919, %v791
    %v937 = vsel %vm534, %v921, %v793
    %v939 = vsel %vm534, %v923, %v795
    %v941 = vsel %vm534, %v925, %v797
    %v943 = vsel %vm534, %v927, %v799
    %v945 = vsel %vm551, %v929, %v873
    %v948 = vsel %vm551, %v931, %v875
    %v951 = vsel %vm551, %v933, %v877
    %v954 = vsel %vm551, %v935, %v879
    %v957 = vsel %vm551, %v937, %v881
    %v960 = vsel %vm551, %v939, %v883
    %v963 = vsel %vm551, %v941, %v885
    %v966 = vsel %vm551, %v943, %v887
    %v968 = vld [vmem:[#allocation7] sm:$0xf]
    %v969 = vld [vmem:[#allocation7 + $0x4] sm:$0xf]
    %v970 = vld [vmem:[#allocation7 + $0x8] sm:$0xf]
    %v971 = vld [vmem:[#allocation7 + $0xc] sm:$0xf]
    %v972 = vld [vmem:[#allocation7 + $0x10] sm:$0xf]
    %v973 = vld [vmem:[#allocation7 + $0x14] sm:$0xf]
    %v974 = vld [vmem:[#allocation7 + $0x18] sm:$0xf]
    %v975 = vld [vmem:[#allocation7 + $0x1c] sm:$0xf]
    %v976 = vld [vmem:[#allocation7 + $0x20] sm:$0xf]
    %v977 = vld [vmem:[#allocation7 + $0x24] sm:$0xf]
    %v978 = vld [vmem:[#allocation7 + $0x28] sm:$0xf]
    %v979 = vld [vmem:[#allocation7 + $0x2c] sm:$0xf]
    %v980 = vld [vmem:[#allocation7 + $0x30] sm:$0xf]
    %v981 = vld [vmem:[#allocation7 + $0x34] sm:$0xf]
    %v982 = vld [vmem:[#allocation7 + $0x38] sm:$0xf]
    %v983 = vld [vmem:[#allocation7 + $0x3c] sm:$0xf]
    %v984 = vld [vmem:[#allocation7 + $0x40] sm:$0xf]
    %v985 = vld [vmem:[#allocation7 + $0x44] sm:$0xf]
    %v986 = vld [vmem:[#allocation7 + $0x48] sm:$0xf]
    %v987 = vld [vmem:[#allocation7 + $0x4c] sm:$0xf]
    %v1008 = vunpack.c.l.b16 %v968
    %v1009 = vunpack.c.l.b16 %v969
    %v1010 = vunpack.c.l.b16 %v970
    %v1011 = vunpack.c.l.b16 %v971
    %v1012 = vunpack.c.l.b16 %v972
    %v1013 = vunpack.c.l.b16 %v973
    %v1014 = vunpack.c.l.b16 %v974
    %v1015 = vunpack.c.l.b16 %v975
    %v1016 = vunpack.c.l.b16 %v976
    %v1017 = vunpack.c.l.b16 %v977
    %v1018 = vunpack.c.l.b16 %v978
    %v1019 = vunpack.c.l.b16 %v979
    %v1020 = vunpack.c.l.b16 %v980
    %v1021 = vunpack.c.l.b16 %v981
    %v1022 = vunpack.c.l.b16 %v982
    %v1023 = vunpack.c.l.b16 %v983
    %v1024 = vunpack.c.l.b16 %v984
    %v1025 = vunpack.c.l.b16 %v985
    %v1026 = vunpack.c.l.b16 %v986
    %v1027 = vunpack.c.l.b16 %v987
    %v1028 = vpack.c.b16 %v1009, %v1008
    %v1029 = vpack.c.b16 %v1011, %v1010
    %v1030 = vpack.c.b16 %v1013, %v1012
    %v1031 = vpack.c.b16 %v1015, %v1014
    %v1032 = vpack.c.b16 %v1017, %v1016
    %v1033 = vpack.c.b16 %v1019, %v1018
    %v1034 = vpack.c.b16 %v1021, %v1020
    %v1035 = vpack.c.b16 %v1023, %v1022
    %v1036 = vpack.c.b16 %v1025, %v1024
    %v1037 = vpack.c.b16 %v1027, %v1026
    %v1049 = vsel %vm517, %v495, 0
    %v1052 = vsel %vm517, %v498, 0
    %v1055 = vsel %vm517, %v501, 0
    %v1058 = vsel %vm517, %v504, 0
    %v1061 = vsel %vm517, %v507, 0
    %v1064 = vsel %vm517, %v510, 0
    %v1067 = vsel %vm517, %v513, 0
    %v1070 = vsel %vm517, %v516, 0
    %v1073 = vsel %vm517, %v890, 0
    %v1076 = vsel %vm517, %v893, 0
    %v1079 = vsel %vm517, %v896, 0
    %v1082 = vsel %vm517, %v899, 0
    %v1085 = vsel %vm517, %v902, 0
    %v1088 = vsel %vm517, %v905, 0
    %v1091 = vsel %vm517, %v908, 0
    %v1094 = vsel %vm517, %v911, 0
    %1096 = vmatprep.subr.bf16.mxu0 0
    %1097 = vmatpush1.bf16.msra.mxu0 %v1035
    %1098 = vmatprep.subr.bf16.mxu0 0
    %1099 = vmatpush1.bf16.msra.mxu0 %v1034
    %1100 = vmatprep.subr.bf16.mxu0 0
    %1101 = vmatpush1.bf16.msra.mxu0 %v1033
    %1102 = vmatprep.subr.bf16.mxu0 0
    %1103 = vmatpush1.bf16.msra.mxu0 %v1032
    %1104 = vmatprep.subr.bf16.mxu0 0
    %1105 = vmatpush1.bf16.msra.mxu0 %v1031
    %1106 = vmatprep.subr.bf16.mxu0 0
    %1107 = vmatpush1.bf16.msra.mxu0 %v1030
    %1108 = vmatprep.subr.bf16.mxu0 0
    %1109 = vmatpush1.bf16.msra.mxu0 %v1029
    %1110 = vmatprep.subr.bf16.mxu0 0
    %1111 = vmatpush1.bf16.msra.mxu0 %v1028
    %1112 = vmatprep.subr.bf16.mxu0 0
    %1113 = vmatpush2.bf16.msra.mxu0 0
    %1114 = vmatprep.subr.bf16.mxu0 0
    %1115 = vmatpush2.bf16.msra.mxu0 0
    %1116 = vmatprep.subr.bf16.mxu0 0
    %1117 = vmatpush2.bf16.msra.mxu0 0
    %1118 = vmatprep.subr.bf16.mxu0 0
    %1119 = vmatpush2.bf16.msra.mxu0 0
    %1120 = vmatprep.subr.bf16.mxu0 0
    %1121 = vmatpush2.bf16.msra.mxu0 0
    %1122 = vmatprep.subr.bf16.mxu0 0
    %1123 = vmatpush2.bf16.msra.mxu0 0
    %1124 = vmatprep.subr.bf16.mxu0 0
    %1125 = vmatpush2.bf16.msra.mxu0 %v1037
    %1126 = vmatprep.subr.bf16.mxu0 0
    %1127 = vmatpush2.bf16.msra.mxu0 %v1036
    %1128 = vmatprep.mubr.bf16.mxu0 %v1049
    %1129 = vmatmul.mubr.bf16.gmra.mxu0 %v553
    %v1130 = vpop.f32.mrf.mxu0
    %v1131 = vadd.f32 0.0, %v1130
    %v1132 = vpop.f32.mrf.mxu0
    %v1133 = vpop.f32.mrf.mxu0
    %v1134 = vadd.f32 0.0, %v1133
    %v1135 = vpop.f32.mrf.mxu0
    %1136 = vmatprep.mubr.bf16.mxu0 %v1052
    %1137 = vmatmul.mubr.bf16.gmra.mxu0 %v556
    %v1138 = vpop.f32.mrf.mxu0
    %v1139 = vadd.f32 0.0, %v1138
    %v1140 = vpop.f32.mrf.mxu0
    %v1141 = vpop.f32.mrf.mxu0
    %v1142 = vadd.f32 0.0, %v1141
    %v1143 = vpop.f32.mrf.mxu0
    %1144 = vmatprep.mubr.bf16.mxu0 %v1055
    %1145 = vmatmul.mubr.bf16.gmra.mxu0 %v559
    %v1146 = vpop.f32.mrf.mxu0
    %v1147 = vadd.f32 0.0, %v1146
    %v1148 = vpop.f32.mrf.mxu0
    %v1149 = vpop.f32.mrf.mxu0
    %v1150 = vadd.f32 0.0, %v1149
    %v1151 = vpop.f32.mrf.mxu0
    %1152 = vmatprep.mubr.bf16.mxu0 %v1058
    %1153 = vmatmul.mubr.bf16.gmra.mxu0 %v562
    %v1154 = vpop.f32.mrf.mxu0
    %v1155 = vadd.f32 0.0, %v1154
    %v1156 = vpop.f32.mrf.mxu0
    %v1157 = vpop.f32.mrf.mxu0
    %v1158 = vadd.f32 0.0, %v1157
    %v1159 = vpop.f32.mrf.mxu0
    %1160 = vmatprep.mubr.bf16.mxu0 %v1061
    %1161 = vmatmul.mubr.bf16.gmra.mxu0 %v565
    %v1162 = vpop.f32.mrf.mxu0
    %v1163 = vadd.f32 0.0, %v1162
    %v1164 = vpop.f32.mrf.mxu0
    %v1165 = vpop.f32.mrf.mxu0
    %v1166 = vadd.f32 0.0, %v1165
    %v1167 = vpop.f32.mrf.mxu0
    %1168 = vmatprep.mubr.bf16.mxu0 %v1064
    %1169 = vmatmul.mubr.bf16.gmra.mxu0 %v568
    %v1170 = vpop.f32.mrf.mxu0
    %v1171 = vadd.f32 0.0, %v1170
    %v1172 = vpop.f32.mrf.mxu0
    %v1173 = vpop.f32.mrf.mxu0
    %v1174 = vadd.f32 0.0, %v1173
    %v1175 = vpop.f32.mrf.mxu0
    %1176 = vmatprep.mubr.bf16.mxu0 %v1067
    %1177 = vmatmul.mubr.bf16.gmra.mxu0 %v571
    %v1178 = vpop.f32.mrf.mxu0
    %v1179 = vadd.f32 0.0, %v1178
    %v1180 = vpop.f32.mrf.mxu0
    %v1181 = vpop.f32.mrf.mxu0
    %v1182 = vadd.f32 0.0, %v1181
    %v1183 = vpop.f32.mrf.mxu0
    %1184 = vmatprep.mubr.bf16.mxu0 %v1070
    %1185 = vmatmul.mubr.bf16.gmra.mxu0 %v574
    %v1186 = vpop.f32.mrf.mxu0
    %v1187 = vadd.f32 0.0, %v1186
    %v1188 = vpop.f32.mrf.mxu0
    %v1189 = vpop.f32.mrf.mxu0
    %v1190 = vadd.f32 0.0, %v1189
    %v1191 = vpop.f32.mrf.mxu0
    %1192 = vmatprep.mubr.bf16.mxu0 %v1073
    %1193 = vmatmul.mubr.bf16.gmra.mxu0 %v945
    %v1194 = vpop.f32.mrf.mxu0
    %v1195 = vadd.f32 0.0, %v1194
    %v1196 = vpop.f32.mrf.mxu0
    %v1197 = vpop.f32.mrf.mxu0
    %v1198 = vadd.f32 0.0, %v1197
    %v1199 = vpop.f32.mrf.mxu0
    %1200 = vmatprep.mubr.bf16.mxu0 %v1076
    %1201 = vmatmul.mubr.bf16.gmra.mxu0 %v948
    %v1202 = vpop.f32.mrf.mxu0
    %v1203 = vadd.f32 0.0, %v1202
    %v1204 = vpop.f32.mrf.mxu0
    %v1205 = vpop.f32.mrf.mxu0
    %v1206 = vadd.f32 0.0, %v1205
    %v1207 = vpop.f32.mrf.mxu0
    %1208 = vmatprep.mubr.bf16.mxu0 %v1079
    %1209 = vmatmul.mubr.bf16.gmra.mxu0 %v951
    %v1210 = vpop.f32.mrf.mxu0
    %v1211 = vadd.f32 0.0, %v1210
    %v1212 = vpop.f32.mrf.mxu0
    %v1213 = vpop.f32.mrf.mxu0
    %v1214 = vadd.f32 0.0, %v1213
    %v1215 = vpop.f32.mrf.mxu0
    %1216 = vmatprep.mubr.bf16.mxu0 %v1082
    %1217 = vmatmul.mubr.bf16.gmra.mxu0 %v954
    %v1218 = vpop.f32.mrf.mxu0
    %v1219 = vadd.f32 0.0, %v1218
    %v1220 = vpop.f32.mrf.mxu0
    %v1221 = vpop.f32.mrf.mxu0
    %v1222 = vadd.f32 0.0, %v1221
    %v1223 = vpop.f32.mrf.mxu0
    %1224 = vmatprep.mubr.bf16.mxu0 %v1085
    %1225 = vmatmul.mubr.bf16.gmra.mxu0 %v957
    %v1226 = vpop.f32.mrf.mxu0
    %v1227 = vadd.f32 0.0, %v1226
    %v1228 = vpop.f32.mrf.mxu0
    %v1229 = vpop.f32.mrf.mxu0
    %v1230 = vadd.f32 0.0, %v1229
    %v1231 = vpop.f32.mrf.mxu0
    %1232 = vmatprep.mubr.bf16.mxu0 %v1088
    %1233 = vmatmul.mubr.bf16.gmra.mxu0 %v960
    %v1234 = vpop.f32.mrf.mxu0
    %v1235 = vadd.f32 0.0, %v1234
    %v1236 = vpop.f32.mrf.mxu0
    %v1237 = vpop.f32.mrf.mxu0
    %v1238 = vadd.f32 0.0, %v1237
    %v1239 = vpop.f32.mrf.mxu0
    %1240 = vmatprep.mubr.bf16.mxu0 %v1091
    %1241 = vmatmul.mubr.bf16.gmra.mxu0 %v963
    %v1242 = vpop.f32.mrf.mxu0
    %v1243 = vadd.f32 0.0, %v1242
    %v1244 = vpop.f32.mrf.mxu0
    %v1245 = vpop.f32.mrf.mxu0
    %v1246 = vadd.f32 0.0, %v1245
    %v1247 = vpop.f32.mrf.mxu0
    %1248 = vmatprep.mubr.bf16.mxu0 %v1094
    %1249 = vmatmul.mubr.bf16.gmra.mxu0 %v966
    %v1250 = vpop.f32.mrf.mxu0
    %v1251 = vadd.f32 0.0, %v1250
    %v1252 = vpop.f32.mrf.mxu0
    %v1253 = vpop.f32.mrf.mxu0
    %v1254 = vadd.f32 0.0, %v1253
    %v1255 = vpop.f32.mrf.mxu0
    %1256 = vdwg.mxu0
    %v1257 = vpack.c.bf16 %v112, %v111
    %v1258 = vpack.c.bf16 %v114, %v113
    %v1259 = vpack.c.bf16 %v116, %v115
    %v1260 = vpack.c.bf16 %v118, %v117
    %v1261 = vpack.c.bf16 %v120, %v119
    %v1262 = vpack.c.bf16 %v122, %v121
    %v1263 = vpack.c.bf16 %v124, %v123
    %v1264 = vpack.c.bf16 %v126, %v125
    %v1265 = vpack.c.bf16 %v128, %v127
    %v1266 = vpack.c.bf16 %v130, %v129
    %v1267 = vpack.c.bf16 %v132, %v131
    %v1268 = vpack.c.bf16 %v134, %v133
    %v1269 = vpack.c.bf16 %v136, %v135
    %v1270 = vpack.c.bf16 %v138, %v137
    %v1271 = vpack.c.bf16 %v140, %v139
    %v1272 = vpack.c.bf16 %v142, %v141
    %v1281 = vrot.slane %v1257, 7
    %v1282 = vrot.slane %v1258, 7
    %v1283 = vrot.slane %v1259, 7
    %v1284 = vrot.slane %v1260, 7
    %v1285 = vrot.slane %v1261, 7
    %v1286 = vrot.slane %v1262, 7
    %v1287 = vrot.slane %v1263, 7
    %v1288 = vrot.slane %v1264, 7
    %v1290 = vsel %vm223, 0, %v1281
    %v1292 = vsel %vm223, 0, %v1282
    %v1294 = vsel %vm223, 0, %v1283
    %v1296 = vsel %vm223, 0, %v1284
    %v1298 = vsel %vm223, 0, %v1285
    %v1300 = vsel %vm223, 0, %v1286
    %v1302 = vsel %vm223, 0, %v1287
    %v1304 = vsel %vm223, 0, %v1288
    %v1305 = vsel %vm223, %v1281, 0
    %v1306 = vsel %vm223, %v1282, 0
    %v1307 = vsel %vm223, %v1283, 0
    %v1308 = vsel %vm223, %v1284, 0
    %v1309 = vsel %vm223, %v1285, 0
    %v1310 = vsel %vm223, %v1286, 0
    %v1311 = vsel %vm223, %v1287, 0
    %v1312 = vsel %vm223, %v1288, 0
    %v1313 = vshrl.u32 %v1290, 16
    %v1315 = vshll.u32 %v1290, 16
    %v1317 = vrot.slane %v1315, 1
    %v1318 = vor.u32 %v1313, %v1317
    %v1319 = vshll.u32 %v1305, 16
    %v1321 = vrot.slane %v1319, 1
    %v1322 = vsel %vm249, %v1318, %v1321
    %v1323 = vshrl.u32 %v1292, 16
    %v1325 = vshll.u32 %v1292, 16
    %v1327 = vrot.slane %v1325, 1
    %v1328 = vor.u32 %v1323, %v1327
    %v1329 = vshll.u32 %v1306, 16
    %v1331 = vrot.slane %v1329, 1
    %v1332 = vsel %vm249, %v1328, %v1331
    %v1333 = vshrl.u32 %v1294, 16
    %v1335 = vshll.u32 %v1294, 16
    %v1337 = vrot.slane %v1335, 1
    %v1338 = vor.u32 %v1333, %v1337
    %v1339 = vshll.u32 %v1307, 16
    %v1341 = vrot.slane %v1339, 1
    %v1342 = vsel %vm249, %v1338, %v1341
    %v1343 = vshrl.u32 %v1296, 16
    %v1345 = vshll.u32 %v1296, 16
    %v1347 = vrot.slane %v1345, 1
    %v1348 = vor.u32 %v1343, %v1347
    %v1349 = vshll.u32 %v1308, 16
    %v1351 = vrot.slane %v1349, 1
    %v1352 = vsel %vm249, %v1348, %v1351
    %v1353 = vshrl.u32 %v1298, 16
    %v1355 = vshll.u32 %v1298, 16
    %v1357 = vrot.slane %v1355, 1
    %v1358 = vor.u32 %v1353, %v1357
    %v1359 = vshll.u32 %v1309, 16
    %v1361 = vrot.slane %v1359, 1
    %v1362 = vsel %vm249, %v1358, %v1361
    %v1363 = vshrl.u32 %v1300, 16
    %v1365 = vshll.u32 %v1300, 16
    %v1367 = vrot.slane %v1365, 1
    %v1368 = vor.u32 %v1363, %v1367
    %v1369 = vshll.u32 %v1310, 16
    %v1371 = vrot.slane %v1369, 1
    %v1372 = vsel %vm249, %v1368, %v1371
    %v1373 = vshrl.u32 %v1302, 16
    %v1375 = vshll.u32 %v1302, 16
    %v1377 = vrot.slane %v1375, 1
    %v1378 = vor.u32 %v1373, %v1377
    %v1379 = vshll.u32 %v1311, 16
    %v1381 = vrot.slane %v1379, 1
    %v1382 = vsel %vm249, %v1378, %v1381
    %v1383 = vshrl.u32 %v1304, 16
    %v1385 = vshll.u32 %v1304, 16
    %v1387 = vrot.slane %v1385, 1
    %v1388 = vor.u32 %v1383, %v1387
    %v1389 = vshll.u32 %v1312, 16
    %v1391 = vrot.slane %v1389, 1
    %v1392 = vsel %vm249, %v1388, %v1391
    %1393 = vrot.lane.b32.xlu0 %v1322, 32
    %v1394 = vpop.permute.xlu0 %1393
    %1395 = vrot.lane.b32.xlu0 %v1332, 32
    %v1396 = vpop.permute.xlu0 %1395
    %1397 = vrot.lane.b32.xlu0 %v1342, 32
    %v1398 = vpop.permute.xlu0 %1397
    %1399 = vrot.lane.b32.xlu0 %v1352, 32
    %v1400 = vpop.permute.xlu0 %1399
    %1401 = vrot.lane.b32.xlu0 %v1362, 32
    %v1402 = vpop.permute.xlu0 %1401
    %1403 = vrot.lane.b32.xlu0 %v1372, 32
    %v1404 = vpop.permute.xlu0 %1403
    %1405 = vrot.lane.b32.xlu0 %v1382, 32
    %v1406 = vpop.permute.xlu0 %1405
    %1407 = vrot.lane.b32.xlu0 %v1392, 32
    %v1408 = vpop.permute.xlu0 %1407
    %v1425 = vrot.slane %v1290, 1
    %v1426 = vrot.slane %v1305, 1
    %v1427 = vsel %vm362, %v1425, %v1426
    %v1428 = vrot.slane %v1292, 1
    %v1429 = vrot.slane %v1306, 1
    %v1430 = vsel %vm362, %v1428, %v1429
    %v1431 = vrot.slane %v1294, 1
    %v1432 = vrot.slane %v1307, 1
    %v1433 = vsel %vm362, %v1431, %v1432
    %v1434 = vrot.slane %v1296, 1
    %v1435 = vrot.slane %v1308, 1
    %v1436 = vsel %vm362, %v1434, %v1435
    %v1437 = vrot.slane %v1298, 1
    %v1438 = vrot.slane %v1309, 1
    %v1439 = vsel %vm362, %v1437, %v1438
    %v1440 = vrot.slane %v1300, 1
    %v1441 = vrot.slane %v1310, 1
    %v1442 = vsel %vm362, %v1440, %v1441
    %v1443 = vrot.slane %v1302, 1
    %v1444 = vrot.slane %v1311, 1
    %v1445 = vsel %vm362, %v1443, %v1444
    %v1446 = vrot.slane %v1304, 1
    %v1447 = vrot.slane %v1312, 1
    %v1448 = vsel %vm362, %v1446, %v1447
    %1449 = vrot.lane.b32.xlu0 %v1427, 64
    %v1450 = vpop.permute.xlu0 %1449
    %1451 = vrot.lane.b32.xlu0 %v1430, 64
    %v1452 = vpop.permute.xlu0 %1451
    %1453 = vrot.lane.b32.xlu0 %v1433, 64
    %v1454 = vpop.permute.xlu0 %1453
    %1455 = vrot.lane.b32.xlu0 %v1436, 64
    %v1456 = vpop.permute.xlu0 %1455
    %1457 = vrot.lane.b32.xlu0 %v1439, 64
    %v1458 = vpop.permute.xlu0 %1457
    %1459 = vrot.lane.b32.xlu0 %v1442, 64
    %v1460 = vpop.permute.xlu0 %1459
    %1461 = vrot.lane.b32.xlu0 %v1445, 64
    %v1462 = vpop.permute.xlu0 %1461
    %1463 = vrot.lane.b32.xlu0 %v1448, 64
    %v1464 = vpop.permute.xlu0 %1463
    %v1465 = vrot.slane %v1313, 1
    %v1466 = vrot.slane %v1315, 2
    %v1467 = vor.u32 %v1465, %v1466
    %v1468 = vshrl.u32 %v1305, 16
    %v1470 = vrot.slane %v1468, 1
    %v1471 = vrot.slane %v1319, 2
    %v1472 = vor.u32 %v1470, %v1471
    %v1473 = vsel %vm403, %v1467, %v1472
    %v1474 = vrot.slane %v1323, 1
    %v1475 = vrot.slane %v1325, 2
    %v1476 = vor.u32 %v1474, %v1475
    %v1477 = vshrl.u32 %v1306, 16
    %v1479 = vrot.slane %v1477, 1
    %v1480 = vrot.slane %v1329, 2
    %v1481 = vor.u32 %v1479, %v1480
    %v1482 = vsel %vm403, %v1476, %v1481
    %v1483 = vrot.slane %v1333, 1
    %v1484 = vrot.slane %v1335, 2
    %v1485 = vor.u32 %v1483, %v1484
    %v1486 = vshrl.u32 %v1307, 16
    %v1488 = vrot.slane %v1486, 1
    %v1489 = vrot.slane %v1339, 2
    %v1490 = vor.u32 %v1488, %v1489
    %v1491 = vsel %vm403, %v1485, %v1490
    %v1492 = vrot.slane %v1343, 1
    %v1493 = vrot.slane %v1345, 2
    %v1494 = vor.u32 %v1492, %v1493
    %v1495 = vshrl.u32 %v1308, 16
    %v1497 = vrot.slane %v1495, 1
    %v1498 = vrot.slane %v1349, 2
    %v1499 = vor.u32 %v1497, %v1498
    %v1500 = vsel %vm403, %v1494, %v1499
    %v1501 = vrot.slane %v1353, 1
    %v1502 = vrot.slane %v1355, 2
    %v1503 = vor.u32 %v1501, %v1502
    %v1504 = vshrl.u32 %v1309, 16
    %v1506 = vrot.slane %v1504, 1
    %v1507 = vrot.slane %v1359, 2
    %v1508 = vor.u32 %v1506, %v1507
    %v1509 = vsel %vm403, %v1503, %v1508
    %v1510 = vrot.slane %v1363, 1
    %v1511 = vrot.slane %v1365, 2
    %v1512 = vor.u32 %v1510, %v1511
    %v1513 = vshrl.u32 %v1310, 16
    %v1515 = vrot.slane %v1513, 1
    %v1516 = vrot.slane %v1369, 2
    %v1517 = vor.u32 %v1515, %v1516
    %v1518 = vsel %vm403, %v1512, %v1517
    %v1519 = vrot.slane %v1373, 1
    %v1520 = vrot.slane %v1375, 2
    %v1521 = vor.u32 %v1519, %v1520
    %v1522 = vshrl.u32 %v1311, 16
    %v1524 = vrot.slane %v1522, 1
    %v1525 = vrot.slane %v1379, 2
    %v1526 = vor.u32 %v1524, %v1525
    %v1527 = vsel %vm403, %v1521, %v1526
    %v1528 = vrot.slane %v1383, 1
    %v1529 = vrot.slane %v1385, 2
    %v1530 = vor.u32 %v1528, %v1529
    %v1531 = vshrl.u32 %v1312, 16
    %v1533 = vrot.slane %v1531, 1
    %v1534 = vrot.slane %v1389, 2
    %v1535 = vor.u32 %v1533, %v1534
    %v1536 = vsel %vm403, %v1530, %v1535
    %1537 = vrot.lane.b32.xlu0 %v1473, 96
    %v1538 = vpop.permute.xlu0 %1537
    %1539 = vrot.lane.b32.xlu0 %v1482, 96
    %v1540 = vpop.permute.xlu0 %1539
    %1541 = vrot.lane.b32.xlu0 %v1491, 96
    %v1542 = vpop.permute.xlu0 %1541
    %1543 = vrot.lane.b32.xlu0 %v1500, 96
    %v1544 = vpop.permute.xlu0 %1543
    %1545 = vrot.lane.b32.xlu0 %v1509, 96
    %v1546 = vpop.permute.xlu0 %1545
    %1547 = vrot.lane.b32.xlu0 %v1518, 96
    %v1548 = vpop.permute.xlu0 %1547
    %1549 = vrot.lane.b32.xlu0 %v1527, 96
    %v1550 = vpop.permute.xlu0 %1549
    %1551 = vrot.lane.b32.xlu0 %v1536, 96
    %v1552 = vpop.permute.xlu0 %1551
    %v1553 = vrot.slane %v1290, 2
    %v1554 = vrot.slane %v1305, 2
    %v1555 = vsel %vm492, %v1553, %v1554
    %v1556 = vrot.slane %v1292, 2
    %v1557 = vrot.slane %v1306, 2
    %v1558 = vsel %vm492, %v1556, %v1557
    %v1559 = vrot.slane %v1294, 2
    %v1560 = vrot.slane %v1307, 2
    %v1561 = vsel %vm492, %v1559, %v1560
    %v1562 = vrot.slane %v1296, 2
    %v1563 = vrot.slane %v1308, 2
    %v1564 = vsel %vm492, %v1562, %v1563
    %v1565 = vrot.slane %v1298, 2
    %v1566 = vrot.slane %v1309, 2
    %v1567 = vsel %vm492, %v1565, %v1566
    %v1568 = vrot.slane %v1300, 2
    %v1569 = vrot.slane %v1310, 2
    %v1570 = vsel %vm492, %v1568, %v1569
    %v1571 = vrot.slane %v1302, 2
    %v1572 = vrot.slane %v1311, 2
    %v1573 = vsel %vm492, %v1571, %v1572
    %v1574 = vrot.slane %v1304, 2
    %v1575 = vrot.slane %v1312, 2
    %v1576 = vsel %vm492, %v1574, %v1575
    %v1578 = vsel %vm517, %v1290, %v1394
    %v1580 = vsel %vm517, %v1292, %v1396
    %v1582 = vsel %vm517, %v1294, %v1398
    %v1584 = vsel %vm517, %v1296, %v1400
    %v1586 = vsel %vm517, %v1298, %v1402
    %v1588 = vsel %vm517, %v1300, %v1404
    %v1590 = vsel %vm517, %v1302, %v1406
    %v1592 = vsel %vm517, %v1304, %v1408
    %v1594 = vsel %vm534, %v1578, %v1450
    %v1596 = vsel %vm534, %v1580, %v1452
    %v1598 = vsel %vm534, %v1582, %v1454
    %v1600 = vsel %vm534, %v1584, %v1456
    %v1602 = vsel %vm534, %v1586, %v1458
    %v1604 = vsel %vm534, %v1588, %v1460
    %v1606 = vsel %vm534, %v1590, %v1462
    %v1608 = vsel %vm534, %v1592, %v1464
    %v1610 = vsel %vm551, %v1594, %v1538
    %v1613 = vsel %vm551, %v1596, %v1540
    %v1616 = vsel %vm551, %v1598, %v1542
    %v1619 = vsel %vm551, %v1600, %v1544
    %v1622 = vsel %vm551, %v1602, %v1546
    %v1625 = vsel %vm551, %v1604, %v1548
    %v1628 = vsel %vm551, %v1606, %v1550
    %v1631 = vsel %vm551, %v1608, %v1552
    %v1641 = vrot.slane %v1265, 7
    %v1642 = vrot.slane %v1266, 7
    %v1643 = vrot.slane %v1267, 7
    %v1644 = vrot.slane %v1268, 7
    %v1645 = vrot.slane %v1269, 7
    %v1646 = vrot.slane %v1270, 7
    %v1647 = vrot.slane %v1271, 7
    %v1648 = vrot.slane %v1272, 7
    %v1650 = vsel %vm223, 0, %v1641
    %v1652 = vsel %vm223, 0, %v1642
    %v1654 = vsel %vm223, 0, %v1643
    %v1656 = vsel %vm223, 0, %v1644
    %v1658 = vsel %vm223, 0, %v1645
    %v1660 = vsel %vm223, 0, %v1646
    %v1662 = vsel %vm223, 0, %v1647
    %v1664 = vsel %vm223, 0, %v1648
    %v1665 = vsel %vm223, %v1641, 0
    %v1666 = vsel %vm223, %v1642, 0
    %v1667 = vsel %vm223, %v1643, 0
    %v1668 = vsel %vm223, %v1644, 0
    %v1669 = vsel %vm223, %v1645, 0
    %v1670 = vsel %vm223, %v1646, 0
    %v1671 = vsel %vm223, %v1647, 0
    %v1672 = vsel %vm223, %v1648, 0
    %v1673 = vshrl.u32 %v1650, 16
    %v1675 = vshll.u32 %v1650, 16
    %v1677 = vrot.slane %v1675, 1
    %v1678 = vor.u32 %v1673, %v1677
    %v1679 = vshll.u32 %v1665, 16
    %v1681 = vrot.slane %v1679, 1
    %v1682 = vsel %vm249, %v1678, %v1681
    %v1683 = vshrl.u32 %v1652, 16
    %v1685 = vshll.u32 %v1652, 16
    %v1687 = vrot.slane %v1685, 1
    %v1688 = vor.u32 %v1683, %v1687
    %v1689 = vshll.u32 %v1666, 16
    %v1691 = vrot.slane %v1689, 1
    %v1692 = vsel %vm249, %v1688, %v1691
    %v1693 = vshrl.u32 %v1654, 16
    %v1695 = vshll.u32 %v1654, 16
    %v1697 = vrot.slane %v1695, 1
    %v1698 = vor.u32 %v1693, %v1697
    %v1699 = vshll.u32 %v1667, 16
    %v1701 = vrot.slane %v1699, 1
    %v1702 = vsel %vm249, %v1698, %v1701
    %v1703 = vshrl.u32 %v1656, 16
    %v1705 = vshll.u32 %v1656, 16
    %v1707 = vrot.slane %v1705, 1
    %v1708 = vor.u32 %v1703, %v1707
    %v1709 = vshll.u32 %v1668, 16
    %v1711 = vrot.slane %v1709, 1
    %v1712 = vsel %vm249, %v1708, %v1711
    %v1713 = vshrl.u32 %v1658, 16
    %v1715 = vshll.u32 %v1658, 16
    %v1717 = vrot.slane %v1715, 1
    %v1718 = vor.u32 %v1713, %v1717
    %v1719 = vshll.u32 %v1669, 16
    %v1721 = vrot.slane %v1719, 1
    %v1722 = vsel %vm249, %v1718, %v1721
    %v1723 = vshrl.u32 %v1660, 16
    %v1725 = vshll.u32 %v1660, 16
    %v1727 = vrot.slane %v1725, 1
    %v1728 = vor.u32 %v1723, %v1727
    %v1729 = vshll.u32 %v1670, 16
    %v1731 = vrot.slane %v1729, 1
    %v1732 = vsel %vm249, %v1728, %v1731
    %v1733 = vshrl.u32 %v1662, 16
    %v1735 = vshll.u32 %v1662, 16
    %v1737 = vrot.slane %v1735, 1
    %v1738 = vor.u32 %v1733, %v1737
    %v1739 = vshll.u32 %v1671, 16
    %v1741 = vrot.slane %v1739, 1
    %v1742 = vsel %vm249, %v1738, %v1741
    %v1743 = vshrl.u32 %v1664, 16
    %v1745 = vshll.u32 %v1664, 16
    %v1747 = vrot.slane %v1745, 1
    %v1748 = vor.u32 %v1743, %v1747
    %v1749 = vshll.u32 %v1672, 16
    %v1751 = vrot.slane %v1749, 1
    %v1752 = vsel %vm249, %v1748, %v1751
    %1753 = vrot.lane.b32.xlu0 %v1682, 32
    %v1754 = vpop.permute.xlu0 %1753
    %1755 = vrot.lane.b32.xlu0 %v1692, 32
    %v1756 = vpop.permute.xlu0 %1755
    %1757 = vrot.lane.b32.xlu0 %v1702, 32
    %v1758 = vpop.permute.xlu0 %1757
    %1759 = vrot.lane.b32.xlu0 %v1712, 32
    %v1760 = vpop.permute.xlu0 %1759
    %1761 = vrot.lane.b32.xlu0 %v1722, 32
    %v1762 = vpop.permute.xlu0 %1761
    %1763 = vrot.lane.b32.xlu0 %v1732, 32
    %v1764 = vpop.permute.xlu0 %1763
    %1765 = vrot.lane.b32.xlu0 %v1742, 32
    %v1766 = vpop.permute.xlu0 %1765
    %1767 = vrot.lane.b32.xlu0 %v1752, 32
    %v1768 = vpop.permute.xlu0 %1767
    %v1785 = vrot.slane %v1650, 1
    %v1786 = vrot.slane %v1665, 1
    %v1787 = vsel %vm362, %v1785, %v1786
    %v1788 = vrot.slane %v1652, 1
    %v1789 = vrot.slane %v1666, 1
    %v1790 = vsel %vm362, %v1788, %v1789
    %v1791 = vrot.slane %v1654, 1
    %v1792 = vrot.slane %v1667, 1
    %v1793 = vsel %vm362, %v1791, %v1792
    %v1794 = vrot.slane %v1656, 1
    %v1795 = vrot.slane %v1668, 1
    %v1796 = vsel %vm362, %v1794, %v1795
    %v1797 = vrot.slane %v1658, 1
    %v1798 = vrot.slane %v1669, 1
    %v1799 = vsel %vm362, %v1797, %v1798
    %v1800 = vrot.slane %v1660, 1
    %v1801 = vrot.slane %v1670, 1
    %v1802 = vsel %vm362, %v1800, %v1801
    %v1803 = vrot.slane %v1662, 1
    %v1804 = vrot.slane %v1671, 1
    %v1805 = vsel %vm362, %v1803, %v1804
    %v1806 = vrot.slane %v1664, 1
    %v1807 = vrot.slane %v1672, 1
    %v1808 = vsel %vm362, %v1806, %v1807
    %1809 = vrot.lane.b32.xlu0 %v1787, 64
    %v1810 = vpop.permute.xlu0 %1809
    %1811 = vrot.lane.b32.xlu0 %v1790, 64
    %v1812 = vpop.permute.xlu0 %1811
    %1813 = vrot.lane.b32.xlu0 %v1793, 64
    %v1814 = vpop.permute.xlu0 %1813
    %1815 = vrot.lane.b32.xlu0 %v1796, 64
    %v1816 = vpop.permute.xlu0 %1815
    %1817 = vrot.lane.b32.xlu0 %v1799, 64
    %v1818 = vpop.permute.xlu0 %1817
    %1819 = vrot.lane.b32.xlu0 %v1802, 64
    %v1820 = vpop.permute.xlu0 %1819
    %1821 = vrot.lane.b32.xlu0 %v1805, 64
    %v1822 = vpop.permute.xlu0 %1821
    %1823 = vrot.lane.b32.xlu0 %v1808, 64
    %v1824 = vpop.permute.xlu0 %1823
    %v1825 = vrot.slane %v1673, 1
    %v1826 = vrot.slane %v1675, 2
    %v1827 = vor.u32 %v1825, %v1826
    %v1828 = vshrl.u32 %v1665, 16
    %v1830 = vrot.slane %v1828, 1
    %v1831 = vrot.slane %v1679, 2
    %v1832 = vor.u32 %v1830, %v1831
    %v1833 = vsel %vm403, %v1827, %v1832
    %v1834 = vrot.slane %v1683, 1
    %v1835 = vrot.slane %v1685, 2
    %v1836 = vor.u32 %v1834, %v1835
    %v1837 = vshrl.u32 %v1666, 16
    %v1839 = vrot.slane %v1837, 1
    %v1840 = vrot.slane %v1689, 2
    %v1841 = vor.u32 %v1839, %v1840
    %v1842 = vsel %vm403, %v1836, %v1841
    %v1843 = vrot.slane %v1693, 1
    %v1844 = vrot.slane %v1695, 2
    %v1845 = vor.u32 %v1843, %v1844
    %v1846 = vshrl.u32 %v1667, 16
    %v1848 = vrot.slane %v1846, 1
    %v1849 = vrot.slane %v1699, 2
    %v1850 = vor.u32 %v1848, %v1849
    %v1851 = vsel %vm403, %v1845, %v1850
    %v1852 = vrot.slane %v1703, 1
    %v1853 = vrot.slane %v1705, 2
    %v1854 = vor.u32 %v1852, %v1853
    %v1855 = vshrl.u32 %v1668, 16
    %v1857 = vrot.slane %v1855, 1
    %v1858 = vrot.slane %v1709, 2
    %v1859 = vor.u32 %v1857, %v1858
    %v1860 = vsel %vm403, %v1854, %v1859
    %v1861 = vrot.slane %v1713, 1
    %v1862 = vrot.slane %v1715, 2
    %v1863 = vor.u32 %v1861, %v1862
    %v1864 = vshrl.u32 %v1669, 16
    %v1866 = vrot.slane %v1864, 1
    %v1867 = vrot.slane %v1719, 2
    %v1868 = vor.u32 %v1866, %v1867
    %v1869 = vsel %vm403, %v1863, %v1868
    %v1870 = vrot.slane %v1723, 1
    %v1871 = vrot.slane %v1725, 2
    %v1872 = vor.u32 %v1870, %v1871
    %v1873 = vshrl.u32 %v1670, 16
    %v1875 = vrot.slane %v1873, 1
    %v1876 = vrot.slane %v1729, 2
    %v1877 = vor.u32 %v1875, %v1876
    %v1878 = vsel %vm403, %v1872, %v1877
    %v1879 = vrot.slane %v1733, 1
    %v1880 = vrot.slane %v1735, 2
    %v1881 = vor.u32 %v1879, %v1880
    %v1882 = vshrl.u32 %v1671, 16
    %v1884 = vrot.slane %v1882, 1
    %v1885 = vrot.slane %v1739, 2
    %v1886 = vor.u32 %v1884, %v1885
    %v1887 = vsel %vm403, %v1881, %v1886
    %v1888 = vrot.slane %v1743, 1
    %v1889 = vrot.slane %v1745, 2
    %v1890 = vor.u32 %v1888, %v1889
    %v1891 = vshrl.u32 %v1672, 16
    %v1893 = vrot.slane %v1891, 1
    %v1894 = vrot.slane %v1749, 2
    %v1895 = vor.u32 %v1893, %v1894
    %v1896 = vsel %vm403, %v1890, %v1895
    %1897 = vrot.lane.b32.xlu0 %v1833, 96
    %v1898 = vpop.permute.xlu0 %1897
    %1899 = vrot.lane.b32.xlu0 %v1842, 96
    %v1900 = vpop.permute.xlu0 %1899
    %1901 = vrot.lane.b32.xlu0 %v1851, 96
    %v1902 = vpop.permute.xlu0 %1901
    %1903 = vrot.lane.b32.xlu0 %v1860, 96
    %v1904 = vpop.permute.xlu0 %1903
    %1905 = vrot.lane.b32.xlu0 %v1869, 96
    %v1906 = vpop.permute.xlu0 %1905
    %1907 = vrot.lane.b32.xlu0 %v1878, 96
    %v1908 = vpop.permute.xlu0 %1907
    %1909 = vrot.lane.b32.xlu0 %v1887, 96
    %v1910 = vpop.permute.xlu0 %1909
    %1911 = vrot.lane.b32.xlu0 %v1896, 96
    %v1912 = vpop.permute.xlu0 %1911
    %v1913 = vrot.slane %v1650, 2
    %v1914 = vrot.slane %v1665, 2
    %v1915 = vsel %vm492, %v1913, %v1914
    %v1916 = vrot.slane %v1652, 2
    %v1917 = vrot.slane %v1666, 2
    %v1918 = vsel %vm492, %v1916, %v1917
    %v1919 = vrot.slane %v1654, 2
    %v1920 = vrot.slane %v1667, 2
    %v1921 = vsel %vm492, %v1919, %v1920
    %v1922 = vrot.slane %v1656, 2
    %v1923 = vrot.slane %v1668, 2
    %v1924 = vsel %vm492, %v1922, %v1923
    %v1925 = vrot.slane %v1658, 2
    %v1926 = vrot.slane %v1669, 2
    %v1927 = vsel %vm492, %v1925, %v1926
    %v1928 = vrot.slane %v1660, 2
    %v1929 = vrot.slane %v1670, 2
    %v1930 = vsel %vm492, %v1928, %v1929
    %v1931 = vrot.slane %v1662, 2
    %v1932 = vrot.slane %v1671, 2
    %v1933 = vsel %vm492, %v1931, %v1932
    %v1934 = vrot.slane %v1664, 2
    %v1935 = vrot.slane %v1672, 2
    %v1936 = vsel %vm492, %v1934, %v1935
    %v1938 = vsel %vm517, %v1650, %v1754
    %v1940 = vsel %vm517, %v1652, %v1756
    %v1942 = vsel %vm517, %v1654, %v1758
    %v1944 = vsel %vm517, %v1656, %v1760
    %v1946 = vsel %vm517, %v1658, %v1762
    %v1948 = vsel %vm517, %v1660, %v1764
    %v1950 = vsel %vm517, %v1662, %v1766
    %v1952 = vsel %vm517, %v1664, %v1768
    %v1954 = vsel %vm534, %v1938, %v1810
    %v1956 = vsel %vm534, %v1940, %v1812
    %v1958 = vsel %vm534, %v1942, %v1814
    %v1960 = vsel %vm534, %v1944, %v1816
    %v1962 = vsel %vm534, %v1946, %v1818
    %v1964 = vsel %vm534, %v1948, %v1820
    %v1966 = vsel %vm534, %v1950, %v1822
    %v1968 = vsel %vm534, %v1952, %v1824
    %v1970 = vsel %vm551, %v1954, %v1898
    %v1973 = vsel %vm551, %v1956, %v1900
    %v1976 = vsel %vm551, %v1958, %v1902
    %v1979 = vsel %vm551, %v1960, %v1904
    %v1982 = vsel %vm551, %v1962, %v1906
    %v1985 = vsel %vm551, %v1964, %v1908
    %v1988 = vsel %vm551, %v1966, %v1910
    %v1991 = vsel %vm551, %v1968, %v1912
    %v1993 = vld [vmem:[#allocation2] sm:$0xf]
    %v1994 = vld [vmem:[#allocation2 + $0x4] sm:$0xf]
    %v1995 = vld [vmem:[#allocation2 + $0x8] sm:$0xf]
    %v1996 = vld [vmem:[#allocation2 + $0xc] sm:$0xf]
    %v1997 = vld [vmem:[#allocation2 + $0x10] sm:$0xf]
    %v1998 = vld [vmem:[#allocation2 + $0x14] sm:$0xf]
    %v1999 = vld [vmem:[#allocation2 + $0x18] sm:$0xf]
    %v2000 = vld [vmem:[#allocation2 + $0x1c] sm:$0xf]
    %v2001 = vld [vmem:[#allocation2 + $0x20] sm:$0xf]
    %v2002 = vld [vmem:[#allocation2 + $0x24] sm:$0xf]
    %v2003 = vld [vmem:[#allocation2 + $0x28] sm:$0xf]
    %v2004 = vld [vmem:[#allocation2 + $0x2c] sm:$0xf]
    %v2005 = vld [vmem:[#allocation2 + $0x30] sm:$0xf]
    %v2006 = vld [vmem:[#allocation2 + $0x34] sm:$0xf]
    %v2007 = vld [vmem:[#allocation2 + $0x38] sm:$0xf]
    %v2008 = vld [vmem:[#allocation2 + $0x3c] sm:$0xf]
    %v2009 = vld [vmem:[#allocation2 + $0x40] sm:$0xf]
    %v2010 = vld [vmem:[#allocation2 + $0x44] sm:$0xf]
    %v2011 = vld [vmem:[#allocation2 + $0x48] sm:$0xf]
    %v2012 = vld [vmem:[#allocation2 + $0x4c] sm:$0xf]
    %v2033 = vunpack.c.l.b16 %v1993
    %v2034 = vunpack.c.l.b16 %v1994
    %v2035 = vunpack.c.l.b16 %v1995
    %v2036 = vunpack.c.l.b16 %v1996
    %v2037 = vunpack.c.l.b16 %v1997
    %v2038 = vunpack.c.l.b16 %v1998
    %v2039 = vunpack.c.l.b16 %v1999
    %v2040 = vunpack.c.l.b16 %v2000
    %v2041 = vunpack.c.l.b16 %v2001
    %v2042 = vunpack.c.l.b16 %v2002
    %v2043 = vunpack.c.l.b16 %v2003
    %v2044 = vunpack.c.l.b16 %v2004
    %v2045 = vunpack.c.l.b16 %v2005
    %v2046 = vunpack.c.l.b16 %v2006
    %v2047 = vunpack.c.l.b16 %v2007
    %v2048 = vunpack.c.l.b16 %v2008
    %v2049 = vunpack.c.l.b16 %v2009
    %v2050 = vunpack.c.l.b16 %v2010
    %v2051 = vunpack.c.l.b16 %v2011
    %v2052 = vunpack.c.l.b16 %v2012
    %v2053 = vpack.c.b16 %v2034, %v2033
    %v2054 = vpack.c.b16 %v2036, %v2035
    %v2055 = vpack.c.b16 %v2038, %v2037
    %v2056 = vpack.c.b16 %v2040, %v2039
    %v2057 = vpack.c.b16 %v2042, %v2041
    %v2058 = vpack.c.b16 %v2044, %v2043
    %v2059 = vpack.c.b16 %v2046, %v2045
    %v2060 = vpack.c.b16 %v2048, %v2047
    %v2061 = vpack.c.b16 %v2050, %v2049
    %v2062 = vpack.c.b16 %v2052, %v2051
    %v2074 = vsel %vm517, %v1555, 0
    %v2077 = vsel %vm517, %v1558, 0
    %v2080 = vsel %vm517, %v1561, 0
    %v2083 = vsel %vm517, %v1564, 0
    %v2086 = vsel %vm517, %v1567, 0
    %v2089 = vsel %vm517, %v1570, 0
    %v2092 = vsel %vm517, %v1573, 0
    %v2095 = vsel %vm517, %v1576, 0
    %v2098 = vsel %vm517, %v1915, 0
    %v2101 = vsel %vm517, %v1918, 0
    %v2104 = vsel %vm517, %v1921, 0
    %v2107 = vsel %vm517, %v1924, 0
    %v2110 = vsel %vm517, %v1927, 0
    %v2113 = vsel %vm517, %v1930, 0
    %v2116 = vsel %vm517, %v1933, 0
    %v2119 = vsel %vm517, %v1936, 0
    %2121 = vmatprep.subr.bf16.mxu0 0
    %2122 = vmatpush1.bf16.msra.mxu0 %v2060
    %2123 = vmatprep.subr.bf16.mxu0 0
    %2124 = vmatpush1.bf16.msra.mxu0 %v2059
    %2125 = vmatprep.subr.bf16.mxu0 0
    %2126 = vmatpush1.bf16.msra.mxu0 %v2058
    %2127 = vmatprep.subr.bf16.mxu0 0
    %2128 = vmatpush1.bf16.msra.mxu0 %v2057
    %2129 = vmatprep.subr.bf16.mxu0 0
    %2130 = vmatpush1.bf16.msra.mxu0 %v2056
    %2131 = vmatprep.subr.bf16.mxu0 0
    %2132 = vmatpush1.bf16.msra.mxu0 %v2055
    %2133 = vmatprep.subr.bf16.mxu0 0
    %2134 = vmatpush1.bf16.msra.mxu0 %v2054
    %2135 = vmatprep.subr.bf16.mxu0 0
    %2136 = vmatpush1.bf16.msra.mxu0 %v2053
    %2137 = vmatprep.subr.bf16.mxu0 0
    %2138 = vmatpush2.bf16.msra.mxu0 0
    %2139 = vmatprep.subr.bf16.mxu0 0
    %2140 = vmatpush2.bf16.msra.mxu0 0
    %2141 = vmatprep.subr.bf16.mxu0 0
    %2142 = vmatpush2.bf16.msra.mxu0 0
    %2143 = vmatprep.subr.bf16.mxu0 0
    %2144 = vmatpush2.bf16.msra.mxu0 0
    %2145 = vmatprep.subr.bf16.mxu0 0
    %2146 = vmatpush2.bf16.msra.mxu0 0
    %2147 = vmatprep.subr.bf16.mxu0 0
    %2148 = vmatpush2.bf16.msra.mxu0 0
    %2149 = vmatprep.subr.bf16.mxu0 0
    %2150 = vmatpush2.bf16.msra.mxu0 %v2062
    %2151 = vmatprep.subr.bf16.mxu0 0
    %2152 = vmatpush2.bf16.msra.mxu0 %v2061
    %2153 = vmatprep.mubr.bf16.mxu0 %v2074
    %2154 = vmatmul.mubr.bf16.gmra.mxu0 %v1610
    %v2155 = vpop.f32.mrf.mxu0
    %v2156 = vadd.f32 %v1131, %v2155
    %v2157 = vpop.f32.mrf.mxu0
    %v2158 = vpop.f32.mrf.mxu0
    %v2159 = vadd.f32 %v1134, %v2158
    %v2160 = vpop.f32.mrf.mxu0
    %2161 = vmatprep.mubr.bf16.mxu0 %v2077
    %2162 = vmatmul.mubr.bf16.gmra.mxu0 %v1613
    %v2163 = vpop.f32.mrf.mxu0
    %v2164 = vadd.f32 %v1139, %v2163
    %v2165 = vpop.f32.mrf.mxu0
    %v2166 = vpop.f32.mrf.mxu0
    %v2167 = vadd.f32 %v1142, %v2166
    %v2168 = vpop.f32.mrf.mxu0
    %2169 = vmatprep.mubr.bf16.mxu0 %v2080
    %2170 = vmatmul.mubr.bf16.gmra.mxu0 %v1616
    %v2171 = vpop.f32.mrf.mxu0
    %v2172 = vadd.f32 %v1147, %v2171
    %v2173 = vpop.f32.mrf.mxu0
    %v2174 = vpop.f32.mrf.mxu0
    %v2175 = vadd.f32 %v1150, %v2174
    %v2176 = vpop.f32.mrf.mxu0
    %2177 = vmatprep.mubr.bf16.mxu0 %v2083
    %2178 = vmatmul.mubr.bf16.gmra.mxu0 %v1619
    %v2179 = vpop.f32.mrf.mxu0
    %v2180 = vadd.f32 %v1155, %v2179
    %v2181 = vpop.f32.mrf.mxu0
    %v2182 = vpop.f32.mrf.mxu0
    %v2183 = vadd.f32 %v1158, %v2182
    %v2184 = vpop.f32.mrf.mxu0
    %2185 = vmatprep.mubr.bf16.mxu0 %v2086
    %2186 = vmatmul.mubr.bf16.gmra.mxu0 %v1622
    %v2187 = vpop.f32.mrf.mxu0
    %v2188 = vadd.f32 %v1163, %v2187
    %v2189 = vpop.f32.mrf.mxu0
    %v2190 = vpop.f32.mrf.mxu0
    %v2191 = vadd.f32 %v1166, %v2190
    %v2192 = vpop.f32.mrf.mxu0
    %2193 = vmatprep.mubr.bf16.mxu0 %v2089
    %2194 = vmatmul.mubr.bf16.gmra.mxu0 %v1625
    %v2195 = vpop.f32.mrf.mxu0
    %v2196 = vadd.f32 %v1171, %v2195
    %v2197 = vpop.f32.mrf.mxu0
    %v2198 = vpop.f32.mrf.mxu0
    %v2199 = vadd.f32 %v1174, %v2198
    %v2200 = vpop.f32.mrf.mxu0
    %2201 = vmatprep.mubr.bf16.mxu0 %v2092
    %2202 = vmatmul.mubr.bf16.gmra.mxu0 %v1628
    %v2203 = vpop.f32.mrf.mxu0
    %v2204 = vadd.f32 %v1179, %v2203
    %v2205 = vpop.f32.mrf.mxu0
    %v2206 = vpop.f32.mrf.mxu0
    %v2207 = vadd.f32 %v1182, %v2206
    %v2208 = vpop.f32.mrf.mxu0
    %2209 = vmatprep.mubr.bf16.mxu0 %v2095
    %2210 = vmatmul.mubr.bf16.gmra.mxu0 %v1631
    %v2211 = vpop.f32.mrf.mxu0
    %v2212 = vadd.f32 %v1187, %v2211
    %v2213 = vpop.f32.mrf.mxu0
    %v2214 = vpop.f32.mrf.mxu0
    %v2215 = vadd.f32 %v1190, %v2214
    %v2216 = vpop.f32.mrf.mxu0
    %2217 = vmatprep.mubr.bf16.mxu0 %v2098
    %2218 = vmatmul.mubr.bf16.gmra.mxu0 %v1970
    %v2219 = vpop.f32.mrf.mxu0
    %v2220 = vadd.f32 %v1195, %v2219
    %v2221 = vpop.f32.mrf.mxu0
    %v2222 = vpop.f32.mrf.mxu0
    %v2223 = vadd.f32 %v1198, %v2222
    %v2224 = vpop.f32.mrf.mxu0
    %2225 = vmatprep.mubr.bf16.mxu0 %v2101
    %2226 = vmatmul.mubr.bf16.gmra.mxu0 %v1973
    %v2227 = vpop.f32.mrf.mxu0
    %v2228 = vadd.f32 %v1203, %v2227
    %v2229 = vpop.f32.mrf.mxu0
    %v2230 = vpop.f32.mrf.mxu0
    %v2231 = vadd.f32 %v1206, %v2230
    %v2232 = vpop.f32.mrf.mxu0
    %2233 = vmatprep.mubr.bf16.mxu0 %v2104
    %2234 = vmatmul.mubr.bf16.gmra.mxu0 %v1976
    %v2235 = vpop.f32.mrf.mxu0
    %v2236 = vadd.f32 %v1211, %v2235
    %v2237 = vpop.f32.mrf.mxu0
    %v2238 = vpop.f32.mrf.mxu0
    %v2239 = vadd.f32 %v1214, %v2238
    %v2240 = vpop.f32.mrf.mxu0
    %2241 = vmatprep.mubr.bf16.mxu0 %v2107
    %2242 = vmatmul.mubr.bf16.gmra.mxu0 %v1979
    %v2243 = vpop.f32.mrf.mxu0
    %v2244 = vadd.f32 %v1219, %v2243
    %v2245 = vpop.f32.mrf.mxu0
    %v2246 = vpop.f32.mrf.mxu0
    %v2247 = vadd.f32 %v1222, %v2246
    %v2248 = vpop.f32.mrf.mxu0
    %2249 = vmatprep.mubr.bf16.mxu0 %v2110
    %2250 = vmatmul.mubr.bf16.gmra.mxu0 %v1982
    %v2251 = vpop.f32.mrf.mxu0
    %v2252 = vadd.f32 %v1227, %v2251
    %v2253 = vpop.f32.mrf.mxu0
    %v2254 = vpop.f32.mrf.mxu0
    %v2255 = vadd.f32 %v1230, %v2254
    %v2256 = vpop.f32.mrf.mxu0
    %2257 = vmatprep.mubr.bf16.mxu0 %v2113
    %2258 = vmatmul.mubr.bf16.gmra.mxu0 %v1985
    %v2259 = vpop.f32.mrf.mxu0
    %v2260 = vadd.f32 %v1235, %v2259
    %v2261 = vpop.f32.mrf.mxu0
    %v2262 = vpop.f32.mrf.mxu0
    %v2263 = vadd.f32 %v1238, %v2262
    %v2264 = vpop.f32.mrf.mxu0
    %2265 = vmatprep.mubr.bf16.mxu0 %v2116
    %2266 = vmatmul.mubr.bf16.gmra.mxu0 %v1988
    %v2267 = vpop.f32.mrf.mxu0
    %v2268 = vadd.f32 %v1243, %v2267
    %v2269 = vpop.f32.mrf.mxu0
    %v2270 = vpop.f32.mrf.mxu0
    %v2271 = vadd.f32 %v1246, %v2270
    %v2272 = vpop.f32.mrf.mxu0
    %2273 = vmatprep.mubr.bf16.mxu0 %v2119
    %2274 = vmatmul.mubr.bf16.gmra.mxu0 %v1991
    %v2275 = vpop.f32.mrf.mxu0
    %v2276 = vadd.f32 %v1251, %v2275
    %v2277 = vpop.f32.mrf.mxu0
    %v2278 = vpop.f32.mrf.mxu0
    %v2279 = vadd.f32 %v1254, %v2278
    %v2280 = vpop.f32.mrf.mxu0
    %2281 = vdwg.mxu0
    %v2282 = vld [vmem:[%s5] sm:$0x1]
    %v2284 = vlaneseq
    %v2285 = vshrl.u32 %v2284, 7
    %v2286 = vsub.s32 0, %v2285
    %v2287 = vrot.slane %v2282, %v2286
    %v2289 = vadd.f32 %v2156, %v2287
    %v2290 = vadd.f32 %v2159, %v2287
    %v2291 = vadd.f32 %v2164, %v2287
    %v2292 = vadd.f32 %v2167, %v2287
    %v2293 = vadd.f32 %v2172, %v2287
    %v2294 = vadd.f32 %v2175, %v2287
    %v2295 = vadd.f32 %v2180, %v2287
    %v2296 = vadd.f32 %v2183, %v2287
    %v2297 = vadd.f32 %v2188, %v2287
    %v2298 = vadd.f32 %v2191, %v2287
    %v2299 = vadd.f32 %v2196, %v2287
    %v2300 = vadd.f32 %v2199, %v2287
    %v2301 = vadd.f32 %v2204, %v2287
    %v2302 = vadd.f32 %v2207, %v2287
    %v2303 = vadd.f32 %v2212, %v2287
    %v2304 = vadd.f32 %v2215, %v2287
    %v2305 = vadd.f32 %v2220, %v2287
    %v2306 = vadd.f32 %v2223, %v2287
    %v2307 = vadd.f32 %v2228, %v2287
    %v2308 = vadd.f32 %v2231, %v2287
    %v2309 = vadd.f32 %v2236, %v2287
    %v2310 = vadd.f32 %v2239, %v2287
    %v2311 = vadd.f32 %v2244, %v2287
    %v2312 = vadd.f32 %v2247, %v2287
    %v2313 = vadd.f32 %v2252, %v2287
    %v2314 = vadd.f32 %v2255, %v2287
    %v2315 = vadd.f32 %v2260, %v2287
    %v2316 = vadd.f32 %v2263, %v2287
    %v2317 = vadd.f32 %v2268, %v2287
    %v2318 = vadd.f32 %v2271, %v2287
    %v2319 = vadd.f32 %v2276, %v2287
    %v2320 = vadd.f32 %v2279, %v2287
    %v2321 = vxor.u32 %v2289, 2147483648
    %v2322 = vxor.u32 %v2290, 2147483648
    %v2323 = vxor.u32 %v2291, 2147483648
    %v2324 = vxor.u32 %v2292, 2147483648
    %v2325 = vxor.u32 %v2293, 2147483648
    %v2326 = vxor.u32 %v2294, 2147483648
    %v2327 = vxor.u32 %v2295, 2147483648
    %v2328 = vxor.u32 %v2296, 2147483648
    %v2329 = vxor.u32 %v2297, 2147483648
    %v2330 = vxor.u32 %v2298, 2147483648
    %v2331 = vxor.u32 %v2299, 2147483648
    %v2332 = vxor.u32 %v2300, 2147483648
    %v2333 = vxor.u32 %v2301, 2147483648
    %v2334 = vxor.u32 %v2302, 2147483648
    %v2335 = vxor.u32 %v2303, 2147483648
    %v2336 = vxor.u32 %v2304, 2147483648
    %v2337 = vxor.u32 %v2305, 2147483648
    %v2338 = vxor.u32 %v2306, 2147483648
    %v2339 = vxor.u32 %v2307, 2147483648
    %v2340 = vxor.u32 %v2308, 2147483648
    %v2341 = vxor.u32 %v2309, 2147483648
    %v2342 = vxor.u32 %v2310, 2147483648
    %v2343 = vxor.u32 %v2311, 2147483648
    %v2344 = vxor.u32 %v2312, 2147483648
    %v2345 = vxor.u32 %v2313, 2147483648
    %v2346 = vxor.u32 %v2314, 2147483648
    %v2347 = vxor.u32 %v2315, 2147483648
    %v2348 = vxor.u32 %v2316, 2147483648
    %v2349 = vxor.u32 %v2317, 2147483648
    %v2350 = vxor.u32 %v2318, 2147483648
    %v2351 = vxor.u32 %v2319, 2147483648
    %v2352 = vxor.u32 %v2320, 2147483648
    %v2353 = vmul.f32 %v2321, 1.442695
    %v2354 = vpow.pop %v2353
    %v2355 = vmul.f32 %v2322, 1.442695
    %v2356 = vpow.pop %v2355
    %v2357 = vmul.f32 %v2323, 1.442695
    %v2358 = vpow.pop %v2357
    %v2359 = vmul.f32 %v2324, 1.442695
    %v2360 = vpow.pop %v2359
    %v2361 = vmul.f32 %v2325, 1.442695
    %v2362 = vpow.pop %v2361
    %v2363 = vmul.f32 %v2326, 1.442695
    %v2364 = vpow.pop %v2363
    %v2365 = vmul.f32 %v2327, 1.442695
    %v2366 = vpow.pop %v2365
    %v2367 = vmul.f32 %v2328, 1.442695
    %v2368 = vpow.pop %v2367
    %v2369 = vmul.f32 %v2329, 1.442695
    %v2370 = vpow.pop %v2369
    %v2371 = vmul.f32 %v2330, 1.442695
    %v2372 = vpow.pop %v2371
    %v2373 = vmul.f32 %v2331, 1.442695
    %v2374 = vpow.pop %v2373
    %v2375 = vmul.f32 %v2332, 1.442695
    %v2376 = vpow.pop %v2375
    %v2377 = vmul.f32 %v2333, 1.442695
    %v2378 = vpow.pop %v2377
    %v2379 = vmul.f32 %v2334, 1.442695
    %v2380 = vpow.pop %v2379
    %v2381 = vmul.f32 %v2335, 1.442695
    %v2382 = vpow.pop %v2381
    %v2383 = vmul.f32 %v2336, 1.442695
    %v2384 = vpow.pop %v2383
    %v2385 = vmul.f32 %v2337, 1.442695
    %v2386 = vpow.pop %v2385
    %v2387 = vmul.f32 %v2338, 1.442695
    %v2388 = vpow.pop %v2387
    %v2389 = vmul.f32 %v2339, 1.442695
    %v2390 = vpow.pop %v2389
    %v2391 = vmul.f32 %v2340, 1.442695
    %v2392 = vpow.pop %v2391
    %v2393 = vmul.f32 %v2341, 1.442695
    %v2394 = vpow.pop %v2393
    %v2395 = vmul.f32 %v2342, 1.442695
    %v2396 = vpow.pop %v2395
    %v2397 = vmul.f32 %v2343, 1.442695
    %v2398 = vpow.pop %v2397
    %v2399 = vmul.f32 %v2344, 1.442695
    %v2400 = vpow.pop %v2399
    %v2401 = vmul.f32 %v2345, 1.442695
    %v2402 = vpow.pop %v2401
    %v2403 = vmul.f32 %v2346, 1.442695
    %v2404 = vpow.pop %v2403
    %v2405 = vmul.f32 %v2347, 1.442695
    %v2406 = vpow.pop %v2405
    %v2407 = vmul.f32 %v2348, 1.442695
    %v2408 = vpow.pop %v2407
    %v2409 = vmul.f32 %v2349, 1.442695
    %v2410 = vpow.pop %v2409
    %v2411 = vmul.f32 %v2350, 1.442695
    %v2412 = vpow.pop %v2411
    %v2413 = vmul.f32 %v2351, 1.442695
    %v2414 = vpow.pop %v2413
    %v2415 = vmul.f32 %v2352, 1.442695
    %v2416 = vpow.pop %v2415
    %v2417 = vadd.f32 %v2354, 1.0
    %v2418 = vadd.f32 %v2356, 1.0
    %v2419 = vadd.f32 %v2358, 1.0
    %v2420 = vadd.f32 %v2360, 1.0
    %v2421 = vadd.f32 %v2362, 1.0
    %v2422 = vadd.f32 %v2364, 1.0
    %v2423 = vadd.f32 %v2366, 1.0
    %v2424 = vadd.f32 %v2368, 1.0
    %v2425 = vadd.f32 %v2370, 1.0
    %v2426 = vadd.f32 %v2372, 1.0
    %v2427 = vadd.f32 %v2374, 1.0
    %v2428 = vadd.f32 %v2376, 1.0
    %v2429 = vadd.f32 %v2378, 1.0
    %v2430 = vadd.f32 %v2380, 1.0
    %v2431 = vadd.f32 %v2382, 1.0
    %v2432 = vadd.f32 %v2384, 1.0
    %v2433 = vadd.f32 %v2386, 1.0
    %v2434 = vadd.f32 %v2388, 1.0
    %v2435 = vadd.f32 %v2390, 1.0
    %v2436 = vadd.f32 %v2392, 1.0
    %v2437 = vadd.f32 %v2394, 1.0
    %v2438 = vadd.f32 %v2396, 1.0
    %v2439 = vadd.f32 %v2398, 1.0
    %v2440 = vadd.f32 %v2400, 1.0
    %v2441 = vadd.f32 %v2402, 1.0
    %v2442 = vadd.f32 %v2404, 1.0
    %v2443 = vadd.f32 %v2406, 1.0
    %v2444 = vadd.f32 %v2408, 1.0
    %v2445 = vadd.f32 %v2410, 1.0
    %v2446 = vadd.f32 %v2412, 1.0
    %v2447 = vadd.f32 %v2414, 1.0
    %v2448 = vadd.f32 %v2416, 1.0
    %v2449 = vrcp.pop %v2417
    %v2450 = vmul.f32 1.0, %v2449
    %v2451 = vrcp.pop %v2418
    %v2452 = vmul.f32 1.0, %v2451
    %v2453 = vrcp.pop %v2419
    %v2454 = vmul.f32 1.0, %v2453
    %v2455 = vrcp.pop %v2420
    %v2456 = vmul.f32 1.0, %v2455
    %v2457 = vrcp.pop %v2421
    %v2458 = vmul.f32 1.0, %v2457
    %v2459 = vrcp.pop %v2422
    %v2460 = vmul.f32 1.0, %v2459
    %v2461 = vrcp.pop %v2423
    %v2462 = vmul.f32 1.0, %v2461
    %v2463 = vrcp.pop %v2424
    %v2464 = vmul.f32 1.0, %v2463
    %v2465 = vrcp.pop %v2425
    %v2466 = vmul.f32 1.0, %v2465
    %v2467 = vrcp.pop %v2426
    %v2468 = vmul.f32 1.0, %v2467
    %v2469 = vrcp.pop %v2427
    %v2470 = vmul.f32 1.0, %v2469
    %v2471 = vrcp.pop %v2428
    %v2472 = vmul.f32 1.0, %v2471
    %v2473 = vrcp.pop %v2429
    %v2474 = vmul.f32 1.0, %v2473
    %v2475 = vrcp.pop %v2430
    %v2476 = vmul.f32 1.0, %v2475
    %v2477 = vrcp.pop %v2431
    %v2478 = vmul.f32 1.0, %v2477
    %v2479 = vrcp.pop %v2432
    %v2480 = vmul.f32 1.0, %v2479
    %v2481 = vrcp.pop %v2433
    %v2482 = vmul.f32 1.0, %v2481
    %v2483 = vrcp.pop %v2434
    %v2484 = vmul.f32 1.0, %v2483
    %v2485 = vrcp.pop %v2435
    %v2486 = vmul.f32 1.0, %v2485
    %v2487 = vrcp.pop %v2436
    %v2488 = vmul.f32 1.0, %v2487
    %v2489 = vrcp.pop %v2437
    %v2490 = vmul.f32 1.0, %v2489
    %v2491 = vrcp.pop %v2438
    %v2492 = vmul.f32 1.0, %v2491
    %v2493 = vrcp.pop %v2439
    %v2494 = vmul.f32 1.0, %v2493
    %v2495 = vrcp.pop %v2440
    %v2496 = vmul.f32 1.0, %v2495
    %v2497 = vrcp.pop %v2441
    %v2498 = vmul.f32 1.0, %v2497
    %v2499 = vrcp.pop %v2442
    %v2500 = vmul.f32 1.0, %v2499
    %v2501 = vrcp.pop %v2443
    %v2502 = vmul.f32 1.0, %v2501
    %v2503 = vrcp.pop %v2444
    %v2504 = vmul.f32 1.0, %v2503
    %v2505 = vrcp.pop %v2445
    %v2506 = vmul.f32 1.0, %v2505
    %v2507 = vrcp.pop %v2446
    %v2508 = vmul.f32 1.0, %v2507
    %v2509 = vrcp.pop %v2447
    %v2510 = vmul.f32 1.0, %v2509
    %v2511 = vrcp.pop %v2448
    %v2512 = vmul.f32 1.0, %v2511
    %2545 = vrot.lane.b32.xlu0 %v111, 32
    %v2546 = vpop.permute.xlu0 %2545
    %2547 = vrot.lane.b32.xlu0 %v112, 32
    %v2548 = vpop.permute.xlu0 %2547
    %2549 = vrot.lane.b32.xlu0 %v113, 32
    %v2550 = vpop.permute.xlu0 %2549
    %2551 = vrot.lane.b32.xlu0 %v114, 32
    %v2552 = vpop.permute.xlu0 %2551
    %2553 = vrot.lane.b32.xlu0 %v115, 32
    %v2554 = vpop.permute.xlu0 %2553
    %2555 = vrot.lane.b32.xlu0 %v116, 32
    %v2556 = vpop.permute.xlu0 %2555
    %2557 = vrot.lane.b32.xlu0 %v117, 32
    %v2558 = vpop.permute.xlu0 %2557
    %2559 = vrot.lane.b32.xlu0 %v118, 32
    %v2560 = vpop.permute.xlu0 %2559
    %2561 = vrot.lane.b32.xlu0 %v119, 32
    %v2562 = vpop.permute.xlu0 %2561
    %2563 = vrot.lane.b32.xlu0 %v120, 32
    %v2564 = vpop.permute.xlu0 %2563
    %2565 = vrot.lane.b32.xlu0 %v121, 32
    %v2566 = vpop.permute.xlu0 %2565
    %2567 = vrot.lane.b32.xlu0 %v122, 32
    %v2568 = vpop.permute.xlu0 %2567
    %2569 = vrot.lane.b32.xlu0 %v123, 32
    %v2570 = vpop.permute.xlu0 %2569
    %2571 = vrot.lane.b32.xlu0 %v124, 32
    %v2572 = vpop.permute.xlu0 %2571
    %2573 = vrot.lane.b32.xlu0 %v125, 32
    %v2574 = vpop.permute.xlu0 %2573
    %2575 = vrot.lane.b32.xlu0 %v126, 32
    %v2576 = vpop.permute.xlu0 %2575
    %2577 = vrot.lane.b32.xlu0 %v127, 32
    %v2578 = vpop.permute.xlu0 %2577
    %2579 = vrot.lane.b32.xlu0 %v128, 32
    %v2580 = vpop.permute.xlu0 %2579
    %2581 = vrot.lane.b32.xlu0 %v129, 32
    %v2582 = vpop.permute.xlu0 %2581
    %2583 = vrot.lane.b32.xlu0 %v130, 32
    %v2584 = vpop.permute.xlu0 %2583
    %2585 = vrot.lane.b32.xlu0 %v131, 32
    %v2586 = vpop.permute.xlu0 %2585
    %2587 = vrot.lane.b32.xlu0 %v132, 32
    %v2588 = vpop.permute.xlu0 %2587
    %2589 = vrot.lane.b32.xlu0 %v133, 32
    %v2590 = vpop.permute.xlu0 %2589
    %2591 = vrot.lane.b32.xlu0 %v134, 32
    %v2592 = vpop.permute.xlu0 %2591
    %2593 = vrot.lane.b32.xlu0 %v135, 32
    %v2594 = vpop.permute.xlu0 %2593
    %2595 = vrot.lane.b32.xlu0 %v136, 32
    %v2596 = vpop.permute.xlu0 %2595
    %2597 = vrot.lane.b32.xlu0 %v137, 32
    %v2598 = vpop.permute.xlu0 %2597
    %2599 = vrot.lane.b32.xlu0 %v138, 32
    %v2600 = vpop.permute.xlu0 %2599
    %2601 = vrot.lane.b32.xlu0 %v139, 32
    %v2602 = vpop.permute.xlu0 %2601
    %2603 = vrot.lane.b32.xlu0 %v140, 32
    %v2604 = vpop.permute.xlu0 %2603
    %2605 = vrot.lane.b32.xlu0 %v141, 32
    %v2606 = vpop.permute.xlu0 %2605
    %2607 = vrot.lane.b32.xlu0 %v142, 32
    %v2608 = vpop.permute.xlu0 %2607
    %v2641 = vmul.f32 %v2450, %v2546
    %v2642 = vmul.f32 %v2452, %v2548
    %v2643 = vmul.f32 %v2454, %v2550
    %v2644 = vmul.f32 %v2456, %v2552
    %v2645 = vmul.f32 %v2458, %v2554
    %v2646 = vmul.f32 %v2460, %v2556
    %v2647 = vmul.f32 %v2462, %v2558
    %v2648 = vmul.f32 %v2464, %v2560
    %v2649 = vmul.f32 %v2466, %v2562
    %v2650 = vmul.f32 %v2468, %v2564
    %v2651 = vmul.f32 %v2470, %v2566
    %v2652 = vmul.f32 %v2472, %v2568
    %v2653 = vmul.f32 %v2474, %v2570
    %v2654 = vmul.f32 %v2476, %v2572
    %v2655 = vmul.f32 %v2478, %v2574
    %v2656 = vmul.f32 %v2480, %v2576
    %v2657 = vmul.f32 %v2482, %v2578
    %v2658 = vmul.f32 %v2484, %v2580
    %v2659 = vmul.f32 %v2486, %v2582
    %v2660 = vmul.f32 %v2488, %v2584
    %v2661 = vmul.f32 %v2490, %v2586
    %v2662 = vmul.f32 %v2492, %v2588
    %v2663 = vmul.f32 %v2494, %v2590
    %v2664 = vmul.f32 %v2496, %v2592
    %v2665 = vmul.f32 %v2498, %v2594
    %v2666 = vmul.f32 %v2500, %v2596
    %v2667 = vmul.f32 %v2502, %v2598
    %v2668 = vmul.f32 %v2504, %v2600
    %v2669 = vmul.f32 %v2506, %v2602
    %v2670 = vmul.f32 %v2508, %v2604
    %v2671 = vmul.f32 %v2510, %v2606
    %v2672 = vmul.f32 %v2512, %v2608
    %v2673 = vpack.c.bf16 %v2642, %v2641
    %v2674 = vpack.c.bf16 %v2644, %v2643
    %v2675 = vpack.c.bf16 %v2646, %v2645
    %v2676 = vpack.c.bf16 %v2648, %v2647
    %v2677 = vpack.c.bf16 %v2650, %v2649
    %v2678 = vpack.c.bf16 %v2652, %v2651
    %v2679 = vpack.c.bf16 %v2654, %v2653
    %v2680 = vpack.c.bf16 %v2656, %v2655
    %v2681 = vpack.c.bf16 %v2658, %v2657
    %v2682 = vpack.c.bf16 %v2660, %v2659
    %v2683 = vpack.c.bf16 %v2662, %v2661
    %v2684 = vpack.c.bf16 %v2664, %v2663
    %v2685 = vpack.c.bf16 %v2666, %v2665
    %v2686 = vpack.c.bf16 %v2668, %v2667
    %v2687 = vpack.c.bf16 %v2670, %v2669
    %v2688 = vpack.c.bf16 %v2672, %v2671
    %v2697 = vrot.slane %v2673, 7
    %v2698 = vrot.slane %v2674, 7
    %v2699 = vrot.slane %v2675, 7
    %v2700 = vrot.slane %v2676, 7
    %v2701 = vrot.slane %v2677, 7
    %v2702 = vrot.slane %v2678, 7
    %v2703 = vrot.slane %v2679, 7
    %v2704 = vrot.slane %v2680, 7
    %2705 = vrot.lane.b32.xlu0 %v2697, 96
    %v2706 = vpop.permute.xlu0 %2705
    %2707 = vrot.lane.b32.xlu0 %v2698, 96
    %v2708 = vpop.permute.xlu0 %2707
    %2709 = vrot.lane.b32.xlu0 %v2699, 96
    %v2710 = vpop.permute.xlu0 %2709
    %2711 = vrot.lane.b32.xlu0 %v2700, 96
    %v2712 = vpop.permute.xlu0 %2711
    %2713 = vrot.lane.b32.xlu0 %v2701, 96
    %v2714 = vpop.permute.xlu0 %2713
    %2715 = vrot.lane.b32.xlu0 %v2702, 96
    %v2716 = vpop.permute.xlu0 %2715
    %2717 = vrot.lane.b32.xlu0 %v2703, 96
    %v2718 = vpop.permute.xlu0 %2717
    %2719 = vrot.lane.b32.xlu0 %v2704, 96
    %v2720 = vpop.permute.xlu0 %2719
    %v2722 = vsel %vm223, 0, %v2706
    %v2724 = vsel %vm223, 0, %v2708
    %v2726 = vsel %vm223, 0, %v2710
    %v2728 = vsel %vm223, 0, %v2712
    %v2730 = vsel %vm223, 0, %v2714
    %v2732 = vsel %vm223, 0, %v2716
    %v2734 = vsel %vm223, 0, %v2718
    %v2736 = vsel %vm223, 0, %v2720
    %v2737 = vsel %vm223, %v2706, 0
    %v2738 = vsel %vm223, %v2708, 0
    %v2739 = vsel %vm223, %v2710, 0
    %v2740 = vsel %vm223, %v2712, 0
    %v2741 = vsel %vm223, %v2714, 0
    %v2742 = vsel %vm223, %v2716, 0
    %v2743 = vsel %vm223, %v2718, 0
    %v2744 = vsel %vm223, %v2720, 0
    %v2745 = vshrl.u32 %v2722, 16
    %v2747 = vshll.u32 %v2722, 16
    %v2749 = vrot.slane %v2747, 1
    %v2750 = vor.u32 %v2745, %v2749
    %v2751 = vshll.u32 %v2737, 16
    %v2753 = vrot.slane %v2751, 1
    %v2754 = vsel %vm249, %v2750, %v2753
    %v2755 = vshrl.u32 %v2724, 16
    %v2757 = vshll.u32 %v2724, 16
    %v2759 = vrot.slane %v2757, 1
    %v2760 = vor.u32 %v2755, %v2759
    %v2761 = vshll.u32 %v2738, 16
    %v2763 = vrot.slane %v2761, 1
    %v2764 = vsel %vm249, %v2760, %v2763
    %v2765 = vshrl.u32 %v2726, 16
    %v2767 = vshll.u32 %v2726, 16
    %v2769 = vrot.slane %v2767, 1
    %v2770 = vor.u32 %v2765, %v2769
    %v2771 = vshll.u32 %v2739, 16
    %v2773 = vrot.slane %v2771, 1
    %v2774 = vsel %vm249, %v2770, %v2773
    %v2775 = vshrl.u32 %v2728, 16
    %v2777 = vshll.u32 %v2728, 16
    %v2779 = vrot.slane %v2777, 1
    %v2780 = vor.u32 %v2775, %v2779
    %v2781 = vshll.u32 %v2740, 16
    %v2783 = vrot.slane %v2781, 1
    %v2784 = vsel %vm249, %v2780, %v2783
    %v2785 = vshrl.u32 %v2730, 16
    %v2787 = vshll.u32 %v2730, 16
    %v2789 = vrot.slane %v2787, 1
    %v2790 = vor.u32 %v2785, %v2789
    %v2791 = vshll.u32 %v2741, 16
    %v2793 = vrot.slane %v2791, 1
    %v2794 = vsel %vm249, %v2790, %v2793
    %v2795 = vshrl.u32 %v2732, 16
    %v2797 = vshll.u32 %v2732, 16
    %v2799 = vrot.slane %v2797, 1
    %v2800 = vor.u32 %v2795, %v2799
    %v2801 = vshll.u32 %v2742, 16
    %v2803 = vrot.slane %v2801, 1
    %v2804 = vsel %vm249, %v2800, %v2803
    %v2805 = vshrl.u32 %v2734, 16
    %v2807 = vshll.u32 %v2734, 16
    %v2809 = vrot.slane %v2807, 1
    %v2810 = vor.u32 %v2805, %v2809
    %v2811 = vshll.u32 %v2743, 16
    %v2813 = vrot.slane %v2811, 1
    %v2814 = vsel %vm249, %v2810, %v2813
    %v2815 = vshrl.u32 %v2736, 16
    %v2817 = vshll.u32 %v2736, 16
    %v2819 = vrot.slane %v2817, 1
    %v2820 = vor.u32 %v2815, %v2819
    %v2821 = vshll.u32 %v2744, 16
    %v2823 = vrot.slane %v2821, 1
    %v2824 = vsel %vm249, %v2820, %v2823
    %2825 = vrot.lane.b32.xlu0 %v2754, 32
    %v2826 = vpop.permute.xlu0 %2825
    %2827 = vrot.lane.b32.xlu0 %v2764, 32
    %v2828 = vpop.permute.xlu0 %2827
    %2829 = vrot.lane.b32.xlu0 %v2774, 32
    %v2830 = vpop.permute.xlu0 %2829
    %2831 = vrot.lane.b32.xlu0 %v2784, 32
    %v2832 = vpop.permute.xlu0 %2831
    %2833 = vrot.lane.b32.xlu0 %v2794, 32
    %v2834 = vpop.permute.xlu0 %2833
    %2835 = vrot.lane.b32.xlu0 %v2804, 32
    %v2836 = vpop.permute.xlu0 %2835
    %2837 = vrot.lane.b32.xlu0 %v2814, 32
    %v2838 = vpop.permute.xlu0 %2837
    %2839 = vrot.lane.b32.xlu0 %v2824, 32
    %v2840 = vpop.permute.xlu0 %2839
    %v2857 = vrot.slane %v2722, 1
    %v2858 = vrot.slane %v2737, 1
    %v2859 = vsel %vm362, %v2857, %v2858
    %v2860 = vrot.slane %v2724, 1
    %v2861 = vrot.slane %v2738, 1
    %v2862 = vsel %vm362, %v2860, %v2861
    %v2863 = vrot.slane %v2726, 1
    %v2864 = vrot.slane %v2739, 1
    %v2865 = vsel %vm362, %v2863, %v2864
    %v2866 = vrot.slane %v2728, 1
    %v2867 = vrot.slane %v2740, 1
    %v2868 = vsel %vm362, %v2866, %v2867
    %v2869 = vrot.slane %v2730, 1
    %v2870 = vrot.slane %v2741, 1
    %v2871 = vsel %vm362, %v2869, %v2870
    %v2872 = vrot.slane %v2732, 1
    %v2873 = vrot.slane %v2742, 1
    %v2874 = vsel %vm362, %v2872, %v2873
    %v2875 = vrot.slane %v2734, 1
    %v2876 = vrot.slane %v2743, 1
    %v2877 = vsel %vm362, %v2875, %v2876
    %v2878 = vrot.slane %v2736, 1
    %v2879 = vrot.slane %v2744, 1
    %v2880 = vsel %vm362, %v2878, %v2879
    %2881 = vrot.lane.b32.xlu0 %v2859, 64
    %v2882 = vpop.permute.xlu0 %2881
    %2883 = vrot.lane.b32.xlu0 %v2862, 64
    %v2884 = vpop.permute.xlu0 %2883
    %2885 = vrot.lane.b32.xlu0 %v2865, 64
    %v2886 = vpop.permute.xlu0 %2885
    %2887 = vrot.lane.b32.xlu0 %v2868, 64
    %v2888 = vpop.permute.xlu0 %2887
    %2889 = vrot.lane.b32.xlu0 %v2871, 64
    %v2890 = vpop.permute.xlu0 %2889
    %2891 = vrot.lane.b32.xlu0 %v2874, 64
    %v2892 = vpop.permute.xlu0 %2891
    %2893 = vrot.lane.b32.xlu0 %v2877, 64
    %v2894 = vpop.permute.xlu0 %2893
    %2895 = vrot.lane.b32.xlu0 %v2880, 64
    %v2896 = vpop.permute.xlu0 %2895
    %v2897 = vrot.slane %v2745, 1
    %v2898 = vrot.slane %v2747, 2
    %v2899 = vor.u32 %v2897, %v2898
    %v2900 = vshrl.u32 %v2737, 16
    %v2902 = vrot.slane %v2900, 1
    %v2903 = vrot.slane %v2751, 2
    %v2904 = vor.u32 %v2902, %v2903
    %v2905 = vsel %vm403, %v2899, %v2904
    %v2906 = vrot.slane %v2755, 1
    %v2907 = vrot.slane %v2757, 2
    %v2908 = vor.u32 %v2906, %v2907
    %v2909 = vshrl.u32 %v2738, 16
    %v2911 = vrot.slane %v2909, 1
    %v2912 = vrot.slane %v2761, 2
    %v2913 = vor.u32 %v2911, %v2912
    %v2914 = vsel %vm403, %v2908, %v2913
    %v2915 = vrot.slane %v2765, 1
    %v2916 = vrot.slane %v2767, 2
    %v2917 = vor.u32 %v2915, %v2916
    %v2918 = vshrl.u32 %v2739, 16
    %v2920 = vrot.slane %v2918, 1
    %v2921 = vrot.slane %v2771, 2
    %v2922 = vor.u32 %v2920, %v2921
    %v2923 = vsel %vm403, %v2917, %v2922
    %v2924 = vrot.slane %v2775, 1
    %v2925 = vrot.slane %v2777, 2
    %v2926 = vor.u32 %v2924, %v2925
    %v2927 = vshrl.u32 %v2740, 16
    %v2929 = vrot.slane %v2927, 1
    %v2930 = vrot.slane %v2781, 2
    %v2931 = vor.u32 %v2929, %v2930
    %v2932 = vsel %vm403, %v2926, %v2931
    %v2933 = vrot.slane %v2785, 1
    %v2934 = vrot.slane %v2787, 2
    %v2935 = vor.u32 %v2933, %v2934
    %v2936 = vshrl.u32 %v2741, 16
    %v2938 = vrot.slane %v2936, 1
    %v2939 = vrot.slane %v2791, 2
    %v2940 = vor.u32 %v2938, %v2939
    %v2941 = vsel %vm403, %v2935, %v2940
    %v2942 = vrot.slane %v2795, 1
    %v2943 = vrot.slane %v2797, 2
    %v2944 = vor.u32 %v2942, %v2943
    %v2945 = vshrl.u32 %v2742, 16
    %v2947 = vrot.slane %v2945, 1
    %v2948 = vrot.slane %v2801, 2
    %v2949 = vor.u32 %v2947, %v2948
    %v2950 = vsel %vm403, %v2944, %v2949
    %v2951 = vrot.slane %v2805, 1
    %v2952 = vrot.slane %v2807, 2
    %v2953 = vor.u32 %v2951, %v2952
    %v2954 = vshrl.u32 %v2743, 16
    %v2956 = vrot.slane %v2954, 1
    %v2957 = vrot.slane %v2811, 2
    %v2958 = vor.u32 %v2956, %v2957
    %v2959 = vsel %vm403, %v2953, %v2958
    %v2960 = vrot.slane %v2815, 1
    %v2961 = vrot.slane %v2817, 2
    %v2962 = vor.u32 %v2960, %v2961
    %v2963 = vshrl.u32 %v2744, 16
    %v2965 = vrot.slane %v2963, 1
    %v2966 = vrot.slane %v2821, 2
    %v2967 = vor.u32 %v2965, %v2966
    %v2968 = vsel %vm403, %v2962, %v2967
    %2969 = vrot.lane.b32.xlu0 %v2905, 96
    %v2970 = vpop.permute.xlu0 %2969
    %2971 = vrot.lane.b32.xlu0 %v2914, 96
    %v2972 = vpop.permute.xlu0 %2971
    %2973 = vrot.lane.b32.xlu0 %v2923, 96
    %v2974 = vpop.permute.xlu0 %2973
    %2975 = vrot.lane.b32.xlu0 %v2932, 96
    %v2976 = vpop.permute.xlu0 %2975
    %2977 = vrot.lane.b32.xlu0 %v2941, 96
    %v2978 = vpop.permute.xlu0 %2977
    %2979 = vrot.lane.b32.xlu0 %v2950, 96
    %v2980 = vpop.permute.xlu0 %2979
    %2981 = vrot.lane.b32.xlu0 %v2959, 96
    %v2982 = vpop.permute.xlu0 %2981
    %2983 = vrot.lane.b32.xlu0 %v2968, 96
    %v2984 = vpop.permute.xlu0 %2983
    %v2985 = vrot.slane %v2722, 2
    %v2986 = vrot.slane %v2737, 2
    %v2987 = vsel %vm492, %v2985, %v2986
    %v2988 = vrot.slane %v2724, 2
    %v2989 = vrot.slane %v2738, 2
    %v2990 = vsel %vm492, %v2988, %v2989
    %v2991 = vrot.slane %v2726, 2
    %v2992 = vrot.slane %v2739, 2
    %v2993 = vsel %vm492, %v2991, %v2992
    %v2994 = vrot.slane %v2728, 2
    %v2995 = vrot.slane %v2740, 2
    %v2996 = vsel %vm492, %v2994, %v2995
    %v2997 = vrot.slane %v2730, 2
    %v2998 = vrot.slane %v2741, 2
    %v2999 = vsel %vm492, %v2997, %v2998
    %v3000 = vrot.slane %v2732, 2
    %v3001 = vrot.slane %v2742, 2
    %v3002 = vsel %vm492, %v3000, %v3001
    %v3003 = vrot.slane %v2734, 2
    %v3004 = vrot.slane %v2743, 2
    %v3005 = vsel %vm492, %v3003, %v3004
    %v3006 = vrot.slane %v2736, 2
    %v3007 = vrot.slane %v2744, 2
    %v3008 = vsel %vm492, %v3006, %v3007
    %v3010 = vsel %vm517, %v2722, %v2826
    %v3012 = vsel %vm517, %v2724, %v2828
    %v3014 = vsel %vm517, %v2726, %v2830
    %v3016 = vsel %vm517, %v2728, %v2832
    %v3018 = vsel %vm517, %v2730, %v2834
    %v3020 = vsel %vm517, %v2732, %v2836
    %v3022 = vsel %vm517, %v2734, %v2838
    %v3024 = vsel %vm517, %v2736, %v2840
    %v3026 = vsel %vm534, %v3010, %v2882
    %v3028 = vsel %vm534, %v3012, %v2884
    %v3030 = vsel %vm534, %v3014, %v2886
    %v3032 = vsel %vm534, %v3016, %v2888
    %v3034 = vsel %vm534, %v3018, %v2890
    %v3036 = vsel %vm534, %v3020, %v2892
    %v3038 = vsel %vm534, %v3022, %v2894
    %v3040 = vsel %vm534, %v3024, %v2896
    %v3042 = vsel %vm551, %v3026, %v2970
    %v3045 = vsel %vm551, %v3028, %v2972
    %v3048 = vsel %vm551, %v3030, %v2974
    %v3051 = vsel %vm551, %v3032, %v2976
    %v3054 = vsel %vm551, %v3034, %v2978
    %v3057 = vsel %vm551, %v3036, %v2980
    %v3060 = vsel %vm551, %v3038, %v2982
    %v3063 = vsel %vm551, %v3040, %v2984
    %v3073 = vrot.slane %v2681, 7
    %v3074 = vrot.slane %v2682, 7
    %v3075 = vrot.slane %v2683, 7
    %v3076 = vrot.slane %v2684, 7
    %v3077 = vrot.slane %v2685, 7
    %v3078 = vrot.slane %v2686, 7
    %v3079 = vrot.slane %v2687, 7
    %v3080 = vrot.slane %v2688, 7
    %3081 = vrot.lane.b32.xlu0 %v3073, 96
    %v3082 = vpop.permute.xlu0 %3081
    %3083 = vrot.lane.b32.xlu0 %v3074, 96
    %v3084 = vpop.permute.xlu0 %3083
    %3085 = vrot.lane.b32.xlu0 %v3075, 96
    %v3086 = vpop.permute.xlu0 %3085
    %3087 = vrot.lane.b32.xlu0 %v3076, 96
    %v3088 = vpop.permute.xlu0 %3087
    %3089 = vrot.lane.b32.xlu0 %v3077, 96
    %v3090 = vpop.permute.xlu0 %3089
    %3091 = vrot.lane.b32.xlu0 %v3078, 96
    %v3092 = vpop.permute.xlu0 %3091
    %3093 = vrot.lane.b32.xlu0 %v3079, 96
    %v3094 = vpop.permute.xlu0 %3093
    %3095 = vrot.lane.b32.xlu0 %v3080, 96
    %v3096 = vpop.permute.xlu0 %3095
    %v3098 = vsel %vm223, 0, %v3082
    %v3100 = vsel %vm223, 0, %v3084
    %v3102 = vsel %vm223, 0, %v3086
    %v3104 = vsel %vm223, 0, %v3088
    %v3106 = vsel %vm223, 0, %v3090
    %v3108 = vsel %vm223, 0, %v3092
    %v3110 = vsel %vm223, 0, %v3094
    %v3112 = vsel %vm223, 0, %v3096
    %v3113 = vsel %vm223, %v3082, 0
    %v3114 = vsel %vm223, %v3084, 0
    %v3115 = vsel %vm223, %v3086, 0
    %v3116 = vsel %vm223, %v3088, 0
    %v3117 = vsel %vm223, %v3090, 0
    %v3118 = vsel %vm223, %v3092, 0
    %v3119 = vsel %vm223, %v3094, 0
    %v3120 = vsel %vm223, %v3096, 0
    %v3121 = vshrl.u32 %v3098, 16
    %v3123 = vshll.u32 %v3098, 16
    %v3125 = vrot.slane %v3123, 1
    %v3126 = vor.u32 %v3121, %v3125
    %v3127 = vshll.u32 %v3113, 16
    %v3129 = vrot.slane %v3127, 1
    %v3130 = vsel %vm249, %v3126, %v3129
    %v3131 = vshrl.u32 %v3100, 16
    %v3133 = vshll.u32 %v3100, 16
    %v3135 = vrot.slane %v3133, 1
    %v3136 = vor.u32 %v3131, %v3135
    %v3137 = vshll.u32 %v3114, 16
    %v3139 = vrot.slane %v3137, 1
    %v3140 = vsel %vm249, %v3136, %v3139
    %v3141 = vshrl.u32 %v3102, 16
    %v3143 = vshll.u32 %v3102, 16
    %v3145 = vrot.slane %v3143, 1
    %v3146 = vor.u32 %v3141, %v3145
    %v3147 = vshll.u32 %v3115, 16
    %v3149 = vrot.slane %v3147, 1
    %v3150 = vsel %vm249, %v3146, %v3149
    %v3151 = vshrl.u32 %v3104, 16
    %v3153 = vshll.u32 %v3104, 16
    %v3155 = vrot.slane %v3153, 1
    %v3156 = vor.u32 %v3151, %v3155
    %v3157 = vshll.u32 %v3116, 16
    %v3159 = vrot.slane %v3157, 1
    %v3160 = vsel %vm249, %v3156, %v3159
    %v3161 = vshrl.u32 %v3106, 16
    %v3163 = vshll.u32 %v3106, 16
    %v3165 = vrot.slane %v3163, 1
    %v3166 = vor.u32 %v3161, %v3165
    %v3167 = vshll.u32 %v3117, 16
    %v3169 = vrot.slane %v3167, 1
    %v3170 = vsel %vm249, %v3166, %v3169
    %v3171 = vshrl.u32 %v3108, 16
    %v3173 = vshll.u32 %v3108, 16
    %v3175 = vrot.slane %v3173, 1
    %v3176 = vor.u32 %v3171, %v3175
    %v3177 = vshll.u32 %v3118, 16
    %v3179 = vrot.slane %v3177, 1
    %v3180 = vsel %vm249, %v3176, %v3179
    %v3181 = vshrl.u32 %v3110, 16
    %v3183 = vshll.u32 %v3110, 16
    %v3185 = vrot.slane %v3183, 1
    %v3186 = vor.u32 %v3181, %v3185
    %v3187 = vshll.u32 %v3119, 16
    %v3189 = vrot.slane %v3187, 1
    %v3190 = vsel %vm249, %v3186, %v3189
    %v3191 = vshrl.u32 %v3112, 16
    %v3193 = vshll.u32 %v3112, 16
    %v3195 = vrot.slane %v3193, 1
    %v3196 = vor.u32 %v3191, %v3195
    %v3197 = vshll.u32 %v3120, 16
    %v3199 = vrot.slane %v3197, 1
    %v3200 = vsel %vm249, %v3196, %v3199
    %3201 = vrot.lane.b32.xlu0 %v3130, 32
    %v3202 = vpop.permute.xlu0 %3201
    %3203 = vrot.lane.b32.xlu0 %v3140, 32
    %v3204 = vpop.permute.xlu0 %3203
    %3205 = vrot.lane.b32.xlu0 %v3150, 32
    %v3206 = vpop.permute.xlu0 %3205
    %3207 = vrot.lane.b32.xlu0 %v3160, 32
    %v3208 = vpop.permute.xlu0 %3207
    %3209 = vrot.lane.b32.xlu0 %v3170, 32
    %v3210 = vpop.permute.xlu0 %3209
    %3211 = vrot.lane.b32.xlu0 %v3180, 32
    %v3212 = vpop.permute.xlu0 %3211
    %3213 = vrot.lane.b32.xlu0 %v3190, 32
    %v3214 = vpop.permute.xlu0 %3213
    %3215 = vrot.lane.b32.xlu0 %v3200, 32
    %v3216 = vpop.permute.xlu0 %3215
    %v3233 = vrot.slane %v3098, 1
    %v3234 = vrot.slane %v3113, 1
    %v3235 = vsel %vm362, %v3233, %v3234
    %v3236 = vrot.slane %v3100, 1
    %v3237 = vrot.slane %v3114, 1
    %v3238 = vsel %vm362, %v3236, %v3237
    %v3239 = vrot.slane %v3102, 1
    %v3240 = vrot.slane %v3115, 1
    %v3241 = vsel %vm362, %v3239, %v3240
    %v3242 = vrot.slane %v3104, 1
    %v3243 = vrot.slane %v3116, 1
    %v3244 = vsel %vm362, %v3242, %v3243
    %v3245 = vrot.slane %v3106, 1
    %v3246 = vrot.slane %v3117, 1
    %v3247 = vsel %vm362, %v3245, %v3246
    %v3248 = vrot.slane %v3108, 1
    %v3249 = vrot.slane %v3118, 1
    %v3250 = vsel %vm362, %v3248, %v3249
    %v3251 = vrot.slane %v3110, 1
    %v3252 = vrot.slane %v3119, 1
    %v3253 = vsel %vm362, %v3251, %v3252
    %v3254 = vrot.slane %v3112, 1
    %v3255 = vrot.slane %v3120, 1
    %v3256 = vsel %vm362, %v3254, %v3255
    %3257 = vrot.lane.b32.xlu0 %v3235, 64
    %v3258 = vpop.permute.xlu0 %3257
    %3259 = vrot.lane.b32.xlu0 %v3238, 64
    %v3260 = vpop.permute.xlu0 %3259
    %3261 = vrot.lane.b32.xlu0 %v3241, 64
    %v3262 = vpop.permute.xlu0 %3261
    %3263 = vrot.lane.b32.xlu0 %v3244, 64
    %v3264 = vpop.permute.xlu0 %3263
    %3265 = vrot.lane.b32.xlu0 %v3247, 64
    %v3266 = vpop.permute.xlu0 %3265
    %3267 = vrot.lane.b32.xlu0 %v3250, 64
    %v3268 = vpop.permute.xlu0 %3267
    %3269 = vrot.lane.b32.xlu0 %v3253, 64
    %v3270 = vpop.permute.xlu0 %3269
    %3271 = vrot.lane.b32.xlu0 %v3256, 64
    %v3272 = vpop.permute.xlu0 %3271
    %v3273 = vrot.slane %v3121, 1
    %v3274 = vrot.slane %v3123, 2
    %v3275 = vor.u32 %v3273, %v3274
    %v3276 = vshrl.u32 %v3113, 16
    %v3278 = vrot.slane %v3276, 1
    %v3279 = vrot.slane %v3127, 2
    %v3280 = vor.u32 %v3278, %v3279
    %v3281 = vsel %vm403, %v3275, %v3280
    %v3282 = vrot.slane %v3131, 1
    %v3283 = vrot.slane %v3133, 2
    %v3284 = vor.u32 %v3282, %v3283
    %v3285 = vshrl.u32 %v3114, 16
    %v3287 = vrot.slane %v3285, 1
    %v3288 = vrot.slane %v3137, 2
    %v3289 = vor.u32 %v3287, %v3288
    %v3290 = vsel %vm403, %v3284, %v3289
    %v3291 = vrot.slane %v3141, 1
    %v3292 = vrot.slane %v3143, 2
    %v3293 = vor.u32 %v3291, %v3292
    %v3294 = vshrl.u32 %v3115, 16
    %v3296 = vrot.slane %v3294, 1
    %v3297 = vrot.slane %v3147, 2
    %v3298 = vor.u32 %v3296, %v3297
    %v3299 = vsel %vm403, %v3293, %v3298
    %v3300 = vrot.slane %v3151, 1
    %v3301 = vrot.slane %v3153, 2
    %v3302 = vor.u32 %v3300, %v3301
    %v3303 = vshrl.u32 %v3116, 16
    %v3305 = vrot.slane %v3303, 1
    %v3306 = vrot.slane %v3157, 2
    %v3307 = vor.u32 %v3305, %v3306
    %v3308 = vsel %vm403, %v3302, %v3307
    %v3309 = vrot.slane %v3161, 1
    %v3310 = vrot.slane %v3163, 2
    %v3311 = vor.u32 %v3309, %v3310
    %v3312 = vshrl.u32 %v3117, 16
    %v3314 = vrot.slane %v3312, 1
    %v3315 = vrot.slane %v3167, 2
    %v3316 = vor.u32 %v3314, %v3315
    %v3317 = vsel %vm403, %v3311, %v3316
    %v3318 = vrot.slane %v3171, 1
    %v3319 = vrot.slane %v3173, 2
    %v3320 = vor.u32 %v3318, %v3319
    %v3321 = vshrl.u32 %v3118, 16
    %v3323 = vrot.slane %v3321, 1
    %v3324 = vrot.slane %v3177, 2
    %v3325 = vor.u32 %v3323, %v3324
    %v3326 = vsel %vm403, %v3320, %v3325
    %v3327 = vrot.slane %v3181, 1
    %v3328 = vrot.slane %v3183, 2
    %v3329 = vor.u32 %v3327, %v3328
    %v3330 = vshrl.u32 %v3119, 16
    %v3332 = vrot.slane %v3330, 1
    %v3333 = vrot.slane %v3187, 2
    %v3334 = vor.u32 %v3332, %v3333
    %v3335 = vsel %vm403, %v3329, %v3334
    %v3336 = vrot.slane %v3191, 1
    %v3337 = vrot.slane %v3193, 2
    %v3338 = vor.u32 %v3336, %v3337
    %v3339 = vshrl.u32 %v3120, 16
    %v3341 = vrot.slane %v3339, 1
    %v3342 = vrot.slane %v3197, 2
    %v3343 = vor.u32 %v3341, %v3342
    %v3344 = vsel %vm403, %v3338, %v3343
    %3345 = vrot.lane.b32.xlu0 %v3281, 96
    %v3346 = vpop.permute.xlu0 %3345
    %3347 = vrot.lane.b32.xlu0 %v3290, 96
    %v3348 = vpop.permute.xlu0 %3347
    %3349 = vrot.lane.b32.xlu0 %v3299, 96
    %v3350 = vpop.permute.xlu0 %3349
    %3351 = vrot.lane.b32.xlu0 %v3308, 96
    %v3352 = vpop.permute.xlu0 %3351
    %3353 = vrot.lane.b32.xlu0 %v3317, 96
    %v3354 = vpop.permute.xlu0 %3353
    %3355 = vrot.lane.b32.xlu0 %v3326, 96
    %v3356 = vpop.permute.xlu0 %3355
    %3357 = vrot.lane.b32.xlu0 %v3335, 96
    %v3358 = vpop.permute.xlu0 %3357
    %3359 = vrot.lane.b32.xlu0 %v3344, 96
    %v3360 = vpop.permute.xlu0 %3359
    %v3361 = vrot.slane %v3098, 2
    %v3362 = vrot.slane %v3113, 2
    %v3363 = vsel %vm492, %v3361, %v3362
    %v3364 = vrot.slane %v3100, 2
    %v3365 = vrot.slane %v3114, 2
    %v3366 = vsel %vm492, %v3364, %v3365
    %v3367 = vrot.slane %v3102, 2
    %v3368 = vrot.slane %v3115, 2
    %v3369 = vsel %vm492, %v3367, %v3368
    %v3370 = vrot.slane %v3104, 2
    %v3371 = vrot.slane %v3116, 2
    %v3372 = vsel %vm492, %v3370, %v3371
    %v3373 = vrot.slane %v3106, 2
    %v3374 = vrot.slane %v3117, 2
    %v3375 = vsel %vm492, %v3373, %v3374
    %v3376 = vrot.slane %v3108, 2
    %v3377 = vrot.slane %v3118, 2
    %v3378 = vsel %vm492, %v3376, %v3377
    %v3379 = vrot.slane %v3110, 2
    %v3380 = vrot.slane %v3119, 2
    %v3381 = vsel %vm492, %v3379, %v3380
    %v3382 = vrot.slane %v3112, 2
    %v3383 = vrot.slane %v3120, 2
    %v3384 = vsel %vm492, %v3382, %v3383
    %v3386 = vsel %vm517, %v3098, %v3202
    %v3388 = vsel %vm517, %v3100, %v3204
    %v3390 = vsel %vm517, %v3102, %v3206
    %v3392 = vsel %vm517, %v3104, %v3208
    %v3394 = vsel %vm517, %v3106, %v3210
    %v3396 = vsel %vm517, %v3108, %v3212
    %v3398 = vsel %vm517, %v3110, %v3214
    %v3400 = vsel %vm517, %v3112, %v3216
    %v3402 = vsel %vm534, %v3386, %v3258
    %v3404 = vsel %vm534, %v3388, %v3260
    %v3406 = vsel %vm534, %v3390, %v3262
    %v3408 = vsel %vm534, %v3392, %v3264
    %v3410 = vsel %vm534, %v3394, %v3266
    %v3412 = vsel %vm534, %v3396, %v3268
    %v3414 = vsel %vm534, %v3398, %v3270
    %v3416 = vsel %vm534, %v3400, %v3272
    %v3418 = vsel %vm551, %v3402, %v3346
    %v3421 = vsel %vm551, %v3404, %v3348
    %v3424 = vsel %vm551, %v3406, %v3350
    %v3427 = vsel %vm551, %v3408, %v3352
    %v3430 = vsel %vm551, %v3410, %v3354
    %v3433 = vsel %vm551, %v3412, %v3356
    %v3436 = vsel %vm551, %v3414, %v3358
    %v3439 = vsel %vm551, %v3416, %v3360
    %v3441 = vld [vmem:[#allocation5] sm:$0xf]
    %v3442 = vld [vmem:[#allocation5 + $0x4] sm:$0xf]
    %v3443 = vld [vmem:[#allocation5 + $0x8] sm:$0xf]
    %v3444 = vld [vmem:[#allocation5 + $0xc] sm:$0xf]
    %v3445 = vld [vmem:[#allocation5 + $0x10] sm:$0xf]
    %v3446 = vld [vmem:[#allocation5 + $0x14] sm:$0xf]
    %v3447 = vld [vmem:[#allocation5 + $0x18] sm:$0xf]
    %v3448 = vld [vmem:[#allocation5 + $0x1c] sm:$0xf]
    %v3449 = vld [vmem:[#allocation5 + $0x20] sm:$0xf]
    %v3450 = vld [vmem:[#allocation5 + $0x24] sm:$0xf]
    %v3451 = vld [vmem:[#allocation5 + $0x28] sm:$0xf]
    %v3452 = vld [vmem:[#allocation5 + $0x2c] sm:$0xf]
    %v3453 = vld [vmem:[#allocation5 + $0x30] sm:$0xf]
    %v3454 = vld [vmem:[#allocation5 + $0x34] sm:$0xf]
    %v3455 = vld [vmem:[#allocation5 + $0x38] sm:$0xf]
    %v3456 = vld [vmem:[#allocation5 + $0x3c] sm:$0xf]
    %v3457 = vld [vmem:[#allocation5 + $0x40] sm:$0xf]
    %v3458 = vld [vmem:[#allocation5 + $0x44] sm:$0xf]
    %v3459 = vld [vmem:[#allocation5 + $0x48] sm:$0xf]
    %v3460 = vld [vmem:[#allocation5 + $0x4c] sm:$0xf]
    %v3481 = vunpack.c.l.b16 %v3441
    %v3482 = vunpack.c.l.b16 %v3442
    %v3483 = vunpack.c.l.b16 %v3443
    %v3484 = vunpack.c.l.b16 %v3444
    %v3485 = vunpack.c.l.b16 %v3445
    %v3486 = vunpack.c.l.b16 %v3446
    %v3487 = vunpack.c.l.b16 %v3447
    %v3488 = vunpack.c.l.b16 %v3448
    %v3489 = vunpack.c.l.b16 %v3449
    %v3490 = vunpack.c.l.b16 %v3450
    %v3491 = vunpack.c.l.b16 %v3451
    %v3492 = vunpack.c.l.b16 %v3452
    %v3493 = vunpack.c.l.b16 %v3453
    %v3494 = vunpack.c.l.b16 %v3454
    %v3495 = vunpack.c.l.b16 %v3455
    %v3496 = vunpack.c.l.b16 %v3456
    %v3497 = vunpack.c.l.b16 %v3457
    %v3498 = vunpack.c.l.b16 %v3458
    %v3499 = vunpack.c.l.b16 %v3459
    %v3500 = vunpack.c.l.b16 %v3460
    %v3501 = vpack.c.b16 %v3482, %v3481
    %v3502 = vpack.c.b16 %v3484, %v3483
    %v3503 = vpack.c.b16 %v3486, %v3485
    %v3504 = vpack.c.b16 %v3488, %v3487
    %v3505 = vpack.c.b16 %v3490, %v3489
    %v3506 = vpack.c.b16 %v3492, %v3491
    %v3507 = vpack.c.b16 %v3494, %v3493
    %v3508 = vpack.c.b16 %v3496, %v3495
    %v3509 = vpack.c.b16 %v3498, %v3497
    %v3510 = vpack.c.b16 %v3500, %v3499
    %3553 = vrot.lane.b32.xlu0 %v1131, 64
    %v3554 = vpop.permute.xlu0 %3553
    %3555 = vrot.lane.b32.xlu0 %v1134, 64
    %v3556 = vpop.permute.xlu0 %3555
    %3557 = vrot.lane.b32.xlu0 %v1139, 64
    %v3558 = vpop.permute.xlu0 %3557
    %3559 = vrot.lane.b32.xlu0 %v1142, 64
    %v3560 = vpop.permute.xlu0 %3559
    %3561 = vrot.lane.b32.xlu0 %v1147, 64
    %v3562 = vpop.permute.xlu0 %3561
    %3563 = vrot.lane.b32.xlu0 %v1150, 64
    %v3564 = vpop.permute.xlu0 %3563
    %3565 = vrot.lane.b32.xlu0 %v1155, 64
    %v3566 = vpop.permute.xlu0 %3565
    %3567 = vrot.lane.b32.xlu0 %v1158, 64
    %v3568 = vpop.permute.xlu0 %3567
    %3569 = vrot.lane.b32.xlu0 %v1163, 64
    %v3570 = vpop.permute.xlu0 %3569
    %3571 = vrot.lane.b32.xlu0 %v1166, 64
    %v3572 = vpop.permute.xlu0 %3571
    %3573 = vrot.lane.b32.xlu0 %v1171, 64
    %v3574 = vpop.permute.xlu0 %3573
    %3575 = vrot.lane.b32.xlu0 %v1174, 64
    %v3576 = vpop.permute.xlu0 %3575
    %3577 = vrot.lane.b32.xlu0 %v1179, 64
    %v3578 = vpop.permute.xlu0 %3577
    %3579 = vrot.lane.b32.xlu0 %v1182, 64
    %v3580 = vpop.permute.xlu0 %3579
    %3581 = vrot.lane.b32.xlu0 %v1187, 64
    %v3582 = vpop.permute.xlu0 %3581
    %3583 = vrot.lane.b32.xlu0 %v1190, 64
    %v3584 = vpop.permute.xlu0 %3583
    %3585 = vrot.lane.b32.xlu0 %v1195, 64
    %v3586 = vpop.permute.xlu0 %3585
    %3587 = vrot.lane.b32.xlu0 %v1198, 64
    %v3588 = vpop.permute.xlu0 %3587
    %3589 = vrot.lane.b32.xlu0 %v1203, 64
    %v3590 = vpop.permute.xlu0 %3589
    %3591 = vrot.lane.b32.xlu0 %v1206, 64
    %v3592 = vpop.permute.xlu0 %3591
    %3593 = vrot.lane.b32.xlu0 %v1211, 64
    %v3594 = vpop.permute.xlu0 %3593
    %3595 = vrot.lane.b32.xlu0 %v1214, 64
    %v3596 = vpop.permute.xlu0 %3595
    %3597 = vrot.lane.b32.xlu0 %v1219, 64
    %v3598 = vpop.permute.xlu0 %3597
    %3599 = vrot.lane.b32.xlu0 %v1222, 64
    %v3600 = vpop.permute.xlu0 %3599
    %3601 = vrot.lane.b32.xlu0 %v1227, 64
    %v3602 = vpop.permute.xlu0 %3601
    %3603 = vrot.lane.b32.xlu0 %v1230, 64
    %v3604 = vpop.permute.xlu0 %3603
    %3605 = vrot.lane.b32.xlu0 %v1235, 64
    %v3606 = vpop.permute.xlu0 %3605
    %3607 = vrot.lane.b32.xlu0 %v1238, 64
    %v3608 = vpop.permute.xlu0 %3607
    %3609 = vrot.lane.b32.xlu0 %v1243, 64
    %v3610 = vpop.permute.xlu0 %3609
    %3611 = vrot.lane.b32.xlu0 %v1246, 64
    %v3612 = vpop.permute.xlu0 %3611
    %3613 = vrot.lane.b32.xlu0 %v1251, 64
    %v3614 = vpop.permute.xlu0 %3613
    %3615 = vrot.lane.b32.xlu0 %v1254, 64
    %v3616 = vpop.permute.xlu0 %3615
    %v3650 = vsel %vm517, %v2987, 0
    %v3653 = vsel %vm517, %v2990, 0
    %v3656 = vsel %vm517, %v2993, 0
    %v3659 = vsel %vm517, %v2996, 0
    %v3662 = vsel %vm517, %v2999, 0
    %v3665 = vsel %vm517, %v3002, 0
    %v3668 = vsel %vm517, %v3005, 0
    %v3671 = vsel %vm517, %v3008, 0
    %v3674 = vsel %vm517, %v3363, 0
    %v3677 = vsel %vm517, %v3366, 0
    %v3680 = vsel %vm517, %v3369, 0
    %v3683 = vsel %vm517, %v3372, 0
    %v3686 = vsel %vm517, %v3375, 0
    %v3689 = vsel %vm517, %v3378, 0
    %v3692 = vsel %vm517, %v3381, 0
    %v3695 = vsel %vm517, %v3384, 0
    %3697 = vmatprep.subr.bf16.mxu0 0
    %3698 = vmatpush1.bf16.msra.mxu0 %v3508
    %3699 = vmatprep.subr.bf16.mxu0 0
    %3700 = vmatpush1.bf16.msra.mxu0 %v3507
    %3701 = vmatprep.subr.bf16.mxu0 0
    %3702 = vmatpush1.bf16.msra.mxu0 %v3506
    %3703 = vmatprep.subr.bf16.mxu0 0
    %3704 = vmatpush1.bf16.msra.mxu0 %v3505
    %3705 = vmatprep.subr.bf16.mxu0 0
    %3706 = vmatpush1.bf16.msra.mxu0 %v3504
    %3707 = vmatprep.subr.bf16.mxu0 0
    %3708 = vmatpush1.bf16.msra.mxu0 %v3503
    %3709 = vmatprep.subr.bf16.mxu0 0
    %3710 = vmatpush1.bf16.msra.mxu0 %v3502
    %3711 = vmatprep.subr.bf16.mxu0 0
    %3712 = vmatpush1.bf16.msra.mxu0 %v3501
    %3713 = vmatprep.subr.bf16.mxu0 0
    %3714 = vmatpush2.bf16.msra.mxu0 0
    %3715 = vmatprep.subr.bf16.mxu0 0
    %3716 = vmatpush2.bf16.msra.mxu0 0
    %3717 = vmatprep.subr.bf16.mxu0 0
    %3718 = vmatpush2.bf16.msra.mxu0 0
    %3719 = vmatprep.subr.bf16.mxu0 0
    %3720 = vmatpush2.bf16.msra.mxu0 0
    %3721 = vmatprep.subr.bf16.mxu0 0
    %3722 = vmatpush2.bf16.msra.mxu0 0
    %3723 = vmatprep.subr.bf16.mxu0 0
    %3724 = vmatpush2.bf16.msra.mxu0 0
    %3725 = vmatprep.subr.bf16.mxu0 0
    %3726 = vmatpush2.bf16.msra.mxu0 %v3510
    %3727 = vmatprep.subr.bf16.mxu0 0
    %3728 = vmatpush2.bf16.msra.mxu0 %v3509
    %3729 = vmatprep.mubr.bf16.mxu0 %v3650
    %3730 = vmatmul.mubr.bf16.gmra.mxu0 %v3042
    %v3731 = vpop.f32.mrf.mxu0
    %v3732 = vadd.f32 %v3554, %v3731
    %v3733 = vpop.f32.mrf.mxu0
    %v3734 = vpop.f32.mrf.mxu0
    %v3735 = vadd.f32 %v3556, %v3734
    %v3736 = vpop.f32.mrf.mxu0
    %3737 = vmatprep.mubr.bf16.mxu0 %v3653
    %3738 = vmatmul.mubr.bf16.gmra.mxu0 %v3045
    %v3739 = vpop.f32.mrf.mxu0
    %v3740 = vadd.f32 %v3558, %v3739
    %v3741 = vpop.f32.mrf.mxu0
    %v3742 = vpop.f32.mrf.mxu0
    %v3743 = vadd.f32 %v3560, %v3742
    %v3744 = vpop.f32.mrf.mxu0
    %3745 = vmatprep.mubr.bf16.mxu0 %v3656
    %3746 = vmatmul.mubr.bf16.gmra.mxu0 %v3048
    %v3747 = vpop.f32.mrf.mxu0
    %v3748 = vadd.f32 %v3562, %v3747
    %v3749 = vpop.f32.mrf.mxu0
    %v3750 = vpop.f32.mrf.mxu0
    %v3751 = vadd.f32 %v3564, %v3750
    %v3752 = vpop.f32.mrf.mxu0
    %3753 = vmatprep.mubr.bf16.mxu0 %v3659
    %3754 = vmatmul.mubr.bf16.gmra.mxu0 %v3051
    %v3755 = vpop.f32.mrf.mxu0
    %v3756 = vadd.f32 %v3566, %v3755
    %v3757 = vpop.f32.mrf.mxu0
    %v3758 = vpop.f32.mrf.mxu0
    %v3759 = vadd.f32 %v3568, %v3758
    %v3760 = vpop.f32.mrf.mxu0
    %3761 = vmatprep.mubr.bf16.mxu0 %v3662
    %3762 = vmatmul.mubr.bf16.gmra.mxu0 %v3054
    %v3763 = vpop.f32.mrf.mxu0
    %v3764 = vadd.f32 %v3570, %v3763
    %v3765 = vpop.f32.mrf.mxu0
    %v3766 = vpop.f32.mrf.mxu0
    %v3767 = vadd.f32 %v3572, %v3766
    %v3768 = vpop.f32.mrf.mxu0
    %3769 = vmatprep.mubr.bf16.mxu0 %v3665
    %3770 = vmatmul.mubr.bf16.gmra.mxu0 %v3057
    %v3771 = vpop.f32.mrf.mxu0
    %v3772 = vadd.f32 %v3574, %v3771
    %v3773 = vpop.f32.mrf.mxu0
    %v3774 = vpop.f32.mrf.mxu0
    %v3775 = vadd.f32 %v3576, %v3774
    %v3776 = vpop.f32.mrf.mxu0
    %3777 = vmatprep.mubr.bf16.mxu0 %v3668
    %3778 = vmatmul.mubr.bf16.gmra.mxu0 %v3060
    %v3779 = vpop.f32.mrf.mxu0
    %v3780 = vadd.f32 %v3578, %v3779
    %v3781 = vpop.f32.mrf.mxu0
    %v3782 = vpop.f32.mrf.mxu0
    %v3783 = vadd.f32 %v3580, %v3782
    %v3784 = vpop.f32.mrf.mxu0
    %3785 = vmatprep.mubr.bf16.mxu0 %v3671
    %3786 = vmatmul.mubr.bf16.gmra.mxu0 %v3063
    %v3787 = vpop.f32.mrf.mxu0
    %v3788 = vadd.f32 %v3582, %v3787
    %v3789 = vpop.f32.mrf.mxu0
    %v3790 = vpop.f32.mrf.mxu0
    %v3791 = vadd.f32 %v3584, %v3790
    %v3792 = vpop.f32.mrf.mxu0
    %3793 = vmatprep.mubr.bf16.mxu0 %v3674
    %3794 = vmatmul.mubr.bf16.gmra.mxu0 %v3418
    %v3795 = vpop.f32.mrf.mxu0
    %v3796 = vadd.f32 %v3586, %v3795
    %v3797 = vpop.f32.mrf.mxu0
    %v3798 = vpop.f32.mrf.mxu0
    %v3799 = vadd.f32 %v3588, %v3798
    %v3800 = vpop.f32.mrf.mxu0
    %3801 = vmatprep.mubr.bf16.mxu0 %v3677
    %3802 = vmatmul.mubr.bf16.gmra.mxu0 %v3421
    %v3803 = vpop.f32.mrf.mxu0
    %v3804 = vadd.f32 %v3590, %v3803
    %v3805 = vpop.f32.mrf.mxu0
    %v3806 = vpop.f32.mrf.mxu0
    %v3807 = vadd.f32 %v3592, %v3806
    %v3808 = vpop.f32.mrf.mxu0
    %3809 = vmatprep.mubr.bf16.mxu0 %v3680
    %3810 = vmatmul.mubr.bf16.gmra.mxu0 %v3424
    %v3811 = vpop.f32.mrf.mxu0
    %v3812 = vadd.f32 %v3594, %v3811
    %v3813 = vpop.f32.mrf.mxu0
    %v3814 = vpop.f32.mrf.mxu0
    %v3815 = vadd.f32 %v3596, %v3814
    %v3816 = vpop.f32.mrf.mxu0
    %3817 = vmatprep.mubr.bf16.mxu0 %v3683
    %3818 = vmatmul.mubr.bf16.gmra.mxu0 %v3427
    %v3819 = vpop.f32.mrf.mxu0
    %v3820 = vadd.f32 %v3598, %v3819
    %v3821 = vpop.f32.mrf.mxu0
    %v3822 = vpop.f32.mrf.mxu0
    %v3823 = vadd.f32 %v3600, %v3822
    %v3824 = vpop.f32.mrf.mxu0
    %3825 = vmatprep.mubr.bf16.mxu0 %v3686
    %3826 = vmatmul.mubr.bf16.gmra.mxu0 %v3430
    %v3827 = vpop.f32.mrf.mxu0
    %v3828 = vadd.f32 %v3602, %v3827
    %v3829 = vpop.f32.mrf.mxu0
    %v3830 = vpop.f32.mrf.mxu0
    %v3831 = vadd.f32 %v3604, %v3830
    %v3832 = vpop.f32.mrf.mxu0
    %3833 = vmatprep.mubr.bf16.mxu0 %v3689
    %3834 = vmatmul.mubr.bf16.gmra.mxu0 %v3433
    %v3835 = vpop.f32.mrf.mxu0
    %v3836 = vadd.f32 %v3606, %v3835
    %v3837 = vpop.f32.mrf.mxu0
    %v3838 = vpop.f32.mrf.mxu0
    %v3839 = vadd.f32 %v3608, %v3838
    %v3840 = vpop.f32.mrf.mxu0
    %3841 = vmatprep.mubr.bf16.mxu0 %v3692
    %3842 = vmatmul.mubr.bf16.gmra.mxu0 %v3436
    %v3843 = vpop.f32.mrf.mxu0
    %v3844 = vadd.f32 %v3610, %v3843
    %v3845 = vpop.f32.mrf.mxu0
    %v3846 = vpop.f32.mrf.mxu0
    %v3847 = vadd.f32 %v3612, %v3846
    %v3848 = vpop.f32.mrf.mxu0
    %3849 = vmatprep.mubr.bf16.mxu0 %v3695
    %3850 = vmatmul.mubr.bf16.gmra.mxu0 %v3439
    %v3851 = vpop.f32.mrf.mxu0
    %v3852 = vadd.f32 %v3614, %v3851
    %v3853 = vpop.f32.mrf.mxu0
    %v3854 = vpop.f32.mrf.mxu0
    %v3855 = vadd.f32 %v3616, %v3854
    %v3856 = vpop.f32.mrf.mxu0
    %3857 = vdwg.mxu0
    %v3858 = vld [vmem:[%s6] sm:$0x1]
    %v3860 = vlaneseq
    %v3861 = vshrl.u32 %v3860, 7
    %v3862 = vsub.s32 0, %v3861
    %v3863 = vrot.slane %v3858, %v3862
    %v3865 = vadd.f32 %v3732, %v3863
    %v3866 = vadd.f32 %v3735, %v3863
    %v3867 = vadd.f32 %v3740, %v3863
    %v3868 = vadd.f32 %v3743, %v3863
    %v3869 = vadd.f32 %v3748, %v3863
    %v3870 = vadd.f32 %v3751, %v3863
    %v3871 = vadd.f32 %v3756, %v3863
    %v3872 = vadd.f32 %v3759, %v3863
    %v3873 = vadd.f32 %v3764, %v3863
    %v3874 = vadd.f32 %v3767, %v3863
    %v3875 = vadd.f32 %v3772, %v3863
    %v3876 = vadd.f32 %v3775, %v3863
    %v3877 = vadd.f32 %v3780, %v3863
    %v3878 = vadd.f32 %v3783, %v3863
    %v3879 = vadd.f32 %v3788, %v3863
    %v3880 = vadd.f32 %v3791, %v3863
    %v3881 = vadd.f32 %v3796, %v3863
    %v3882 = vadd.f32 %v3799, %v3863
    %v3883 = vadd.f32 %v3804, %v3863
    %v3884 = vadd.f32 %v3807, %v3863
    %v3885 = vadd.f32 %v3812, %v3863
    %v3886 = vadd.f32 %v3815, %v3863
    %v3887 = vadd.f32 %v3820, %v3863
    %v3888 = vadd.f32 %v3823, %v3863
    %v3889 = vadd.f32 %v3828, %v3863
    %v3890 = vadd.f32 %v3831, %v3863
    %v3891 = vadd.f32 %v3836, %v3863
    %v3892 = vadd.f32 %v3839, %v3863
    %v3893 = vadd.f32 %v3844, %v3863
    %v3894 = vadd.f32 %v3847, %v3863
    %v3895 = vadd.f32 %v3852, %v3863
    %v3896 = vadd.f32 %v3855, %v3863
    %v3897 = vtanh.pop %v3865
    %v3898 = vtanh.pop %v3866
    %v3899 = vtanh.pop %v3867
    %v3900 = vtanh.pop %v3868
    %v3901 = vtanh.pop %v3869
    %v3902 = vtanh.pop %v3870
    %v3903 = vtanh.pop %v3871
    %v3904 = vtanh.pop %v3872
    %v3905 = vtanh.pop %v3873
    %v3906 = vtanh.pop %v3874
    %v3907 = vtanh.pop %v3875
    %v3908 = vtanh.pop %v3876
    %v3909 = vtanh.pop %v3877
    %v3910 = vtanh.pop %v3878
    %v3911 = vtanh.pop %v3879
    %v3912 = vtanh.pop %v3880
    %v3913 = vtanh.pop %v3881
    %v3914 = vtanh.pop %v3882
    %v3915 = vtanh.pop %v3883
    %v3916 = vtanh.pop %v3884
    %v3917 = vtanh.pop %v3885
    %v3918 = vtanh.pop %v3886
    %v3919 = vtanh.pop %v3887
    %v3920 = vtanh.pop %v3888
    %v3921 = vtanh.pop %v3889
    %v3922 = vtanh.pop %v3890
    %v3923 = vtanh.pop %v3891
    %v3924 = vtanh.pop %v3892
    %v3925 = vtanh.pop %v3893
    %v3926 = vtanh.pop %v3894
    %v3927 = vtanh.pop %v3895
    %v3928 = vtanh.pop %v3896
    %v3929 = vsub.f32 1.0, %v2450
    %v3930 = vsub.f32 1.0, %v2452
    %v3931 = vsub.f32 1.0, %v2454
    %v3932 = vsub.f32 1.0, %v2456
    %v3933 = vsub.f32 1.0, %v2458
    %v3934 = vsub.f32 1.0, %v2460
    %v3935 = vsub.f32 1.0, %v2462
    %v3936 = vsub.f32 1.0, %v2464
    %v3937 = vsub.f32 1.0, %v2466
    %v3938 = vsub.f32 1.0, %v2468
    %v3939 = vsub.f32 1.0, %v2470
    %v3940 = vsub.f32 1.0, %v2472
    %v3941 = vsub.f32 1.0, %v2474
    %v3942 = vsub.f32 1.0, %v2476
    %v3943 = vsub.f32 1.0, %v2478
    %v3944 = vsub.f32 1.0, %v2480
    %v3945 = vsub.f32 1.0, %v2482
    %v3946 = vsub.f32 1.0, %v2484
    %v3947 = vsub.f32 1.0, %v2486
    %v3948 = vsub.f32 1.0, %v2488
    %v3949 = vsub.f32 1.0, %v2490
    %v3950 = vsub.f32 1.0, %v2492
    %v3951 = vsub.f32 1.0, %v2494
    %v3952 = vsub.f32 1.0, %v2496
    %v3953 = vsub.f32 1.0, %v2498
    %v3954 = vsub.f32 1.0, %v2500
    %v3955 = vsub.f32 1.0, %v2502
    %v3956 = vsub.f32 1.0, %v2504
    %v3957 = vsub.f32 1.0, %v2506
    %v3958 = vsub.f32 1.0, %v2508
    %v3959 = vsub.f32 1.0, %v2510
    %v3960 = vsub.f32 1.0, %v2512
    %v3961 = vmul.f32 %v3929, %v111
    %v3962 = vmul.f32 %v3930, %v112
    %v3963 = vmul.f32 %v3931, %v113
    %v3964 = vmul.f32 %v3932, %v114
    %v3965 = vmul.f32 %v3933, %v115
    %v3966 = vmul.f32 %v3934, %v116
    %v3967 = vmul.f32 %v3935, %v117
    %v3968 = vmul.f32 %v3936, %v118
    %v3969 = vmul.f32 %v3937, %v119
    %v3970 = vmul.f32 %v3938, %v120
    %v3971 = vmul.f32 %v3939, %v121
    %v3972 = vmul.f32 %v3940, %v122
    %v3973 = vmul.f32 %v3941, %v123
    %v3974 = vmul.f32 %v3942, %v124
    %v3975 = vmul.f32 %v3943, %v125
    %v3976 = vmul.f32 %v3944, %v126
    %v3977 = vmul.f32 %v3945, %v127
    %v3978 = vmul.f32 %v3946, %v128
    %v3979 = vmul.f32 %v3947, %v129
    %v3980 = vmul.f32 %v3948, %v130
    %v3981 = vmul.f32 %v3949, %v131
    %v3982 = vmul.f32 %v3950, %v132
    %v3983 = vmul.f32 %v3951, %v133
    %v3984 = vmul.f32 %v3952, %v134
    %v3985 = vmul.f32 %v3953, %v135
    %v3986 = vmul.f32 %v3954, %v136
    %v3987 = vmul.f32 %v3955, %v137
    %v3988 = vmul.f32 %v3956, %v138
    %v3989 = vmul.f32 %v3957, %v139
    %v3990 = vmul.f32 %v3958, %v140
    %v3991 = vmul.f32 %v3959, %v141
    %v3992 = vmul.f32 %v3960, %v142
    %v3993 = vmul.f32 %v2450, %v3897
    %v3994 = vmul.f32 %v2452, %v3898
    %v3995 = vmul.f32 %v2454, %v3899
    %v3996 = vmul.f32 %v2456, %v3900
    %v3997 = vmul.f32 %v2458, %v3901
    %v3998 = vmul.f32 %v2460, %v3902
    %v3999 = vmul.f32 %v2462, %v3903
    %v4000 = vmul.f32 %v2464, %v3904
    %v4001 = vmul.f32 %v2466, %v3905
    %v4002 = vmul.f32 %v2468, %v3906
    %v4003 = vmul.f32 %v2470, %v3907
    %v4004 = vmul.f32 %v2472, %v3908
    %v4005 = vmul.f32 %v2474, %v3909
    %v4006 = vmul.f32 %v2476, %v3910
    %v4007 = vmul.f32 %v2478, %v3911
    %v4008 = vmul.f32 %v2480, %v3912
    %v4009 = vmul.f32 %v2482, %v3913
    %v4010 = vmul.f32 %v2484, %v3914
    %v4011 = vmul.f32 %v2486, %v3915
    %v4012 = vmul.f32 %v2488, %v3916
    %v4013 = vmul.f32 %v2490, %v3917
    %v4014 = vmul.f32 %v2492, %v3918
    %v4015 = vmul.f32 %v2494, %v3919
    %v4016 = vmul.f32 %v2496, %v3920
    %v4017 = vmul.f32 %v2498, %v3921
    %v4018 = vmul.f32 %v2500, %v3922
    %v4019 = vmul.f32 %v2502, %v3923
    %v4020 = vmul.f32 %v2504, %v3924
    %v4021 = vmul.f32 %v2506, %v3925
    %v4022 = vmul.f32 %v2508, %v3926
    %v4023 = vmul.f32 %v2510, %v3927
    %v4024 = vmul.f32 %v2512, %v3928
    %v4025 = vadd.f32 %v3961, %v3993
    %v4026 = vadd.f32 %v3962, %v3994
    %v4027 = vadd.f32 %v3963, %v3995
    %v4028 = vadd.f32 %v3964, %v3996
    %v4029 = vadd.f32 %v3965, %v3997
    %v4030 = vadd.f32 %v3966, %v3998
    %v4031 = vadd.f32 %v3967, %v3999
    %v4032 = vadd.f32 %v3968, %v4000
    %v4033 = vadd.f32 %v3969, %v4001
    %v4034 = vadd.f32 %v3970, %v4002
    %v4035 = vadd.f32 %v3971, %v4003
    %v4036 = vadd.f32 %v3972, %v4004
    %v4037 = vadd.f32 %v3973, %v4005
    %v4038 = vadd.f32 %v3974, %v4006
    %v4039 = vadd.f32 %v3975, %v4007
    %v4040 = vadd.f32 %v3976, %v4008
    %v4041 = vadd.f32 %v3977, %v4009
    %v4042 = vadd.f32 %v3978, %v4010
    %v4043 = vadd.f32 %v3979, %v4011
    %v4044 = vadd.f32 %v3980, %v4012
    %v4045 = vadd.f32 %v3981, %v4013
    %v4046 = vadd.f32 %v3982, %v4014
    %v4047 = vadd.f32 %v3983, %v4015
    %v4048 = vadd.f32 %v3984, %v4016
    %v4049 = vadd.f32 %v3985, %v4017
    %v4050 = vadd.f32 %v3986, %v4018
    %v4051 = vadd.f32 %v3987, %v4019
    %v4052 = vadd.f32 %v3988, %v4020
    %v4053 = vadd.f32 %v3989, %v4021
    %v4054 = vadd.f32 %v3990, %v4022
    %v4055 = vadd.f32 %v3991, %v4023
    %v4056 = vadd.f32 %v3992, %v4024
    %4058 = vrot.lane.b32.xlu0 0, 32
    %v4059 = vpop.permute.xlu0 %4058
    %4060 = vrot.lane.b32.xlu0 %v207, 32
    %v4061 = vpop.permute.xlu0 %4060
    %4062 = vrot.lane.b32.xlu0 %v208, 32
    %v4063 = vpop.permute.xlu0 %4062
    %4064 = vrot.lane.b32.xlu0 %v209, 32
    %v4065 = vpop.permute.xlu0 %4064
    %4066 = vrot.lane.b32.xlu0 %v210, 32
    %v4067 = vpop.permute.xlu0 %4066
    %4068 = vrot.lane.b32.xlu0 %v211, 32
    %v4069 = vpop.permute.xlu0 %4068
    %4070 = vrot.lane.b32.xlu0 %v212, 32
    %v4071 = vpop.permute.xlu0 %4070
    %4072 = vrot.lane.b32.xlu0 %v213, 32
    %v4073 = vpop.permute.xlu0 %4072
    %4074 = vrot.lane.b32.xlu0 %v207, 64
    %v4075 = vpop.permute.xlu0 %4074
    %4076 = vrot.lane.b32.xlu0 %v208, 64
    %v4077 = vpop.permute.xlu0 %4076
    %4078 = vrot.lane.b32.xlu0 %v209, 64
    %v4079 = vpop.permute.xlu0 %4078
    %4080 = vrot.lane.b32.xlu0 %v210, 64
    %v4081 = vpop.permute.xlu0 %4080
    %4082 = vrot.lane.b32.xlu0 %v211, 64
    %v4083 = vpop.permute.xlu0 %4082
    %4084 = vrot.lane.b32.xlu0 %v212, 64
    %v4085 = vpop.permute.xlu0 %4084
    %4086 = vrot.lane.b32.xlu0 %v213, 64
    %v4087 = vpop.permute.xlu0 %4086
    %4088 = vrot.lane.b32.xlu0 %v214, 64
    %v4089 = vpop.permute.xlu0 %4088
    %4090 = vrot.lane.b32.xlu0 %v208, 96
    %v4091 = vpop.permute.xlu0 %4090
    %4092 = vrot.lane.b32.xlu0 %v209, 96
    %v4093 = vpop.permute.xlu0 %4092
    %4094 = vrot.lane.b32.xlu0 %v210, 96
    %v4095 = vpop.permute.xlu0 %4094
    %4096 = vrot.lane.b32.xlu0 %v211, 96
    %v4097 = vpop.permute.xlu0 %4096
    %4098 = vrot.lane.b32.xlu0 %v212, 96
    %v4099 = vpop.permute.xlu0 %4098
    %4100 = vrot.lane.b32.xlu0 %v213, 96
    %v4101 = vpop.permute.xlu0 %4100
    %4102 = vrot.lane.b32.xlu0 %v214, 96
    %v4103 = vpop.permute.xlu0 %4102
    %4104 = vrot.lane.b32.xlu0 0, 96
    %v4105 = vpop.permute.xlu0 %4104
    %v4107 = vsel %vm517, 0, %v4059
    %v4109 = vsel %vm517, 0, %v4061
    %v4112 = vsel %vm517, %v207, %v4063
    %v4115 = vsel %vm517, %v208, %v4065
    %v4118 = vsel %vm517, %v209, %v4067
    %v4121 = vsel %vm517, %v210, %v4069
    %v4124 = vsel %vm517, %v211, %v4071
    %v4127 = vsel %vm517, %v212, %v4073
    %v4129 = vsel %vm534, %v4107, %v4075
    %v4131 = vsel %vm534, %v4109, %v4077
    %v4133 = vsel %vm534, %v4112, %v4079
    %v4135 = vsel %vm534, %v4115, %v4081
    %v4137 = vsel %vm534, %v4118, %v4083
    %v4139 = vsel %vm534, %v4121, %v4085
    %v4141 = vsel %vm534, %v4124, %v4087
    %v4143 = vsel %vm534, %v4127, %v4089
    %v4145 = vsel %vm551, %v4129, %v4091
    %v4148 = vsel %vm551, %v4131, %v4093
    %v4151 = vsel %vm551, %v4133, %v4095
    %v4154 = vsel %vm551, %v4135, %v4097
    %v4157 = vsel %vm551, %v4137, %v4099
    %v4160 = vsel %vm551, %v4139, %v4101
    %v4163 = vsel %vm551, %v4141, %v4103
    %v4166 = vsel %vm551, %v4143, %v4105
    %4168 = vrot.lane.b32.xlu0 %v608, 32
    %v4169 = vpop.permute.xlu0 %4168
    %4170 = vrot.lane.b32.xlu0 %v609, 32
    %v4171 = vpop.permute.xlu0 %4170
    %4172 = vrot.lane.b32.xlu0 %v610, 32
    %v4173 = vpop.permute.xlu0 %4172
    %4174 = vrot.lane.b32.xlu0 %v611, 32
    %v4175 = vpop.permute.xlu0 %4174
    %4176 = vrot.lane.b32.xlu0 %v612, 32
    %v4177 = vpop.permute.xlu0 %4176
    %4178 = vrot.lane.b32.xlu0 %v613, 32
    %v4179 = vpop.permute.xlu0 %4178
    %4180 = vrot.lane.b32.xlu0 %v614, 32
    %v4181 = vpop.permute.xlu0 %4180
    %4182 = vrot.lane.b32.xlu0 %v608, 64
    %v4183 = vpop.permute.xlu0 %4182
    %4184 = vrot.lane.b32.xlu0 %v609, 64
    %v4185 = vpop.permute.xlu0 %4184
    %4186 = vrot.lane.b32.xlu0 %v610, 64
    %v4187 = vpop.permute.xlu0 %4186
    %4188 = vrot.lane.b32.xlu0 %v611, 64
    %v4189 = vpop.permute.xlu0 %4188
    %4190 = vrot.lane.b32.xlu0 %v612, 64
    %v4191 = vpop.permute.xlu0 %4190
    %4192 = vrot.lane.b32.xlu0 %v613, 64
    %v4193 = vpop.permute.xlu0 %4192
    %4194 = vrot.lane.b32.xlu0 %v614, 64
    %v4195 = vpop.permute.xlu0 %4194
    %4196 = vrot.lane.b32.xlu0 %v615, 64
    %v4197 = vpop.permute.xlu0 %4196
    %4198 = vrot.lane.b32.xlu0 %v609, 96
    %v4199 = vpop.permute.xlu0 %4198
    %4200 = vrot.lane.b32.xlu0 %v610, 96
    %v4201 = vpop.permute.xlu0 %4200
    %4202 = vrot.lane.b32.xlu0 %v611, 96
    %v4203 = vpop.permute.xlu0 %4202
    %4204 = vrot.lane.b32.xlu0 %v612, 96
    %v4205 = vpop.permute.xlu0 %4204
    %4206 = vrot.lane.b32.xlu0 %v613, 96
    %v4207 = vpop.permute.xlu0 %4206
    %4208 = vrot.lane.b32.xlu0 %v614, 96
    %v4209 = vpop.permute.xlu0 %4208
    %4210 = vrot.lane.b32.xlu0 %v615, 96
    %v4211 = vpop.permute.xlu0 %4210
    %v4213 = vsel %vm517, 0, %v4169
    %v4216 = vsel %vm517, %v608, %v4171
    %v4219 = vsel %vm517, %v609, %v4173
    %v4222 = vsel %vm517, %v610, %v4175
    %v4225 = vsel %vm517, %v611, %v4177
    %v4228 = vsel %vm517, %v612, %v4179
    %v4231 = vsel %vm517, %v613, %v4181
    %v4233 = vsel %vm534, %v4107, %v4183
    %v4235 = vsel %vm534, %v4213, %v4185
    %v4237 = vsel %vm534, %v4216, %v4187
    %v4239 = vsel %vm534, %v4219, %v4189
    %v4241 = vsel %vm534, %v4222, %v4191
    %v4243 = vsel %vm534, %v4225, %v4193
    %v4245 = vsel %vm534, %v4228, %v4195
    %v4247 = vsel %vm534, %v4231, %v4197
    %v4249 = vsel %vm551, %v4233, %v4199
    %v4252 = vsel %vm551, %v4235, %v4201
    %v4255 = vsel %vm551, %v4237, %v4203
    %v4258 = vsel %vm551, %v4239, %v4205
    %v4261 = vsel %vm551, %v4241, %v4207
    %v4264 = vsel %vm551, %v4243, %v4209
    %v4267 = vsel %vm551, %v4245, %v4211
    %v4269 = vsel %vm551, %v4247, %v4105
    %v4271 = vld [vmem:[%s9] sm:$0xf]
    %v4272 = vld [vmem:[%s9 + $0x4] sm:$0xf]
    %v4273 = vld [vmem:[%s9 + $0x8] sm:$0xf]
    %v4274 = vld [vmem:[%s9 + $0xc] sm:$0xf]
    %v4275 = vld [vmem:[%s9 + $0x10] sm:$0xf]
    %v4276 = vld [vmem:[%s9 + $0x14] sm:$0xf]
    %v4277 = vld [vmem:[%s9 + $0x18] sm:$0xf]
    %v4278 = vld [vmem:[%s9 + $0x1c] sm:$0xf]
    %v4279 = vld [vmem:[%s9 + $0x20] sm:$0xf]
    %v4280 = vld [vmem:[%s9 + $0x24] sm:$0xf]
    %v4281 = vld [vmem:[%s9 + $0x28] sm:$0xf]
    %v4282 = vld [vmem:[%s9 + $0x2c] sm:$0xf]
    %v4283 = vld [vmem:[%s9 + $0x30] sm:$0xf]
    %v4284 = vld [vmem:[%s9 + $0x34] sm:$0xf]
    %v4285 = vld [vmem:[%s9 + $0x38] sm:$0xf]
    %v4286 = vld [vmem:[%s9 + $0x3c] sm:$0xf]
    %v4287 = vld [vmem:[%s9 + $0x40] sm:$0xf]
    %v4288 = vld [vmem:[%s9 + $0x44] sm:$0xf]
    %v4289 = vld [vmem:[%s9 + $0x48] sm:$0xf]
    %v4290 = vld [vmem:[%s9 + $0x4c] sm:$0xf]
    %v4311 = vunpack.c.l.b16 %v4271
    %v4312 = vunpack.c.l.b16 %v4272
    %v4313 = vunpack.c.l.b16 %v4273
    %v4314 = vunpack.c.l.b16 %v4274
    %v4315 = vunpack.c.l.b16 %v4275
    %v4316 = vunpack.c.l.b16 %v4276
    %v4317 = vunpack.c.l.b16 %v4277
    %v4318 = vunpack.c.l.b16 %v4278
    %v4319 = vunpack.c.l.b16 %v4279
    %v4320 = vunpack.c.l.b16 %v4280
    %v4321 = vunpack.c.l.b16 %v4281
    %v4322 = vunpack.c.l.b16 %v4282
    %v4323 = vunpack.c.l.b16 %v4283
    %v4324 = vunpack.c.l.b16 %v4284
    %v4325 = vunpack.c.l.b16 %v4285
    %v4326 = vunpack.c.l.b16 %v4286
    %v4327 = vunpack.c.l.b16 %v4287
    %v4328 = vunpack.c.l.b16 %v4288
    %v4329 = vunpack.c.l.b16 %v4289
    %v4330 = vunpack.c.l.b16 %v4290
    %v4331 = vpack.c.b16 %v4312, %v4311
    %v4332 = vpack.c.b16 %v4314, %v4313
    %v4333 = vpack.c.b16 %v4316, %v4315
    %v4334 = vpack.c.b16 %v4318, %v4317
    %v4335 = vpack.c.b16 %v4320, %v4319
    %v4336 = vpack.c.b16 %v4322, %v4321
    %v4337 = vpack.c.b16 %v4324, %v4323
    %v4338 = vpack.c.b16 %v4326, %v4325
    %v4339 = vpack.c.b16 %v4328, %v4327
    %v4340 = vpack.c.b16 %v4330, %v4329
    %v4351 = vsel %vm517, %v209, 0
    %v4353 = vsel %vm517, %v210, 0
    %v4355 = vsel %vm517, %v211, 0
    %v4357 = vsel %vm517, %v212, 0
    %v4360 = vsel %vm517, %v213, 0
    %v4363 = vsel %vm517, %v214, 0
    %v4365 = vsel %vm517, 0, 0
    %v4367 = vsel %vm517, %v610, 0
    %v4369 = vsel %vm517, %v611, 0
    %v4371 = vsel %vm517, %v612, 0
    %v4373 = vsel %vm517, %v613, 0
    %v4376 = vsel %vm517, %v614, 0
    %v4379 = vsel %vm517, %v615, 0
    %4381 = vmatprep.subr.bf16.mxu0 0
    %4382 = vmatpush1.bf16.msra.mxu0 %v4338
    %4383 = vmatprep.subr.bf16.mxu0 0
    %4384 = vmatpush1.bf16.msra.mxu0 %v4337
    %4385 = vmatprep.subr.bf16.mxu0 0
    %4386 = vmatpush1.bf16.msra.mxu0 %v4336
    %4387 = vmatprep.subr.bf16.mxu0 0
    %4388 = vmatpush1.bf16.msra.mxu0 %v4335
    %4389 = vmatprep.subr.bf16.mxu0 0
    %4390 = vmatpush1.bf16.msra.mxu0 %v4334
    %4391 = vmatprep.subr.bf16.mxu0 0
    %4392 = vmatpush1.bf16.msra.mxu0 %v4333
    %4393 = vmatprep.subr.bf16.mxu0 0
    %4394 = vmatpush1.bf16.msra.mxu0 %v4332
    %4395 = vmatprep.subr.bf16.mxu0 0
    %4396 = vmatpush1.bf16.msra.mxu0 %v4331
    %4397 = vmatprep.subr.bf16.mxu0 0
    %4398 = vmatpush2.bf16.msra.mxu0 0
    %4399 = vmatprep.subr.bf16.mxu0 0
    %4400 = vmatpush2.bf16.msra.mxu0 0
    %4401 = vmatprep.subr.bf16.mxu0 0
    %4402 = vmatpush2.bf16.msra.mxu0 0
    %4403 = vmatprep.subr.bf16.mxu0 0
    %4404 = vmatpush2.bf16.msra.mxu0 0
    %4405 = vmatprep.subr.bf16.mxu0 0
    %4406 = vmatpush2.bf16.msra.mxu0 0
    %4407 = vmatprep.subr.bf16.mxu0 0
    %4408 = vmatpush2.bf16.msra.mxu0 0
    %4409 = vmatprep.subr.bf16.mxu0 0
    %4410 = vmatpush2.bf16.msra.mxu0 %v4340
    %4411 = vmatprep.subr.bf16.mxu0 0
    %4412 = vmatpush2.bf16.msra.mxu0 %v4339
    %4413 = vmatprep.mubr.bf16.mxu0 %v4351
    %4414 = vmatmul.mubr.bf16.gmra.mxu0 %v4145
    %v4415 = vpop.f32.mrf.mxu0
    %v4416 = vadd.f32 0.0, %v4415
    %v4417 = vpop.f32.mrf.mxu0
    %v4418 = vpop.f32.mrf.mxu0
    %v4419 = vadd.f32 0.0, %v4418
    %v4420 = vpop.f32.mrf.mxu0
    %4421 = vmatprep.mubr.bf16.mxu0 %v4353
    %4422 = vmatmul.mubr.bf16.gmra.mxu0 %v4148
    %v4423 = vpop.f32.mrf.mxu0
    %v4424 = vadd.f32 0.0, %v4423
    %v4425 = vpop.f32.mrf.mxu0
    %v4426 = vpop.f32.mrf.mxu0
    %v4427 = vadd.f32 0.0, %v4426
    %v4428 = vpop.f32.mrf.mxu0
    %4429 = vmatprep.mubr.bf16.mxu0 %v4355
    %4430 = vmatmul.mubr.bf16.gmra.mxu0 %v4151
    %v4431 = vpop.f32.mrf.mxu0
    %v4432 = vadd.f32 0.0, %v4431
    %v4433 = vpop.f32.mrf.mxu0
    %v4434 = vpop.f32.mrf.mxu0
    %v4435 = vadd.f32 0.0, %v4434
    %v4436 = vpop.f32.mrf.mxu0
    %4437 = vmatprep.mubr.bf16.mxu0 %v4357
    %4438 = vmatmul.mubr.bf16.gmra.mxu0 %v4154
    %v4439 = vpop.f32.mrf.mxu0
    %v4440 = vadd.f32 0.0, %v4439
    %v4441 = vpop.f32.mrf.mxu0
    %v4442 = vpop.f32.mrf.mxu0
    %v4443 = vadd.f32 0.0, %v4442
    %v4444 = vpop.f32.mrf.mxu0
    %4445 = vmatprep.mubr.bf16.mxu0 %v4360
    %4446 = vmatmul.mubr.bf16.gmra.mxu0 %v4157
    %v4447 = vpop.f32.mrf.mxu0
    %v4448 = vadd.f32 0.0, %v4447
    %v4449 = vpop.f32.mrf.mxu0
    %v4450 = vpop.f32.mrf.mxu0
    %v4451 = vadd.f32 0.0, %v4450
    %v4452 = vpop.f32.mrf.mxu0
    %4453 = vmatprep.mubr.bf16.mxu0 %v4363
    %4454 = vmatmul.mubr.bf16.gmra.mxu0 %v4160
    %v4455 = vpop.f32.mrf.mxu0
    %v4456 = vadd.f32 0.0, %v4455
    %v4457 = vpop.f32.mrf.mxu0
    %v4458 = vpop.f32.mrf.mxu0
    %v4459 = vadd.f32 0.0, %v4458
    %v4460 = vpop.f32.mrf.mxu0
    %4461 = vmatprep.mubr.bf16.mxu0 %v4365
    %4462 = vmatmul.mubr.bf16.gmra.mxu0 %v4163
    %v4463 = vpop.f32.mrf.mxu0
    %v4464 = vadd.f32 0.0, %v4463
    %v4465 = vpop.f32.mrf.mxu0
    %v4466 = vpop.f32.mrf.mxu0
    %v4467 = vadd.f32 0.0, %v4466
    %v4468 = vpop.f32.mrf.mxu0
    %4469 = vmatprep.mubr.bf16.mxu0 %v4365
    %4470 = vmatmul.mubr.bf16.gmra.mxu0 %v4166
    %v4471 = vpop.f32.mrf.mxu0
    %v4472 = vadd.f32 0.0, %v4471
    %v4473 = vpop.f32.mrf.mxu0
    %v4474 = vpop.f32.mrf.mxu0
    %v4475 = vadd.f32 0.0, %v4474
    %v4476 = vpop.f32.mrf.mxu0
    %4477 = vmatprep.mubr.bf16.mxu0 %v4367
    %4478 = vmatmul.mubr.bf16.gmra.mxu0 %v4249
    %v4479 = vpop.f32.mrf.mxu0
    %v4480 = vadd.f32 0.0, %v4479
    %v4481 = vpop.f32.mrf.mxu0
    %v4482 = vpop.f32.mrf.mxu0
    %v4483 = vadd.f32 0.0, %v4482
    %v4484 = vpop.f32.mrf.mxu0
    %4485 = vmatprep.mubr.bf16.mxu0 %v4369
    %4486 = vmatmul.mubr.bf16.gmra.mxu0 %v4252
    %v4487 = vpop.f32.mrf.mxu0
    %v4488 = vadd.f32 0.0, %v4487
    %v4489 = vpop.f32.mrf.mxu0
    %v4490 = vpop.f32.mrf.mxu0
    %v4491 = vadd.f32 0.0, %v4490
    %v4492 = vpop.f32.mrf.mxu0
    %4493 = vmatprep.mubr.bf16.mxu0 %v4371
    %4494 = vmatmul.mubr.bf16.gmra.mxu0 %v4255
    %v4495 = vpop.f32.mrf.mxu0
    %v4496 = vadd.f32 0.0, %v4495
    %v4497 = vpop.f32.mrf.mxu0
    %v4498 = vpop.f32.mrf.mxu0
    %v4499 = vadd.f32 0.0, %v4498
    %v4500 = vpop.f32.mrf.mxu0
    %4501 = vmatprep.mubr.bf16.mxu0 %v4373
    %4502 = vmatmul.mubr.bf16.gmra.mxu0 %v4258
    %v4503 = vpop.f32.mrf.mxu0
    %v4504 = vadd.f32 0.0, %v4503
    %v4505 = vpop.f32.mrf.mxu0
    %v4506 = vpop.f32.mrf.mxu0
    %v4507 = vadd.f32 0.0, %v4506
    %v4508 = vpop.f32.mrf.mxu0
    %4509 = vmatprep.mubr.bf16.mxu0 %v4376
    %4510 = vmatmul.mubr.bf16.gmra.mxu0 %v4261
    %v4511 = vpop.f32.mrf.mxu0
    %v4512 = vadd.f32 0.0, %v4511
    %v4513 = vpop.f32.mrf.mxu0
    %v4514 = vpop.f32.mrf.mxu0
    %v4515 = vadd.f32 0.0, %v4514
    %v4516 = vpop.f32.mrf.mxu0
    %4517 = vmatprep.mubr.bf16.mxu0 %v4379
    %4518 = vmatmul.mubr.bf16.gmra.mxu0 %v4264
    %v4519 = vpop.f32.mrf.mxu0
    %v4520 = vadd.f32 0.0, %v4519
    %v4521 = vpop.f32.mrf.mxu0
    %v4522 = vpop.f32.mrf.mxu0
    %v4523 = vadd.f32 0.0, %v4522
    %v4524 = vpop.f32.mrf.mxu0
    %4525 = vmatprep.mubr.bf16.mxu0 %v4365
    %4526 = vmatmul.mubr.bf16.gmra.mxu0 %v4267
    %v4527 = vpop.f32.mrf.mxu0
    %v4528 = vadd.f32 0.0, %v4527
    %v4529 = vpop.f32.mrf.mxu0
    %v4530 = vpop.f32.mrf.mxu0
    %v4531 = vadd.f32 0.0, %v4530
    %v4532 = vpop.f32.mrf.mxu0
    %4533 = vmatprep.mubr.bf16.mxu0 %v4365
    %4534 = vmatmul.mubr.bf16.gmra.mxu0 %v4269
    %v4535 = vpop.f32.mrf.mxu0
    %v4536 = vadd.f32 0.0, %v4535
    %v4537 = vpop.f32.mrf.mxu0
    %v4538 = vpop.f32.mrf.mxu0
    %v4539 = vadd.f32 0.0, %v4538
    %v4540 = vpop.f32.mrf.mxu0
    %4541 = vdwg.mxu0
    %v4542 = vpack.c.bf16 %v4026, %v4025
    %v4543 = vpack.c.bf16 %v4028, %v4027
    %v4544 = vpack.c.bf16 %v4030, %v4029
    %v4545 = vpack.c.bf16 %v4032, %v4031
    %v4546 = vpack.c.bf16 %v4034, %v4033
    %v4547 = vpack.c.bf16 %v4036, %v4035
    %v4548 = vpack.c.bf16 %v4038, %v4037
    %v4549 = vpack.c.bf16 %v4040, %v4039
    %v4550 = vpack.c.bf16 %v4042, %v4041
    %v4551 = vpack.c.bf16 %v4044, %v4043
    %v4552 = vpack.c.bf16 %v4046, %v4045
    %v4553 = vpack.c.bf16 %v4048, %v4047
    %v4554 = vpack.c.bf16 %v4050, %v4049
    %v4555 = vpack.c.bf16 %v4052, %v4051
    %v4556 = vpack.c.bf16 %v4054, %v4053
    %v4557 = vpack.c.bf16 %v4056, %v4055
    %4565 = vrot.lane.b32.xlu0 %v4542, 32
    %v4566 = vpop.permute.xlu0 %4565
    %4567 = vrot.lane.b32.xlu0 %v4543, 32
    %v4568 = vpop.permute.xlu0 %4567
    %4569 = vrot.lane.b32.xlu0 %v4544, 32
    %v4570 = vpop.permute.xlu0 %4569
    %4571 = vrot.lane.b32.xlu0 %v4545, 32
    %v4572 = vpop.permute.xlu0 %4571
    %4573 = vrot.lane.b32.xlu0 %v4546, 32
    %v4574 = vpop.permute.xlu0 %4573
    %4575 = vrot.lane.b32.xlu0 %v4547, 32
    %v4576 = vpop.permute.xlu0 %4575
    %4577 = vrot.lane.b32.xlu0 %v4548, 32
    %v4578 = vpop.permute.xlu0 %4577
    %4580 = vrot.lane.b32.xlu0 %v4542, 64
    %v4581 = vpop.permute.xlu0 %4580
    %4582 = vrot.lane.b32.xlu0 %v4543, 64
    %v4583 = vpop.permute.xlu0 %4582
    %4584 = vrot.lane.b32.xlu0 %v4544, 64
    %v4585 = vpop.permute.xlu0 %4584
    %4586 = vrot.lane.b32.xlu0 %v4545, 64
    %v4587 = vpop.permute.xlu0 %4586
    %4588 = vrot.lane.b32.xlu0 %v4546, 64
    %v4589 = vpop.permute.xlu0 %4588
    %4590 = vrot.lane.b32.xlu0 %v4547, 64
    %v4591 = vpop.permute.xlu0 %4590
    %4592 = vrot.lane.b32.xlu0 %v4548, 64
    %v4593 = vpop.permute.xlu0 %4592
    %4594 = vrot.lane.b32.xlu0 %v4549, 64
    %v4595 = vpop.permute.xlu0 %4594
    %4596 = vrot.lane.b32.xlu0 %v4543, 96
    %v4597 = vpop.permute.xlu0 %4596
    %4598 = vrot.lane.b32.xlu0 %v4544, 96
    %v4599 = vpop.permute.xlu0 %4598
    %4600 = vrot.lane.b32.xlu0 %v4545, 96
    %v4601 = vpop.permute.xlu0 %4600
    %4602 = vrot.lane.b32.xlu0 %v4546, 96
    %v4603 = vpop.permute.xlu0 %4602
    %4604 = vrot.lane.b32.xlu0 %v4547, 96
    %v4605 = vpop.permute.xlu0 %4604
    %4606 = vrot.lane.b32.xlu0 %v4548, 96
    %v4607 = vpop.permute.xlu0 %4606
    %4608 = vrot.lane.b32.xlu0 %v4549, 96
    %v4609 = vpop.permute.xlu0 %4608
    %v4611 = vsel %vm517, 0, %v4566
    %v4614 = vsel %vm517, %v4542, %v4568
    %v4617 = vsel %vm517, %v4543, %v4570
    %v4620 = vsel %vm517, %v4544, %v4572
    %v4623 = vsel %vm517, %v4545, %v4574
    %v4626 = vsel %vm517, %v4546, %v4576
    %v4629 = vsel %vm517, %v4547, %v4578
    %v4631 = vsel %vm534, %v4107, %v4581
    %v4633 = vsel %vm534, %v4611, %v4583
    %v4635 = vsel %vm534, %v4614, %v4585
    %v4637 = vsel %vm534, %v4617, %v4587
    %v4639 = vsel %vm534, %v4620, %v4589
    %v4641 = vsel %vm534, %v4623, %v4591
    %v4643 = vsel %vm534, %v4626, %v4593
    %v4645 = vsel %vm534, %v4629, %v4595
    %v4647 = vsel %vm551, %v4631, %v4597
    %v4650 = vsel %vm551, %v4633, %v4599
    %v4653 = vsel %vm551, %v4635, %v4601
    %v4656 = vsel %vm551, %v4637, %v4603
    %v4659 = vsel %vm551, %v4639, %v4605
    %v4662 = vsel %vm551, %v4641, %v4607
    %v4665 = vsel %vm551, %v4643, %v4609
    %v4667 = vsel %vm551, %v4645, %v4105
    %4676 = vrot.lane.b32.xlu0 %v4550, 32
    %v4677 = vpop.permute.xlu0 %4676
    %4678 = vrot.lane.b32.xlu0 %v4551, 32
    %v4679 = vpop.permute.xlu0 %4678
    %4680 = vrot.lane.b32.xlu0 %v4552, 32
    %v4681 = vpop.permute.xlu0 %4680
    %4682 = vrot.lane.b32.xlu0 %v4553, 32
    %v4683 = vpop.permute.xlu0 %4682
    %4684 = vrot.lane.b32.xlu0 %v4554, 32
    %v4685 = vpop.permute.xlu0 %4684
    %4686 = vrot.lane.b32.xlu0 %v4555, 32
    %v4687 = vpop.permute.xlu0 %4686
    %4688 = vrot.lane.b32.xlu0 %v4556, 32
    %v4689 = vpop.permute.xlu0 %4688
    %4691 = vrot.lane.b32.xlu0 %v4550, 64
    %v4692 = vpop.permute.xlu0 %4691
    %4693 = vrot.lane.b32.xlu0 %v4551, 64
    %v4694 = vpop.permute.xlu0 %4693
    %4695 = vrot.lane.b32.xlu0 %v4552, 64
    %v4696 = vpop.permute.xlu0 %4695
    %4697 = vrot.lane.b32.xlu0 %v4553, 64
    %v4698 = vpop.permute.xlu0 %4697
    %4699 = vrot.lane.b32.xlu0 %v4554, 64
    %v4700 = vpop.permute.xlu0 %4699
    %4701 = vrot.lane.b32.xlu0 %v4555, 64
    %v4702 = vpop.permute.xlu0 %4701
    %4703 = vrot.lane.b32.xlu0 %v4556, 64
    %v4704 = vpop.permute.xlu0 %4703
    %4705 = vrot.lane.b32.xlu0 %v4557, 64
    %v4706 = vpop.permute.xlu0 %4705
    %4707 = vrot.lane.b32.xlu0 %v4551, 96
    %v4708 = vpop.permute.xlu0 %4707
    %4709 = vrot.lane.b32.xlu0 %v4552, 96
    %v4710 = vpop.permute.xlu0 %4709
    %4711 = vrot.lane.b32.xlu0 %v4553, 96
    %v4712 = vpop.permute.xlu0 %4711
    %4713 = vrot.lane.b32.xlu0 %v4554, 96
    %v4714 = vpop.permute.xlu0 %4713
    %4715 = vrot.lane.b32.xlu0 %v4555, 96
    %v4716 = vpop.permute.xlu0 %4715
    %4717 = vrot.lane.b32.xlu0 %v4556, 96
    %v4718 = vpop.permute.xlu0 %4717
    %4719 = vrot.lane.b32.xlu0 %v4557, 96
    %v4720 = vpop.permute.xlu0 %4719
    %v4722 = vsel %vm517, 0, %v4677
    %v4725 = vsel %vm517, %v4550, %v4679
    %v4728 = vsel %vm517, %v4551, %v4681
    %v4731 = vsel %vm517, %v4552, %v4683
    %v4734 = vsel %vm517, %v4553, %v4685
    %v4737 = vsel %vm517, %v4554, %v4687
    %v4740 = vsel %vm517, %v4555, %v4689
    %v4742 = vsel %vm534, %v4107, %v4692
    %v4744 = vsel %vm534, %v4722, %v4694
    %v4746 = vsel %vm534, %v4725, %v4696
    %v4748 = vsel %vm534, %v4728, %v4698
    %v4750 = vsel %vm534, %v4731, %v4700
    %v4752 = vsel %vm534, %v4734, %v4702
    %v4754 = vsel %vm534, %v4737, %v4704
    %v4756 = vsel %vm534, %v4740, %v4706
    %v4758 = vsel %vm551, %v4742, %v4708
    %v4761 = vsel %vm551, %v4744, %v4710
    %v4764 = vsel %vm551, %v4746, %v4712
    %v4767 = vsel %vm551, %v4748, %v4714
    %v4770 = vsel %vm551, %v4750, %v4716
    %v4773 = vsel %vm551, %v4752, %v4718
    %v4776 = vsel %vm551, %v4754, %v4720
    %v4778 = vsel %vm551, %v4756, %v4105
    %v4780 = vld [vmem:[#allocation8] sm:$0xf]
    %v4781 = vld [vmem:[#allocation8 + $0x4] sm:$0xf]
    %v4782 = vld [vmem:[#allocation8 + $0x8] sm:$0xf]
    %v4783 = vld [vmem:[#allocation8 + $0xc] sm:$0xf]
    %v4784 = vld [vmem:[#allocation8 + $0x10] sm:$0xf]
    %v4785 = vld [vmem:[#allocation8 + $0x14] sm:$0xf]
    %v4786 = vld [vmem:[#allocation8 + $0x18] sm:$0xf]
    %v4787 = vld [vmem:[#allocation8 + $0x1c] sm:$0xf]
    %v4788 = vld [vmem:[#allocation8 + $0x20] sm:$0xf]
    %v4789 = vld [vmem:[#allocation8 + $0x24] sm:$0xf]
    %v4790 = vld [vmem:[#allocation8 + $0x28] sm:$0xf]
    %v4791 = vld [vmem:[#allocation8 + $0x2c] sm:$0xf]
    %v4792 = vld [vmem:[#allocation8 + $0x30] sm:$0xf]
    %v4793 = vld [vmem:[#allocation8 + $0x34] sm:$0xf]
    %v4794 = vld [vmem:[#allocation8 + $0x38] sm:$0xf]
    %v4795 = vld [vmem:[#allocation8 + $0x3c] sm:$0xf]
    %v4796 = vld [vmem:[#allocation8 + $0x40] sm:$0xf]
    %v4797 = vld [vmem:[#allocation8 + $0x44] sm:$0xf]
    %v4798 = vld [vmem:[#allocation8 + $0x48] sm:$0xf]
    %v4799 = vld [vmem:[#allocation8 + $0x4c] sm:$0xf]
    %v4820 = vunpack.c.l.b16 %v4780
    %v4821 = vunpack.c.l.b16 %v4781
    %v4822 = vunpack.c.l.b16 %v4782
    %v4823 = vunpack.c.l.b16 %v4783
    %v4824 = vunpack.c.l.b16 %v4784
    %v4825 = vunpack.c.l.b16 %v4785
    %v4826 = vunpack.c.l.b16 %v4786
    %v4827 = vunpack.c.l.b16 %v4787
    %v4828 = vunpack.c.l.b16 %v4788
    %v4829 = vunpack.c.l.b16 %v4789
    %v4830 = vunpack.c.l.b16 %v4790
    %v4831 = vunpack.c.l.b16 %v4791
    %v4832 = vunpack.c.l.b16 %v4792
    %v4833 = vunpack.c.l.b16 %v4793
    %v4834 = vunpack.c.l.b16 %v4794
    %v4835 = vunpack.c.l.b16 %v4795
    %v4836 = vunpack.c.l.b16 %v4796
    %v4837 = vunpack.c.l.b16 %v4797
    %v4838 = vunpack.c.l.b16 %v4798
    %v4839 = vunpack.c.l.b16 %v4799
    %v4840 = vpack.c.b16 %v4821, %v4820
    %v4841 = vpack.c.b16 %v4823, %v4822
    %v4842 = vpack.c.b16 %v4825, %v4824
    %v4843 = vpack.c.b16 %v4827, %v4826
    %v4844 = vpack.c.b16 %v4829, %v4828
    %v4845 = vpack.c.b16 %v4831, %v4830
    %v4846 = vpack.c.b16 %v4833, %v4832
    %v4847 = vpack.c.b16 %v4835, %v4834
    %v4848 = vpack.c.b16 %v4837, %v4836
    %v4849 = vpack.c.b16 %v4839, %v4838
    %v4860 = vsel %vm517, %v4544, 0
    %v4862 = vsel %vm517, %v4545, 0
    %v4864 = vsel %vm517, %v4546, 0
    %v4866 = vsel %vm517, %v4547, 0
    %v4869 = vsel %vm517, %v4548, 0
    %v4872 = vsel %vm517, %v4549, 0
    %v4874 = vsel %vm517, %v4552, 0
    %v4876 = vsel %vm517, %v4553, 0
    %v4878 = vsel %vm517, %v4554, 0
    %v4880 = vsel %vm517, %v4555, 0
    %v4883 = vsel %vm517, %v4556, 0
    %v4886 = vsel %vm517, %v4557, 0
    %4888 = vmatprep.subr.bf16.mxu0 0
    %4889 = vmatpush1.bf16.msra.mxu0 %v4847
    %4890 = vmatprep.subr.bf16.mxu0 0
    %4891 = vmatpush1.bf16.msra.mxu0 %v4846
    %4892 = vmatprep.subr.bf16.mxu0 0
    %4893 = vmatpush1.bf16.msra.mxu0 %v4845
    %4894 = vmatprep.subr.bf16.mxu0 0
    %4895 = vmatpush1.bf16.msra.mxu0 %v4844
    %4896 = vmatprep.subr.bf16.mxu0 0
    %4897 = vmatpush1.bf16.msra.mxu0 %v4843
    %4898 = vmatprep.subr.bf16.mxu0 0
    %4899 = vmatpush1.bf16.msra.mxu0 %v4842
    %4900 = vmatprep.subr.bf16.mxu0 0
    %4901 = vmatpush1.bf16.msra.mxu0 %v4841
    %4902 = vmatprep.subr.bf16.mxu0 0
    %4903 = vmatpush1.bf16.msra.mxu0 %v4840
    %4904 = vmatprep.subr.bf16.mxu0 0
    %4905 = vmatpush2.bf16.msra.mxu0 0
    %4906 = vmatprep.subr.bf16.mxu0 0
    %4907 = vmatpush2.bf16.msra.mxu0 0
    %4908 = vmatprep.subr.bf16.mxu0 0
    %4909 = vmatpush2.bf16.msra.mxu0 0
    %4910 = vmatprep.subr.bf16.mxu0 0
    %4911 = vmatpush2.bf16.msra.mxu0 0
    %4912 = vmatprep.subr.bf16.mxu0 0
    %4913 = vmatpush2.bf16.msra.mxu0 0
    %4914 = vmatprep.subr.bf16.mxu0 0
    %4915 = vmatpush2.bf16.msra.mxu0 0
    %4916 = vmatprep.subr.bf16.mxu0 0
    %4917 = vmatpush2.bf16.msra.mxu0 %v4849
    %4918 = vmatprep.subr.bf16.mxu0 0
    %4919 = vmatpush2.bf16.msra.mxu0 %v4848
    %4920 = vmatprep.mubr.bf16.mxu0 %v4860
    %4921 = vmatmul.mubr.bf16.gmra.mxu0 %v4647
    %v4922 = vpop.f32.mrf.mxu0
    %v4923 = vadd.f32 %v4416, %v4922
    %v4924 = vpop.f32.mrf.mxu0
    %v4925 = vpop.f32.mrf.mxu0
    %v4926 = vadd.f32 %v4419, %v4925
    %v4927 = vpop.f32.mrf.mxu0
    %4928 = vmatprep.mubr.bf16.mxu0 %v4862
    %4929 = vmatmul.mubr.bf16.gmra.mxu0 %v4650
    %v4930 = vpop.f32.mrf.mxu0
    %v4931 = vadd.f32 %v4424, %v4930
    %v4932 = vpop.f32.mrf.mxu0
    %v4933 = vpop.f32.mrf.mxu0
    %v4934 = vadd.f32 %v4427, %v4933
    %v4935 = vpop.f32.mrf.mxu0
    %4936 = vmatprep.mubr.bf16.mxu0 %v4864
    %4937 = vmatmul.mubr.bf16.gmra.mxu0 %v4653
    %v4938 = vpop.f32.mrf.mxu0
    %v4939 = vadd.f32 %v4432, %v4938
    %v4940 = vpop.f32.mrf.mxu0
    %v4941 = vpop.f32.mrf.mxu0
    %v4942 = vadd.f32 %v4435, %v4941
    %v4943 = vpop.f32.mrf.mxu0
    %4944 = vmatprep.mubr.bf16.mxu0 %v4866
    %4945 = vmatmul.mubr.bf16.gmra.mxu0 %v4656
    %v4946 = vpop.f32.mrf.mxu0
    %v4947 = vadd.f32 %v4440, %v4946
    %v4948 = vpop.f32.mrf.mxu0
    %v4949 = vpop.f32.mrf.mxu0
    %v4950 = vadd.f32 %v4443, %v4949
    %v4951 = vpop.f32.mrf.mxu0
    %4952 = vmatprep.mubr.bf16.mxu0 %v4869
    %4953 = vmatmul.mubr.bf16.gmra.mxu0 %v4659
    %v4954 = vpop.f32.mrf.mxu0
    %v4955 = vadd.f32 %v4448, %v4954
    %v4956 = vpop.f32.mrf.mxu0
    %v4957 = vpop.f32.mrf.mxu0
    %v4958 = vadd.f32 %v4451, %v4957
    %v4959 = vpop.f32.mrf.mxu0
    %4960 = vmatprep.mubr.bf16.mxu0 %v4872
    %4961 = vmatmul.mubr.bf16.gmra.mxu0 %v4662
    %v4962 = vpop.f32.mrf.mxu0
    %v4963 = vadd.f32 %v4456, %v4962
    %v4964 = vpop.f32.mrf.mxu0
    %v4965 = vpop.f32.mrf.mxu0
    %v4966 = vadd.f32 %v4459, %v4965
    %v4967 = vpop.f32.mrf.mxu0
    %4968 = vmatprep.mubr.bf16.mxu0 %v4365
    %4969 = vmatmul.mubr.bf16.gmra.mxu0 %v4665
    %v4970 = vpop.f32.mrf.mxu0
    %v4971 = vadd.f32 %v4464, %v4970
    %v4972 = vpop.f32.mrf.mxu0
    %v4973 = vpop.f32.mrf.mxu0
    %v4974 = vadd.f32 %v4467, %v4973
    %v4975 = vpop.f32.mrf.mxu0
    %4976 = vmatprep.mubr.bf16.mxu0 %v4365
    %4977 = vmatmul.mubr.bf16.gmra.mxu0 %v4667
    %v4978 = vpop.f32.mrf.mxu0
    %v4979 = vadd.f32 %v4472, %v4978
    %v4980 = vpop.f32.mrf.mxu0
    %v4981 = vpop.f32.mrf.mxu0
    %v4982 = vadd.f32 %v4475, %v4981
    %v4983 = vpop.f32.mrf.mxu0
    %4984 = vmatprep.mubr.bf16.mxu0 %v4874
    %4985 = vmatmul.mubr.bf16.gmra.mxu0 %v4758
    %v4986 = vpop.f32.mrf.mxu0
    %v4987 = vadd.f32 %v4480, %v4986
    %v4988 = vpop.f32.mrf.mxu0
    %v4989 = vpop.f32.mrf.mxu0
    %v4990 = vadd.f32 %v4483, %v4989
    %v4991 = vpop.f32.mrf.mxu0
    %4992 = vmatprep.mubr.bf16.mxu0 %v4876
    %4993 = vmatmul.mubr.bf16.gmra.mxu0 %v4761
    %v4994 = vpop.f32.mrf.mxu0
    %v4995 = vadd.f32 %v4488, %v4994
    %v4996 = vpop.f32.mrf.mxu0
    %v4997 = vpop.f32.mrf.mxu0
    %v4998 = vadd.f32 %v4491, %v4997
    %v4999 = vpop.f32.mrf.mxu0
    %5000 = vmatprep.mubr.bf16.mxu0 %v4878
    %5001 = vmatmul.mubr.bf16.gmra.mxu0 %v4764
    %v5002 = vpop.f32.mrf.mxu0
    %v5003 = vadd.f32 %v4496, %v5002
    %v5004 = vpop.f32.mrf.mxu0
    %v5005 = vpop.f32.mrf.mxu0
    %v5006 = vadd.f32 %v4499, %v5005
    %v5007 = vpop.f32.mrf.mxu0
    %5008 = vmatprep.mubr.bf16.mxu0 %v4880
    %5009 = vmatmul.mubr.bf16.gmra.mxu0 %v4767
    %v5010 = vpop.f32.mrf.mxu0
    %v5011 = vadd.f32 %v4504, %v5010
    %v5012 = vpop.f32.mrf.mxu0
    %v5013 = vpop.f32.mrf.mxu0
    %v5014 = vadd.f32 %v4507, %v5013
    %v5015 = vpop.f32.mrf.mxu0
    %5016 = vmatprep.mubr.bf16.mxu0 %v4883
    %5017 = vmatmul.mubr.bf16.gmra.mxu0 %v4770
    %v5018 = vpop.f32.mrf.mxu0
    %v5019 = vadd.f32 %v4512, %v5018
    %v5020 = vpop.f32.mrf.mxu0
    %v5021 = vpop.f32.mrf.mxu0
    %v5022 = vadd.f32 %v4515, %v5021
    %v5023 = vpop.f32.mrf.mxu0
    %5024 = vmatprep.mubr.bf16.mxu0 %v4886
    %5025 = vmatmul.mubr.bf16.gmra.mxu0 %v4773
    %v5026 = vpop.f32.mrf.mxu0
    %v5027 = vadd.f32 %v4520, %v5026
    %v5028 = vpop.f32.mrf.mxu0
    %v5029 = vpop.f32.mrf.mxu0
    %v5030 = vadd.f32 %v4523, %v5029
    %v5031 = vpop.f32.mrf.mxu0
    %5032 = vmatprep.mubr.bf16.mxu0 %v4365
    %5033 = vmatmul.mubr.bf16.gmra.mxu0 %v4776
    %v5034 = vpop.f32.mrf.mxu0
    %v5035 = vadd.f32 %v4528, %v5034
    %v5036 = vpop.f32.mrf.mxu0
    %v5037 = vpop.f32.mrf.mxu0
    %v5038 = vadd.f32 %v4531, %v5037
    %v5039 = vpop.f32.mrf.mxu0
    %5040 = vmatprep.mubr.bf16.mxu0 %v4365
    %5041 = vmatmul.mubr.bf16.gmra.mxu0 %v4778
    %v5042 = vpop.f32.mrf.mxu0
    %v5043 = vadd.f32 %v4536, %v5042
    %v5044 = vpop.f32.mrf.mxu0
    %v5045 = vpop.f32.mrf.mxu0
    %v5046 = vadd.f32 %v4539, %v5045
    %v5047 = vpop.f32.mrf.mxu0
    %5048 = vdwg.mxu0
    %v5049 = vld [vmem:[%s10] sm:$0x1]
    %v5051 = vlaneseq
    %v5052 = vshrl.u32 %v5051, 7
    %v5053 = vsub.s32 0, %v5052
    %v5054 = vrot.slane %v5049, %v5053
    %v5056 = vadd.f32 %v4923, %v5054
    %v5057 = vadd.f32 %v4926, %v5054
    %v5058 = vadd.f32 %v4931, %v5054
    %v5059 = vadd.f32 %v4934, %v5054
    %v5060 = vadd.f32 %v4939, %v5054
    %v5061 = vadd.f32 %v4942, %v5054
    %v5062 = vadd.f32 %v4947, %v5054
    %v5063 = vadd.f32 %v4950, %v5054
    %v5064 = vadd.f32 %v4955, %v5054
    %v5065 = vadd.f32 %v4958, %v5054
    %v5066 = vadd.f32 %v4963, %v5054
    %v5067 = vadd.f32 %v4966, %v5054
    %v5068 = vadd.f32 %v4971, %v5054
    %v5069 = vadd.f32 %v4974, %v5054
    %v5070 = vadd.f32 %v4979, %v5054
    %v5071 = vadd.f32 %v4982, %v5054
    %v5072 = vadd.f32 %v4987, %v5054
    %v5073 = vadd.f32 %v4990, %v5054
    %v5074 = vadd.f32 %v4995, %v5054
    %v5075 = vadd.f32 %v4998, %v5054
    %v5076 = vadd.f32 %v5003, %v5054
    %v5077 = vadd.f32 %v5006, %v5054
    %v5078 = vadd.f32 %v5011, %v5054
    %v5079 = vadd.f32 %v5014, %v5054
    %v5080 = vadd.f32 %v5019, %v5054
    %v5081 = vadd.f32 %v5022, %v5054
    %v5082 = vadd.f32 %v5027, %v5054
    %v5083 = vadd.f32 %v5030, %v5054
    %v5084 = vadd.f32 %v5035, %v5054
    %v5085 = vadd.f32 %v5038, %v5054
    %v5086 = vadd.f32 %v5043, %v5054
    %v5087 = vadd.f32 %v5046, %v5054
    %v5088 = vxor.u32 %v5056, 2147483648
    %v5089 = vxor.u32 %v5057, 2147483648
    %v5090 = vxor.u32 %v5058, 2147483648
    %v5091 = vxor.u32 %v5059, 2147483648
    %v5092 = vxor.u32 %v5060, 2147483648
    %v5093 = vxor.u32 %v5061, 2147483648
    %v5094 = vxor.u32 %v5062, 2147483648
    %v5095 = vxor.u32 %v5063, 2147483648
    %v5096 = vxor.u32 %v5064, 2147483648
    %v5097 = vxor.u32 %v5065, 2147483648
    %v5098 = vxor.u32 %v5066, 2147483648
    %v5099 = vxor.u32 %v5067, 2147483648
    %v5100 = vxor.u32 %v5068, 2147483648
    %v5101 = vxor.u32 %v5069, 2147483648
    %v5102 = vxor.u32 %v5070, 2147483648
    %v5103 = vxor.u32 %v5071, 2147483648
    %v5104 = vxor.u32 %v5072, 2147483648
    %v5105 = vxor.u32 %v5073, 2147483648
    %v5106 = vxor.u32 %v5074, 2147483648
    %v5107 = vxor.u32 %v5075, 2147483648
    %v5108 = vxor.u32 %v5076, 2147483648
    %v5109 = vxor.u32 %v5077, 2147483648
    %v5110 = vxor.u32 %v5078, 2147483648
    %v5111 = vxor.u32 %v5079, 2147483648
    %v5112 = vxor.u32 %v5080, 2147483648
    %v5113 = vxor.u32 %v5081, 2147483648
    %v5114 = vxor.u32 %v5082, 2147483648
    %v5115 = vxor.u32 %v5083, 2147483648
    %v5116 = vxor.u32 %v5084, 2147483648
    %v5117 = vxor.u32 %v5085, 2147483648
    %v5118 = vxor.u32 %v5086, 2147483648
    %v5119 = vxor.u32 %v5087, 2147483648
    %v5120 = vmul.f32 %v5088, 1.442695
    %v5121 = vpow.pop %v5120
    %v5122 = vmul.f32 %v5089, 1.442695
    %v5123 = vpow.pop %v5122
    %v5124 = vmul.f32 %v5090, 1.442695
    %v5125 = vpow.pop %v5124
    %v5126 = vmul.f32 %v5091, 1.442695
    %v5127 = vpow.pop %v5126
    %v5128 = vmul.f32 %v5092, 1.442695
    %v5129 = vpow.pop %v5128
    %v5130 = vmul.f32 %v5093, 1.442695
    %v5131 = vpow.pop %v5130
    %v5132 = vmul.f32 %v5094, 1.442695
    %v5133 = vpow.pop %v5132
    %v5134 = vmul.f32 %v5095, 1.442695
    %v5135 = vpow.pop %v5134
    %v5136 = vmul.f32 %v5096, 1.442695
    %v5137 = vpow.pop %v5136
    %v5138 = vmul.f32 %v5097, 1.442695
    %v5139 = vpow.pop %v5138
    %v5140 = vmul.f32 %v5098, 1.442695
    %v5141 = vpow.pop %v5140
    %v5142 = vmul.f32 %v5099, 1.442695
    %v5143 = vpow.pop %v5142
    %v5144 = vmul.f32 %v5100, 1.442695
    %v5145 = vpow.pop %v5144
    %v5146 = vmul.f32 %v5101, 1.442695
    %v5147 = vpow.pop %v5146
    %v5148 = vmul.f32 %v5102, 1.442695
    %v5149 = vpow.pop %v5148
    %v5150 = vmul.f32 %v5103, 1.442695
    %v5151 = vpow.pop %v5150
    %v5152 = vmul.f32 %v5104, 1.442695
    %v5153 = vpow.pop %v5152
    %v5154 = vmul.f32 %v5105, 1.442695
    %v5155 = vpow.pop %v5154
    %v5156 = vmul.f32 %v5106, 1.442695
    %v5157 = vpow.pop %v5156
    %v5158 = vmul.f32 %v5107, 1.442695
    %v5159 = vpow.pop %v5158
    %v5160 = vmul.f32 %v5108, 1.442695
    %v5161 = vpow.pop %v5160
    %v5162 = vmul.f32 %v5109, 1.442695
    %v5163 = vpow.pop %v5162
    %v5164 = vmul.f32 %v5110, 1.442695
    %v5165 = vpow.pop %v5164
    %v5166 = vmul.f32 %v5111, 1.442695
    %v5167 = vpow.pop %v5166
    %v5168 = vmul.f32 %v5112, 1.442695
    %v5169 = vpow.pop %v5168
    %v5170 = vmul.f32 %v5113, 1.442695
    %v5171 = vpow.pop %v5170
    %v5172 = vmul.f32 %v5114, 1.442695
    %v5173 = vpow.pop %v5172
    %v5174 = vmul.f32 %v5115, 1.442695
    %v5175 = vpow.pop %v5174
    %v5176 = vmul.f32 %v5116, 1.442695
    %v5177 = vpow.pop %v5176
    %v5178 = vmul.f32 %v5117, 1.442695
    %v5179 = vpow.pop %v5178
    %v5180 = vmul.f32 %v5118, 1.442695
    %v5181 = vpow.pop %v5180
    %v5182 = vmul.f32 %v5119, 1.442695
    %v5183 = vpow.pop %v5182
    %v5184 = vadd.f32 %v5121, 1.0
    %v5185 = vadd.f32 %v5123, 1.0
    %v5186 = vadd.f32 %v5125, 1.0
    %v5187 = vadd.f32 %v5127, 1.0
    %v5188 = vadd.f32 %v5129, 1.0
    %v5189 = vadd.f32 %v5131, 1.0
    %v5190 = vadd.f32 %v5133, 1.0
    %v5191 = vadd.f32 %v5135, 1.0
    %v5192 = vadd.f32 %v5137, 1.0
    %v5193 = vadd.f32 %v5139, 1.0
    %v5194 = vadd.f32 %v5141, 1.0
    %v5195 = vadd.f32 %v5143, 1.0
    %v5196 = vadd.f32 %v5145, 1.0
    %v5197 = vadd.f32 %v5147, 1.0
    %v5198 = vadd.f32 %v5149, 1.0
    %v5199 = vadd.f32 %v5151, 1.0
    %v5200 = vadd.f32 %v5153, 1.0
    %v5201 = vadd.f32 %v5155, 1.0
    %v5202 = vadd.f32 %v5157, 1.0
    %v5203 = vadd.f32 %v5159, 1.0
    %v5204 = vadd.f32 %v5161, 1.0
    %v5205 = vadd.f32 %v5163, 1.0
    %v5206 = vadd.f32 %v5165, 1.0
    %v5207 = vadd.f32 %v5167, 1.0
    %v5208 = vadd.f32 %v5169, 1.0
    %v5209 = vadd.f32 %v5171, 1.0
    %v5210 = vadd.f32 %v5173, 1.0
    %v5211 = vadd.f32 %v5175, 1.0
    %v5212 = vadd.f32 %v5177, 1.0
    %v5213 = vadd.f32 %v5179, 1.0
    %v5214 = vadd.f32 %v5181, 1.0
    %v5215 = vadd.f32 %v5183, 1.0
    %v5216 = vrcp.pop %v5184
    %v5217 = vmul.f32 1.0, %v5216
    %v5218 = vrcp.pop %v5185
    %v5219 = vmul.f32 1.0, %v5218
    %v5220 = vrcp.pop %v5186
    %v5221 = vmul.f32 1.0, %v5220
    %v5222 = vrcp.pop %v5187
    %v5223 = vmul.f32 1.0, %v5222
    %v5224 = vrcp.pop %v5188
    %v5225 = vmul.f32 1.0, %v5224
    %v5226 = vrcp.pop %v5189
    %v5227 = vmul.f32 1.0, %v5226
    %v5228 = vrcp.pop %v5190
    %v5229 = vmul.f32 1.0, %v5228
    %v5230 = vrcp.pop %v5191
    %v5231 = vmul.f32 1.0, %v5230
    %v5232 = vrcp.pop %v5192
    %v5233 = vmul.f32 1.0, %v5232
    %v5234 = vrcp.pop %v5193
    %v5235 = vmul.f32 1.0, %v5234
    %v5236 = vrcp.pop %v5194
    %v5237 = vmul.f32 1.0, %v5236
    %v5238 = vrcp.pop %v5195
    %v5239 = vmul.f32 1.0, %v5238
    %v5240 = vrcp.pop %v5196
    %v5241 = vmul.f32 1.0, %v5240
    %v5242 = vrcp.pop %v5197
    %v5243 = vmul.f32 1.0, %v5242
    %v5244 = vrcp.pop %v5198
    %v5245 = vmul.f32 1.0, %v5244
    %v5246 = vrcp.pop %v5199
    %v5247 = vmul.f32 1.0, %v5246
    %v5248 = vrcp.pop %v5200
    %v5249 = vmul.f32 1.0, %v5248
    %v5250 = vrcp.pop %v5201
    %v5251 = vmul.f32 1.0, %v5250
    %v5252 = vrcp.pop %v5202
    %v5253 = vmul.f32 1.0, %v5252
    %v5254 = vrcp.pop %v5203
    %v5255 = vmul.f32 1.0, %v5254
    %v5256 = vrcp.pop %v5204
    %v5257 = vmul.f32 1.0, %v5256
    %v5258 = vrcp.pop %v5205
    %v5259 = vmul.f32 1.0, %v5258
    %v5260 = vrcp.pop %v5206
    %v5261 = vmul.f32 1.0, %v5260
    %v5262 = vrcp.pop %v5207
    %v5263 = vmul.f32 1.0, %v5262
    %v5264 = vrcp.pop %v5208
    %v5265 = vmul.f32 1.0, %v5264
    %v5266 = vrcp.pop %v5209
    %v5267 = vmul.f32 1.0, %v5266
    %v5268 = vrcp.pop %v5210
    %v5269 = vmul.f32 1.0, %v5268
    %v5270 = vrcp.pop %v5211
    %v5271 = vmul.f32 1.0, %v5270
    %v5272 = vrcp.pop %v5212
    %v5273 = vmul.f32 1.0, %v5272
    %v5274 = vrcp.pop %v5213
    %v5275 = vmul.f32 1.0, %v5274
    %v5276 = vrcp.pop %v5214
    %v5277 = vmul.f32 1.0, %v5276
    %v5278 = vrcp.pop %v5215
    %v5279 = vmul.f32 1.0, %v5278
    %5312 = vrot.lane.b32.xlu0 %v4025, 32
    %v5313 = vpop.permute.xlu0 %5312
    %5314 = vrot.lane.b32.xlu0 %v4026, 32
    %v5315 = vpop.permute.xlu0 %5314
    %5316 = vrot.lane.b32.xlu0 %v4027, 32
    %v5317 = vpop.permute.xlu0 %5316
    %5318 = vrot.lane.b32.xlu0 %v4028, 32
    %v5319 = vpop.permute.xlu0 %5318
    %5320 = vrot.lane.b32.xlu0 %v4029, 32
    %v5321 = vpop.permute.xlu0 %5320
    %5322 = vrot.lane.b32.xlu0 %v4030, 32
    %v5323 = vpop.permute.xlu0 %5322
    %5324 = vrot.lane.b32.xlu0 %v4031, 32
    %v5325 = vpop.permute.xlu0 %5324
    %5326 = vrot.lane.b32.xlu0 %v4032, 32
    %v5327 = vpop.permute.xlu0 %5326
    %5328 = vrot.lane.b32.xlu0 %v4033, 32
    %v5329 = vpop.permute.xlu0 %5328
    %5330 = vrot.lane.b32.xlu0 %v4034, 32
    %v5331 = vpop.permute.xlu0 %5330
    %5332 = vrot.lane.b32.xlu0 %v4035, 32
    %v5333 = vpop.permute.xlu0 %5332
    %5334 = vrot.lane.b32.xlu0 %v4036, 32
    %v5335 = vpop.permute.xlu0 %5334
    %5336 = vrot.lane.b32.xlu0 %v4037, 32
    %v5337 = vpop.permute.xlu0 %5336
    %5338 = vrot.lane.b32.xlu0 %v4038, 32
    %v5339 = vpop.permute.xlu0 %5338
    %5340 = vrot.lane.b32.xlu0 %v4039, 32
    %v5341 = vpop.permute.xlu0 %5340
    %5342 = vrot.lane.b32.xlu0 %v4040, 32
    %v5343 = vpop.permute.xlu0 %5342
    %5344 = vrot.lane.b32.xlu0 %v4041, 32
    %v5345 = vpop.permute.xlu0 %5344
    %5346 = vrot.lane.b32.xlu0 %v4042, 32
    %v5347 = vpop.permute.xlu0 %5346
    %5348 = vrot.lane.b32.xlu0 %v4043, 32
    %v5349 = vpop.permute.xlu0 %5348
    %5350 = vrot.lane.b32.xlu0 %v4044, 32
    %v5351 = vpop.permute.xlu0 %5350
    %5352 = vrot.lane.b32.xlu0 %v4045, 32
    %v5353 = vpop.permute.xlu0 %5352
    %5354 = vrot.lane.b32.xlu0 %v4046, 32
    %v5355 = vpop.permute.xlu0 %5354
    %5356 = vrot.lane.b32.xlu0 %v4047, 32
    %v5357 = vpop.permute.xlu0 %5356
    %5358 = vrot.lane.b32.xlu0 %v4048, 32
    %v5359 = vpop.permute.xlu0 %5358
    %5360 = vrot.lane.b32.xlu0 %v4049, 32
    %v5361 = vpop.permute.xlu0 %5360
    %5362 = vrot.lane.b32.xlu0 %v4050, 32
    %v5363 = vpop.permute.xlu0 %5362
    %5364 = vrot.lane.b32.xlu0 %v4051, 32
    %v5365 = vpop.permute.xlu0 %5364
    %5366 = vrot.lane.b32.xlu0 %v4052, 32
    %v5367 = vpop.permute.xlu0 %5366
    %5368 = vrot.lane.b32.xlu0 %v4053, 32
    %v5369 = vpop.permute.xlu0 %5368
    %5370 = vrot.lane.b32.xlu0 %v4054, 32
    %v5371 = vpop.permute.xlu0 %5370
    %5372 = vrot.lane.b32.xlu0 %v4055, 32
    %v5373 = vpop.permute.xlu0 %5372
    %5374 = vrot.lane.b32.xlu0 %v4056, 32
    %v5375 = vpop.permute.xlu0 %5374
    %v5408 = vmul.f32 %v5217, %v5313
    %v5409 = vmul.f32 %v5219, %v5315
    %v5410 = vmul.f32 %v5221, %v5317
    %v5411 = vmul.f32 %v5223, %v5319
    %v5412 = vmul.f32 %v5225, %v5321
    %v5413 = vmul.f32 %v5227, %v5323
    %v5414 = vmul.f32 %v5229, %v5325
    %v5415 = vmul.f32 %v5231, %v5327
    %v5416 = vmul.f32 %v5233, %v5329
    %v5417 = vmul.f32 %v5235, %v5331
    %v5418 = vmul.f32 %v5237, %v5333
    %v5419 = vmul.f32 %v5239, %v5335
    %v5420 = vmul.f32 %v5241, %v5337
    %v5421 = vmul.f32 %v5243, %v5339
    %v5422 = vmul.f32 %v5245, %v5341
    %v5423 = vmul.f32 %v5247, %v5343
    %v5424 = vmul.f32 %v5249, %v5345
    %v5425 = vmul.f32 %v5251, %v5347
    %v5426 = vmul.f32 %v5253, %v5349
    %v5427 = vmul.f32 %v5255, %v5351
    %v5428 = vmul.f32 %v5257, %v5353
    %v5429 = vmul.f32 %v5259, %v5355
    %v5430 = vmul.f32 %v5261, %v5357
    %v5431 = vmul.f32 %v5263, %v5359
    %v5432 = vmul.f32 %v5265, %v5361
    %v5433 = vmul.f32 %v5267, %v5363
    %v5434 = vmul.f32 %v5269, %v5365
    %v5435 = vmul.f32 %v5271, %v5367
    %v5436 = vmul.f32 %v5273, %v5369
    %v5437 = vmul.f32 %v5275, %v5371
    %v5438 = vmul.f32 %v5277, %v5373
    %v5439 = vmul.f32 %v5279, %v5375
    %v5440 = vpack.c.bf16 %v5409, %v5408
    %v5441 = vpack.c.bf16 %v5411, %v5410
    %v5442 = vpack.c.bf16 %v5413, %v5412
    %v5443 = vpack.c.bf16 %v5415, %v5414
    %v5444 = vpack.c.bf16 %v5417, %v5416
    %v5445 = vpack.c.bf16 %v5419, %v5418
    %v5446 = vpack.c.bf16 %v5421, %v5420
    %v5447 = vpack.c.bf16 %v5423, %v5422
    %v5448 = vpack.c.bf16 %v5425, %v5424
    %v5449 = vpack.c.bf16 %v5427, %v5426
    %v5450 = vpack.c.bf16 %v5429, %v5428
    %v5451 = vpack.c.bf16 %v5431, %v5430
    %v5452 = vpack.c.bf16 %v5433, %v5432
    %v5453 = vpack.c.bf16 %v5435, %v5434
    %v5454 = vpack.c.bf16 %v5437, %v5436
    %v5455 = vpack.c.bf16 %v5439, %v5438
    %5464 = vrot.lane.b32.xlu0 %v5440, 96
    %v5465 = vpop.permute.xlu0 %5464
    %5466 = vrot.lane.b32.xlu0 %v5441, 96
    %v5467 = vpop.permute.xlu0 %5466
    %5468 = vrot.lane.b32.xlu0 %v5442, 96
    %v5469 = vpop.permute.xlu0 %5468
    %5470 = vrot.lane.b32.xlu0 %v5443, 96
    %v5471 = vpop.permute.xlu0 %5470
    %5472 = vrot.lane.b32.xlu0 %v5444, 96
    %v5473 = vpop.permute.xlu0 %5472
    %5474 = vrot.lane.b32.xlu0 %v5445, 96
    %v5475 = vpop.permute.xlu0 %5474
    %5476 = vrot.lane.b32.xlu0 %v5446, 96
    %v5477 = vpop.permute.xlu0 %5476
    %5478 = vrot.lane.b32.xlu0 %v5447, 96
    %v5479 = vpop.permute.xlu0 %5478
    %5480 = vrot.lane.b32.xlu0 %v5465, 32
    %v5481 = vpop.permute.xlu0 %5480
    %5482 = vrot.lane.b32.xlu0 %v5467, 32
    %v5483 = vpop.permute.xlu0 %5482
    %5484 = vrot.lane.b32.xlu0 %v5469, 32
    %v5485 = vpop.permute.xlu0 %5484
    %5486 = vrot.lane.b32.xlu0 %v5471, 32
    %v5487 = vpop.permute.xlu0 %5486
    %5488 = vrot.lane.b32.xlu0 %v5473, 32
    %v5489 = vpop.permute.xlu0 %5488
    %5490 = vrot.lane.b32.xlu0 %v5475, 32
    %v5491 = vpop.permute.xlu0 %5490
    %5492 = vrot.lane.b32.xlu0 %v5477, 32
    %v5493 = vpop.permute.xlu0 %5492
    %5494 = vrot.lane.b32.xlu0 %v5465, 64
    %v5495 = vpop.permute.xlu0 %5494
    %5496 = vrot.lane.b32.xlu0 %v5467, 64
    %v5497 = vpop.permute.xlu0 %5496
    %5498 = vrot.lane.b32.xlu0 %v5469, 64
    %v5499 = vpop.permute.xlu0 %5498
    %5500 = vrot.lane.b32.xlu0 %v5471, 64
    %v5501 = vpop.permute.xlu0 %5500
    %5502 = vrot.lane.b32.xlu0 %v5473, 64
    %v5503 = vpop.permute.xlu0 %5502
    %5504 = vrot.lane.b32.xlu0 %v5475, 64
    %v5505 = vpop.permute.xlu0 %5504
    %5506 = vrot.lane.b32.xlu0 %v5477, 64
    %v5507 = vpop.permute.xlu0 %5506
    %5508 = vrot.lane.b32.xlu0 %v5479, 64
    %v5509 = vpop.permute.xlu0 %5508
    %5510 = vrot.lane.b32.xlu0 %v5467, 96
    %v5511 = vpop.permute.xlu0 %5510
    %5512 = vrot.lane.b32.xlu0 %v5469, 96
    %v5513 = vpop.permute.xlu0 %5512
    %5514 = vrot.lane.b32.xlu0 %v5471, 96
    %v5515 = vpop.permute.xlu0 %5514
    %5516 = vrot.lane.b32.xlu0 %v5473, 96
    %v5517 = vpop.permute.xlu0 %5516
    %5518 = vrot.lane.b32.xlu0 %v5475, 96
    %v5519 = vpop.permute.xlu0 %5518
    %5520 = vrot.lane.b32.xlu0 %v5477, 96
    %v5521 = vpop.permute.xlu0 %5520
    %5522 = vrot.lane.b32.xlu0 %v5479, 96
    %v5523 = vpop.permute.xlu0 %5522
    %v5525 = vsel %vm517, 0, %v5481
    %v5528 = vsel %vm517, %v5465, %v5483
    %v5531 = vsel %vm517, %v5467, %v5485
    %v5534 = vsel %vm517, %v5469, %v5487
    %v5537 = vsel %vm517, %v5471, %v5489
    %v5540 = vsel %vm517, %v5473, %v5491
    %v5543 = vsel %vm517, %v5475, %v5493
    %v5545 = vsel %vm534, %v4107, %v5495
    %v5547 = vsel %vm534, %v5525, %v5497
    %v5549 = vsel %vm534, %v5528, %v5499
    %v5551 = vsel %vm534, %v5531, %v5501
    %v5553 = vsel %vm534, %v5534, %v5503
    %v5555 = vsel %vm534, %v5537, %v5505
    %v5557 = vsel %vm534, %v5540, %v5507
    %v5559 = vsel %vm534, %v5543, %v5509
    %v5561 = vsel %vm551, %v5545, %v5511
    %v5564 = vsel %vm551, %v5547, %v5513
    %v5567 = vsel %vm551, %v5549, %v5515
    %v5570 = vsel %vm551, %v5551, %v5517
    %v5573 = vsel %vm551, %v5553, %v5519
    %v5576 = vsel %vm551, %v5555, %v5521
    %v5579 = vsel %vm551, %v5557, %v5523
    %v5581 = vsel %vm551, %v5559, %v4105
    %5591 = vrot.lane.b32.xlu0 %v5448, 96
    %v5592 = vpop.permute.xlu0 %5591
    %5593 = vrot.lane.b32.xlu0 %v5449, 96
    %v5594 = vpop.permute.xlu0 %5593
    %5595 = vrot.lane.b32.xlu0 %v5450, 96
    %v5596 = vpop.permute.xlu0 %5595
    %5597 = vrot.lane.b32.xlu0 %v5451, 96
    %v5598 = vpop.permute.xlu0 %5597
    %5599 = vrot.lane.b32.xlu0 %v5452, 96
    %v5600 = vpop.permute.xlu0 %5599
    %5601 = vrot.lane.b32.xlu0 %v5453, 96
    %v5602 = vpop.permute.xlu0 %5601
    %5603 = vrot.lane.b32.xlu0 %v5454, 96
    %v5604 = vpop.permute.xlu0 %5603
    %5605 = vrot.lane.b32.xlu0 %v5455, 96
    %v5606 = vpop.permute.xlu0 %5605
    %5607 = vrot.lane.b32.xlu0 %v5592, 32
    %v5608 = vpop.permute.xlu0 %5607
    %5609 = vrot.lane.b32.xlu0 %v5594, 32
    %v5610 = vpop.permute.xlu0 %5609
    %5611 = vrot.lane.b32.xlu0 %v5596, 32
    %v5612 = vpop.permute.xlu0 %5611
    %5613 = vrot.lane.b32.xlu0 %v5598, 32
    %v5614 = vpop.permute.xlu0 %5613
    %5615 = vrot.lane.b32.xlu0 %v5600, 32
    %v5616 = vpop.permute.xlu0 %5615
    %5617 = vrot.lane.b32.xlu0 %v5602, 32
    %v5618 = vpop.permute.xlu0 %5617
    %5619 = vrot.lane.b32.xlu0 %v5604, 32
    %v5620 = vpop.permute.xlu0 %5619
    %5621 = vrot.lane.b32.xlu0 %v5592, 64
    %v5622 = vpop.permute.xlu0 %5621
    %5623 = vrot.lane.b32.xlu0 %v5594, 64
    %v5624 = vpop.permute.xlu0 %5623
    %5625 = vrot.lane.b32.xlu0 %v5596, 64
    %v5626 = vpop.permute.xlu0 %5625
    %5627 = vrot.lane.b32.xlu0 %v5598, 64
    %v5628 = vpop.permute.xlu0 %5627
    %5629 = vrot.lane.b32.xlu0 %v5600, 64
    %v5630 = vpop.permute.xlu0 %5629
    %5631 = vrot.lane.b32.xlu0 %v5602, 64
    %v5632 = vpop.permute.xlu0 %5631
    %5633 = vrot.lane.b32.xlu0 %v5604, 64
    %v5634 = vpop.permute.xlu0 %5633
    %5635 = vrot.lane.b32.xlu0 %v5606, 64
    %v5636 = vpop.permute.xlu0 %5635
    %5637 = vrot.lane.b32.xlu0 %v5594, 96
    %v5638 = vpop.permute.xlu0 %5637
    %5639 = vrot.lane.b32.xlu0 %v5596, 96
    %v5640 = vpop.permute.xlu0 %5639
    %5641 = vrot.lane.b32.xlu0 %v5598, 96
    %v5642 = vpop.permute.xlu0 %5641
    %5643 = vrot.lane.b32.xlu0 %v5600, 96
    %v5644 = vpop.permute.xlu0 %5643
    %5645 = vrot.lane.b32.xlu0 %v5602, 96
    %v5646 = vpop.permute.xlu0 %5645
    %5647 = vrot.lane.b32.xlu0 %v5604, 96
    %v5648 = vpop.permute.xlu0 %5647
    %5649 = vrot.lane.b32.xlu0 %v5606, 96
    %v5650 = vpop.permute.xlu0 %5649
    %v5652 = vsel %vm517, 0, %v5608
    %v5655 = vsel %vm517, %v5592, %v5610
    %v5658 = vsel %vm517, %v5594, %v5612
    %v5661 = vsel %vm517, %v5596, %v5614
    %v5664 = vsel %vm517, %v5598, %v5616
    %v5667 = vsel %vm517, %v5600, %v5618
    %v5670 = vsel %vm517, %v5602, %v5620
    %v5672 = vsel %vm534, %v4107, %v5622
    %v5674 = vsel %vm534, %v5652, %v5624
    %v5676 = vsel %vm534, %v5655, %v5626
    %v5678 = vsel %vm534, %v5658, %v5628
    %v5680 = vsel %vm534, %v5661, %v5630
    %v5682 = vsel %vm534, %v5664, %v5632
    %v5684 = vsel %vm534, %v5667, %v5634
    %v5686 = vsel %vm534, %v5670, %v5636
    %v5688 = vsel %vm551, %v5672, %v5638
    %v5691 = vsel %vm551, %v5674, %v5640
    %v5694 = vsel %vm551, %v5676, %v5642
    %v5697 = vsel %vm551, %v5678, %v5644
    %v5700 = vsel %vm551, %v5680, %v5646
    %v5703 = vsel %vm551, %v5682, %v5648
    %v5706 = vsel %vm551, %v5684, %v5650
    %v5708 = vsel %vm551, %v5686, %v4105
    %v5710 = vld [vmem:[#allocation10] sm:$0xf]
    %v5711 = vld [vmem:[#allocation10 + $0x4] sm:$0xf]
    %v5712 = vld [vmem:[#allocation10 + $0x8] sm:$0xf]
    %v5713 = vld [vmem:[#allocation10 + $0xc] sm:$0xf]
    %v5714 = vld [vmem:[#allocation10 + $0x10] sm:$0xf]
    %v5715 = vld [vmem:[#allocation10 + $0x14] sm:$0xf]
    %v5716 = vld [vmem:[#allocation10 + $0x18] sm:$0xf]
    %v5717 = vld [vmem:[#allocation10 + $0x1c] sm:$0xf]
    %v5718 = vld [vmem:[#allocation10 + $0x20] sm:$0xf]
    %v5719 = vld [vmem:[#allocation10 + $0x24] sm:$0xf]
    %v5720 = vld [vmem:[#allocation10 + $0x28] sm:$0xf]
    %v5721 = vld [vmem:[#allocation10 + $0x2c] sm:$0xf]
    %v5722 = vld [vmem:[#allocation10 + $0x30] sm:$0xf]
    %v5723 = vld [vmem:[#allocation10 + $0x34] sm:$0xf]
    %v5724 = vld [vmem:[#allocation10 + $0x38] sm:$0xf]
    %v5725 = vld [vmem:[#allocation10 + $0x3c] sm:$0xf]
    %v5726 = vld [vmem:[#allocation10 + $0x40] sm:$0xf]
    %v5727 = vld [vmem:[#allocation10 + $0x44] sm:$0xf]
    %v5728 = vld [vmem:[#allocation10 + $0x48] sm:$0xf]
    %v5729 = vld [vmem:[#allocation10 + $0x4c] sm:$0xf]
    %v5750 = vunpack.c.l.b16 %v5710
    %v5751 = vunpack.c.l.b16 %v5711
    %v5752 = vunpack.c.l.b16 %v5712
    %v5753 = vunpack.c.l.b16 %v5713
    %v5754 = vunpack.c.l.b16 %v5714
    %v5755 = vunpack.c.l.b16 %v5715
    %v5756 = vunpack.c.l.b16 %v5716
    %v5757 = vunpack.c.l.b16 %v5717
    %v5758 = vunpack.c.l.b16 %v5718
    %v5759 = vunpack.c.l.b16 %v5719
    %v5760 = vunpack.c.l.b16 %v5720
    %v5761 = vunpack.c.l.b16 %v5721
    %v5762 = vunpack.c.l.b16 %v5722
    %v5763 = vunpack.c.l.b16 %v5723
    %v5764 = vunpack.c.l.b16 %v5724
    %v5765 = vunpack.c.l.b16 %v5725
    %v5766 = vunpack.c.l.b16 %v5726
    %v5767 = vunpack.c.l.b16 %v5727
    %v5768 = vunpack.c.l.b16 %v5728
    %v5769 = vunpack.c.l.b16 %v5729
    %v5770 = vpack.c.b16 %v5751, %v5750
    %v5771 = vpack.c.b16 %v5753, %v5752
    %v5772 = vpack.c.b16 %v5755, %v5754
    %v5773 = vpack.c.b16 %v5757, %v5756
    %v5774 = vpack.c.b16 %v5759, %v5758
    %v5775 = vpack.c.b16 %v5761, %v5760
    %v5776 = vpack.c.b16 %v5763, %v5762
    %v5777 = vpack.c.b16 %v5765, %v5764
    %v5778 = vpack.c.b16 %v5767, %v5766
    %v5779 = vpack.c.b16 %v5769, %v5768
    %5822 = vrot.lane.b32.xlu0 %v4416, 64
    %v5823 = vpop.permute.xlu0 %5822
    %5824 = vrot.lane.b32.xlu0 %v4419, 64
    %v5825 = vpop.permute.xlu0 %5824
    %5826 = vrot.lane.b32.xlu0 %v4424, 64
    %v5827 = vpop.permute.xlu0 %5826
    %5828 = vrot.lane.b32.xlu0 %v4427, 64
    %v5829 = vpop.permute.xlu0 %5828
    %5830 = vrot.lane.b32.xlu0 %v4432, 64
    %v5831 = vpop.permute.xlu0 %5830
    %5832 = vrot.lane.b32.xlu0 %v4435, 64
    %v5833 = vpop.permute.xlu0 %5832
    %5834 = vrot.lane.b32.xlu0 %v4440, 64
    %v5835 = vpop.permute.xlu0 %5834
    %5836 = vrot.lane.b32.xlu0 %v4443, 64
    %v5837 = vpop.permute.xlu0 %5836
    %5838 = vrot.lane.b32.xlu0 %v4448, 64
    %v5839 = vpop.permute.xlu0 %5838
    %5840 = vrot.lane.b32.xlu0 %v4451, 64
    %v5841 = vpop.permute.xlu0 %5840
    %5842 = vrot.lane.b32.xlu0 %v4456, 64
    %v5843 = vpop.permute.xlu0 %5842
    %5844 = vrot.lane.b32.xlu0 %v4459, 64
    %v5845 = vpop.permute.xlu0 %5844
    %5846 = vrot.lane.b32.xlu0 %v4464, 64
    %v5847 = vpop.permute.xlu0 %5846
    %5848 = vrot.lane.b32.xlu0 %v4467, 64
    %v5849 = vpop.permute.xlu0 %5848
    %5850 = vrot.lane.b32.xlu0 %v4472, 64
    %v5851 = vpop.permute.xlu0 %5850
    %5852 = vrot.lane.b32.xlu0 %v4475, 64
    %v5853 = vpop.permute.xlu0 %5852
    %5854 = vrot.lane.b32.xlu0 %v4480, 64
    %v5855 = vpop.permute.xlu0 %5854
    %5856 = vrot.lane.b32.xlu0 %v4483, 64
    %v5857 = vpop.permute.xlu0 %5856
    %5858 = vrot.lane.b32.xlu0 %v4488, 64
    %v5859 = vpop.permute.xlu0 %5858
    %5860 = vrot.lane.b32.xlu0 %v4491, 64
    %v5861 = vpop.permute.xlu0 %5860
    %5862 = vrot.lane.b32.xlu0 %v4496, 64
    %v5863 = vpop.permute.xlu0 %5862
    %5864 = vrot.lane.b32.xlu0 %v4499, 64
    %v5865 = vpop.permute.xlu0 %5864
    %5866 = vrot.lane.b32.xlu0 %v4504, 64
    %v5867 = vpop.permute.xlu0 %5866
    %5868 = vrot.lane.b32.xlu0 %v4507, 64
    %v5869 = vpop.permute.xlu0 %5868
    %5870 = vrot.lane.b32.xlu0 %v4512, 64
    %v5871 = vpop.permute.xlu0 %5870
    %5872 = vrot.lane.b32.xlu0 %v4515, 64
    %v5873 = vpop.permute.xlu0 %5872
    %5874 = vrot.lane.b32.xlu0 %v4520, 64
    %v5875 = vpop.permute.xlu0 %5874
    %5876 = vrot.lane.b32.xlu0 %v4523, 64
    %v5877 = vpop.permute.xlu0 %5876
    %5878 = vrot.lane.b32.xlu0 %v4528, 64
    %v5879 = vpop.permute.xlu0 %5878
    %5880 = vrot.lane.b32.xlu0 %v4531, 64
    %v5881 = vpop.permute.xlu0 %5880
    %5882 = vrot.lane.b32.xlu0 %v4536, 64
    %v5883 = vpop.permute.xlu0 %5882
    %5884 = vrot.lane.b32.xlu0 %v4539, 64
    %v5885 = vpop.permute.xlu0 %5884
    %v5918 = vsel %vm517, %v5469, 0
    %v5920 = vsel %vm517, %v5471, 0
    %v5922 = vsel %vm517, %v5473, 0
    %v5924 = vsel %vm517, %v5475, 0
    %v5927 = vsel %vm517, %v5477, 0
    %v5930 = vsel %vm517, %v5479, 0
    %v5932 = vsel %vm517, %v5596, 0
    %v5934 = vsel %vm517, %v5598, 0
    %v5936 = vsel %vm517, %v5600, 0
    %v5938 = vsel %vm517, %v5602, 0
    %v5941 = vsel %vm517, %v5604, 0
    %v5944 = vsel %vm517, %v5606, 0
    %5946 = vmatprep.subr.bf16.mxu0 0
    %5947 = vmatpush1.bf16.msra.mxu0 %v5777
    %5948 = vmatprep.subr.bf16.mxu0 0
    %5949 = vmatpush1.bf16.msra.mxu0 %v5776
    %5950 = vmatprep.subr.bf16.mxu0 0
    %5951 = vmatpush1.bf16.msra.mxu0 %v5775
    %5952 = vmatprep.subr.bf16.mxu0 0
    %5953 = vmatpush1.bf16.msra.mxu0 %v5774
    %5954 = vmatprep.subr.bf16.mxu0 0
    %5955 = vmatpush1.bf16.msra.mxu0 %v5773
    %5956 = vmatprep.subr.bf16.mxu0 0
    %5957 = vmatpush1.bf16.msra.mxu0 %v5772
    %5958 = vmatprep.subr.bf16.mxu0 0
    %5959 = vmatpush1.bf16.msra.mxu0 %v5771
    %5960 = vmatprep.subr.bf16.mxu0 0
    %5961 = vmatpush1.bf16.msra.mxu0 %v5770
    %5962 = vmatprep.subr.bf16.mxu0 0
    %5963 = vmatpush2.bf16.msra.mxu0 0
    %5964 = vmatprep.subr.bf16.mxu0 0
    %5965 = vmatpush2.bf16.msra.mxu0 0
    %5966 = vmatprep.subr.bf16.mxu0 0
    %5967 = vmatpush2.bf16.msra.mxu0 0
    %5968 = vmatprep.subr.bf16.mxu0 0
    %5969 = vmatpush2.bf16.msra.mxu0 0
    %5970 = vmatprep.subr.bf16.mxu0 0
    %5971 = vmatpush2.bf16.msra.mxu0 0
    %5972 = vmatprep.subr.bf16.mxu0 0
    %5973 = vmatpush2.bf16.msra.mxu0 0
    %5974 = vmatprep.subr.bf16.mxu0 0
    %5975 = vmatpush2.bf16.msra.mxu0 %v5779
    %5976 = vmatprep.subr.bf16.mxu0 0
    %5977 = vmatpush2.bf16.msra.mxu0 %v5778
    %5978 = vmatprep.mubr.bf16.mxu0 %v5918
    %5979 = vmatmul.mubr.bf16.gmra.mxu0 %v5561
    %v5980 = vpop.f32.mrf.mxu0
    %v5981 = vadd.f32 %v5823, %v5980
    %v5982 = vpop.f32.mrf.mxu0
    %v5983 = vpop.f32.mrf.mxu0
    %v5984 = vadd.f32 %v5825, %v5983
    %v5985 = vpop.f32.mrf.mxu0
    %5986 = vmatprep.mubr.bf16.mxu0 %v5920
    %5987 = vmatmul.mubr.bf16.gmra.mxu0 %v5564
    %v5988 = vpop.f32.mrf.mxu0
    %v5989 = vadd.f32 %v5827, %v5988
    %v5990 = vpop.f32.mrf.mxu0
    %v5991 = vpop.f32.mrf.mxu0
    %v5992 = vadd.f32 %v5829, %v5991
    %v5993 = vpop.f32.mrf.mxu0
    %5994 = vmatprep.mubr.bf16.mxu0 %v5922
    %5995 = vmatmul.mubr.bf16.gmra.mxu0 %v5567
    %v5996 = vpop.f32.mrf.mxu0
    %v5997 = vadd.f32 %v5831, %v5996
    %v5998 = vpop.f32.mrf.mxu0
    %v5999 = vpop.f32.mrf.mxu0
    %v6000 = vadd.f32 %v5833, %v5999
    %v6001 = vpop.f32.mrf.mxu0
    %6002 = vmatprep.mubr.bf16.mxu0 %v5924
    %6003 = vmatmul.mubr.bf16.gmra.mxu0 %v5570
    %v6004 = vpop.f32.mrf.mxu0
    %v6005 = vadd.f32 %v5835, %v6004
    %v6006 = vpop.f32.mrf.mxu0
    %v6007 = vpop.f32.mrf.mxu0
    %v6008 = vadd.f32 %v5837, %v6007
    %v6009 = vpop.f32.mrf.mxu0
    %6010 = vmatprep.mubr.bf16.mxu0 %v5927
    %6011 = vmatmul.mubr.bf16.gmra.mxu0 %v5573
    %v6012 = vpop.f32.mrf.mxu0
    %v6013 = vadd.f32 %v5839, %v6012
    %v6014 = vpop.f32.mrf.mxu0
    %v6015 = vpop.f32.mrf.mxu0
    %v6016 = vadd.f32 %v5841, %v6015
    %v6017 = vpop.f32.mrf.mxu0
    %6018 = vmatprep.mubr.bf16.mxu0 %v5930
    %6019 = vmatmul.mubr.bf16.gmra.mxu0 %v5576
    %v6020 = vpop.f32.mrf.mxu0
    %v6021 = vadd.f32 %v5843, %v6020
    %v6022 = vpop.f32.mrf.mxu0
    %v6023 = vpop.f32.mrf.mxu0
    %v6024 = vadd.f32 %v5845, %v6023
    %v6025 = vpop.f32.mrf.mxu0
    %6026 = vmatprep.mubr.bf16.mxu0 %v4365
    %6027 = vmatmul.mubr.bf16.gmra.mxu0 %v5579
    %v6028 = vpop.f32.mrf.mxu0
    %v6029 = vadd.f32 %v5847, %v6028
    %v6030 = vpop.f32.mrf.mxu0
    %v6031 = vpop.f32.mrf.mxu0
    %v6032 = vadd.f32 %v5849, %v6031
    %v6033 = vpop.f32.mrf.mxu0
    %6034 = vmatprep.mubr.bf16.mxu0 %v4365
    %6035 = vmatmul.mubr.bf16.gmra.mxu0 %v5581
    %v6036 = vpop.f32.mrf.mxu0
    %v6037 = vadd.f32 %v5851, %v6036
    %v6038 = vpop.f32.mrf.mxu0
    %v6039 = vpop.f32.mrf.mxu0
    %v6040 = vadd.f32 %v5853, %v6039
    %v6041 = vpop.f32.mrf.mxu0
    %6042 = vmatprep.mubr.bf16.mxu0 %v5932
    %6043 = vmatmul.mubr.bf16.gmra.mxu0 %v5688
    %v6044 = vpop.f32.mrf.mxu0
    %v6045 = vadd.f32 %v5855, %v6044
    %v6046 = vpop.f32.mrf.mxu0
    %v6047 = vpop.f32.mrf.mxu0
    %v6048 = vadd.f32 %v5857, %v6047
    %v6049 = vpop.f32.mrf.mxu0
    %6050 = vmatprep.mubr.bf16.mxu0 %v5934
    %6051 = vmatmul.mubr.bf16.gmra.mxu0 %v5691
    %v6052 = vpop.f32.mrf.mxu0
    %v6053 = vadd.f32 %v5859, %v6052
    %v6054 = vpop.f32.mrf.mxu0
    %v6055 = vpop.f32.mrf.mxu0
    %v6056 = vadd.f32 %v5861, %v6055
    %v6057 = vpop.f32.mrf.mxu0
    %6058 = vmatprep.mubr.bf16.mxu0 %v5936
    %6059 = vmatmul.mubr.bf16.gmra.mxu0 %v5694
    %v6060 = vpop.f32.mrf.mxu0
    %v6061 = vadd.f32 %v5863, %v6060
    %v6062 = vpop.f32.mrf.mxu0
    %v6063 = vpop.f32.mrf.mxu0
    %v6064 = vadd.f32 %v5865, %v6063
    %v6065 = vpop.f32.mrf.mxu0
    %6066 = vmatprep.mubr.bf16.mxu0 %v5938
    %6067 = vmatmul.mubr.bf16.gmra.mxu0 %v5697
    %v6068 = vpop.f32.mrf.mxu0
    %v6069 = vadd.f32 %v5867, %v6068
    %v6070 = vpop.f32.mrf.mxu0
    %v6071 = vpop.f32.mrf.mxu0
    %v6072 = vadd.f32 %v5869, %v6071
    %v6073 = vpop.f32.mrf.mxu0
    %6074 = vmatprep.mubr.bf16.mxu0 %v5941
    %6075 = vmatmul.mubr.bf16.gmra.mxu0 %v5700
    %v6076 = vpop.f32.mrf.mxu0
    %v6077 = vadd.f32 %v5871, %v6076
    %v6078 = vpop.f32.mrf.mxu0
    %v6079 = vpop.f32.mrf.mxu0
    %v6080 = vadd.f32 %v5873, %v6079
    %v6081 = vpop.f32.mrf.mxu0
    %6082 = vmatprep.mubr.bf16.mxu0 %v5944
    %6083 = vmatmul.mubr.bf16.gmra.mxu0 %v5703
    %v6084 = vpop.f32.mrf.mxu0
    %v6085 = vadd.f32 %v5875, %v6084
    %v6086 = vpop.f32.mrf.mxu0
    %v6087 = vpop.f32.mrf.mxu0
    %v6088 = vadd.f32 %v5877, %v6087
    %v6089 = vpop.f32.mrf.mxu0
    %6090 = vmatprep.mubr.bf16.mxu0 %v4365
    %6091 = vmatmul.mubr.bf16.gmra.mxu0 %v5706
    %v6092 = vpop.f32.mrf.mxu0
    %v6093 = vadd.f32 %v5879, %v6092
    %v6094 = vpop.f32.mrf.mxu0
    %v6095 = vpop.f32.mrf.mxu0
    %v6096 = vadd.f32 %v5881, %v6095
    %v6097 = vpop.f32.mrf.mxu0
    %6098 = vmatprep.mubr.bf16.mxu0 %v4365
    %6099 = vmatmul.mubr.bf16.gmra.mxu0 %v5708
    %v6100 = vpop.f32.mrf.mxu0
    %v6101 = vadd.f32 %v5883, %v6100
    %v6102 = vpop.f32.mrf.mxu0
    %v6103 = vpop.f32.mrf.mxu0
    %v6104 = vadd.f32 %v5885, %v6103
    %v6105 = vpop.f32.mrf.mxu0
    %6106 = vdwg.mxu0
    %v6107 = vld [vmem:[%s11] sm:$0x1]
    %v6109 = vlaneseq
    %v6110 = vshrl.u32 %v6109, 7
    %v6111 = vsub.s32 0, %v6110
    %v6112 = vrot.slane %v6107, %v6111
    %v6114 = vadd.f32 %v5981, %v6112
    %v6115 = vadd.f32 %v5984, %v6112
    %v6116 = vadd.f32 %v5989, %v6112
    %v6117 = vadd.f32 %v5992, %v6112
    %v6118 = vadd.f32 %v5997, %v6112
    %v6119 = vadd.f32 %v6000, %v6112
    %v6120 = vadd.f32 %v6005, %v6112
    %v6121 = vadd.f32 %v6008, %v6112
    %v6122 = vadd.f32 %v6013, %v6112
    %v6123 = vadd.f32 %v6016, %v6112
    %v6124 = vadd.f32 %v6021, %v6112
    %v6125 = vadd.f32 %v6024, %v6112
    %v6126 = vadd.f32 %v6029, %v6112
    %v6127 = vadd.f32 %v6032, %v6112
    %v6128 = vadd.f32 %v6037, %v6112
    %v6129 = vadd.f32 %v6040, %v6112
    %v6130 = vadd.f32 %v6045, %v6112
    %v6131 = vadd.f32 %v6048, %v6112
    %v6132 = vadd.f32 %v6053, %v6112
    %v6133 = vadd.f32 %v6056, %v6112
    %v6134 = vadd.f32 %v6061, %v6112
    %v6135 = vadd.f32 %v6064, %v6112
    %v6136 = vadd.f32 %v6069, %v6112
    %v6137 = vadd.f32 %v6072, %v6112
    %v6138 = vadd.f32 %v6077, %v6112
    %v6139 = vadd.f32 %v6080, %v6112
    %v6140 = vadd.f32 %v6085, %v6112
    %v6141 = vadd.f32 %v6088, %v6112
    %v6142 = vadd.f32 %v6093, %v6112
    %v6143 = vadd.f32 %v6096, %v6112
    %v6144 = vadd.f32 %v6101, %v6112
    %v6145 = vadd.f32 %v6104, %v6112
    %v6146 = vtanh.pop %v6114
    %v6147 = vtanh.pop %v6115
    %v6148 = vtanh.pop %v6116
    %v6149 = vtanh.pop %v6117
    %v6150 = vtanh.pop %v6118
    %v6151 = vtanh.pop %v6119
    %v6152 = vtanh.pop %v6120
    %v6153 = vtanh.pop %v6121
    %v6154 = vtanh.pop %v6122
    %v6155 = vtanh.pop %v6123
    %v6156 = vtanh.pop %v6124
    %v6157 = vtanh.pop %v6125
    %v6158 = vtanh.pop %v6126
    %v6159 = vtanh.pop %v6127
    %v6160 = vtanh.pop %v6128
    %v6161 = vtanh.pop %v6129
    %v6162 = vtanh.pop %v6130
    %v6163 = vtanh.pop %v6131
    %v6164 = vtanh.pop %v6132
    %v6165 = vtanh.pop %v6133
    %v6166 = vtanh.pop %v6134
    %v6167 = vtanh.pop %v6135
    %v6168 = vtanh.pop %v6136
    %v6169 = vtanh.pop %v6137
    %v6170 = vtanh.pop %v6138
    %v6171 = vtanh.pop %v6139
    %v6172 = vtanh.pop %v6140
    %v6173 = vtanh.pop %v6141
    %v6174 = vtanh.pop %v6142
    %v6175 = vtanh.pop %v6143
    %v6176 = vtanh.pop %v6144
    %v6177 = vtanh.pop %v6145
    %v6178 = vsub.f32 1.0, %v5217
    %v6179 = vsub.f32 1.0, %v5219
    %v6180 = vsub.f32 1.0, %v5221
    %v6181 = vsub.f32 1.0, %v5223
    %v6182 = vsub.f32 1.0, %v5225
    %v6183 = vsub.f32 1.0, %v5227
    %v6184 = vsub.f32 1.0, %v5229
    %v6185 = vsub.f32 1.0, %v5231
    %v6186 = vsub.f32 1.0, %v5233
    %v6187 = vsub.f32 1.0, %v5235
    %v6188 = vsub.f32 1.0, %v5237
    %v6189 = vsub.f32 1.0, %v5239
    %v6190 = vsub.f32 1.0, %v5241
    %v6191 = vsub.f32 1.0, %v5243
    %v6192 = vsub.f32 1.0, %v5245
    %v6193 = vsub.f32 1.0, %v5247
    %v6194 = vsub.f32 1.0, %v5249
    %v6195 = vsub.f32 1.0, %v5251
    %v6196 = vsub.f32 1.0, %v5253
    %v6197 = vsub.f32 1.0, %v5255
    %v6198 = vsub.f32 1.0, %v5257
    %v6199 = vsub.f32 1.0, %v5259
    %v6200 = vsub.f32 1.0, %v5261
    %v6201 = vsub.f32 1.0, %v5263
    %v6202 = vsub.f32 1.0, %v5265
    %v6203 = vsub.f32 1.0, %v5267
    %v6204 = vsub.f32 1.0, %v5269
    %v6205 = vsub.f32 1.0, %v5271
    %v6206 = vsub.f32 1.0, %v5273
    %v6207 = vsub.f32 1.0, %v5275
    %v6208 = vsub.f32 1.0, %v5277
    %v6209 = vsub.f32 1.0, %v5279
    %v6210 = vmul.f32 %v6178, %v4025
    %v6211 = vmul.f32 %v6179, %v4026
    %v6212 = vmul.f32 %v6180, %v4027
    %v6213 = vmul.f32 %v6181, %v4028
    %v6214 = vmul.f32 %v6182, %v4029
    %v6215 = vmul.f32 %v6183, %v4030
    %v6216 = vmul.f32 %v6184, %v4031
    %v6217 = vmul.f32 %v6185, %v4032
    %v6218 = vmul.f32 %v6186, %v4033
    %v6219 = vmul.f32 %v6187, %v4034
    %v6220 = vmul.f32 %v6188, %v4035
    %v6221 = vmul.f32 %v6189, %v4036
    %v6222 = vmul.f32 %v6190, %v4037
    %v6223 = vmul.f32 %v6191, %v4038
    %v6224 = vmul.f32 %v6192, %v4039
    %v6225 = vmul.f32 %v6193, %v4040
    %v6226 = vmul.f32 %v6194, %v4041
    %v6227 = vmul.f32 %v6195, %v4042
    %v6228 = vmul.f32 %v6196, %v4043
    %v6229 = vmul.f32 %v6197, %v4044
    %v6230 = vmul.f32 %v6198, %v4045
    %v6231 = vmul.f32 %v6199, %v4046
    %v6232 = vmul.f32 %v6200, %v4047
    %v6233 = vmul.f32 %v6201, %v4048
    %v6234 = vmul.f32 %v6202, %v4049
    %v6235 = vmul.f32 %v6203, %v4050
    %v6236 = vmul.f32 %v6204, %v4051
    %v6237 = vmul.f32 %v6205, %v4052
    %v6238 = vmul.f32 %v6206, %v4053
    %v6239 = vmul.f32 %v6207, %v4054
    %v6240 = vmul.f32 %v6208, %v4055
    %v6241 = vmul.f32 %v6209, %v4056
    %v6242 = vmul.f32 %v5217, %v6146
    %v6243 = vmul.f32 %v5219, %v6147
    %v6244 = vmul.f32 %v5221, %v6148
    %v6245 = vmul.f32 %v5223, %v6149
    %v6246 = vmul.f32 %v5225, %v6150
    %v6247 = vmul.f32 %v5227, %v6151
    %v6248 = vmul.f32 %v5229, %v6152
    %v6249 = vmul.f32 %v5231, %v6153
    %v6250 = vmul.f32 %v5233, %v6154
    %v6251 = vmul.f32 %v5235, %v6155
    %v6252 = vmul.f32 %v5237, %v6156
    %v6253 = vmul.f32 %v5239, %v6157
    %v6254 = vmul.f32 %v5241, %v6158
    %v6255 = vmul.f32 %v5243, %v6159
    %v6256 = vmul.f32 %v5245, %v6160
    %v6257 = vmul.f32 %v5247, %v6161
    %v6258 = vmul.f32 %v5249, %v6162
    %v6259 = vmul.f32 %v5251, %v6163
    %v6260 = vmul.f32 %v5253, %v6164
    %v6261 = vmul.f32 %v5255, %v6165
    %v6262 = vmul.f32 %v5257, %v6166
    %v6263 = vmul.f32 %v5259, %v6167
    %v6264 = vmul.f32 %v5261, %v6168
    %v6265 = vmul.f32 %v5263, %v6169
    %v6266 = vmul.f32 %v5265, %v6170
    %v6267 = vmul.f32 %v5267, %v6171
    %v6268 = vmul.f32 %v5269, %v6172
    %v6269 = vmul.f32 %v5271, %v6173
    %v6270 = vmul.f32 %v5273, %v6174
    %v6271 = vmul.f32 %v5275, %v6175
    %v6272 = vmul.f32 %v5277, %v6176
    %v6273 = vmul.f32 %v5279, %v6177
    %v6274 = vadd.f32 %v6210, %v6242
    %v6275 = vadd.f32 %v6211, %v6243
    %v6276 = vadd.f32 %v6212, %v6244
    %v6277 = vadd.f32 %v6213, %v6245
    %v6278 = vadd.f32 %v6214, %v6246
    %v6279 = vadd.f32 %v6215, %v6247
    %v6280 = vadd.f32 %v6216, %v6248
    %v6281 = vadd.f32 %v6217, %v6249
    %v6282 = vadd.f32 %v6218, %v6250
    %v6283 = vadd.f32 %v6219, %v6251
    %v6284 = vadd.f32 %v6220, %v6252
    %v6285 = vadd.f32 %v6221, %v6253
    %v6286 = vadd.f32 %v6222, %v6254
    %v6287 = vadd.f32 %v6223, %v6255
    %v6288 = vadd.f32 %v6224, %v6256
    %v6289 = vadd.f32 %v6225, %v6257
    %v6290 = vadd.f32 %v6226, %v6258
    %v6291 = vadd.f32 %v6227, %v6259
    %v6292 = vadd.f32 %v6228, %v6260
    %v6293 = vadd.f32 %v6229, %v6261
    %v6294 = vadd.f32 %v6230, %v6262
    %v6295 = vadd.f32 %v6231, %v6263
    %v6296 = vadd.f32 %v6232, %v6264
    %v6297 = vadd.f32 %v6233, %v6265
    %v6298 = vadd.f32 %v6234, %v6266
    %v6299 = vadd.f32 %v6235, %v6267
    %v6300 = vadd.f32 %v6236, %v6268
    %v6301 = vadd.f32 %v6237, %v6269
    %v6302 = vadd.f32 %v6238, %v6270
    %v6303 = vadd.f32 %v6239, %v6271
    %v6304 = vadd.f32 %v6240, %v6272
    %v6305 = vadd.f32 %v6241, %v6273
    %6306 = vst.msk [vmem:[#allocation11] sm:$0xff] %vm517, %v6274
    %6307 = vst.msk [vmem:[#allocation11 + $0x8] sm:$0xff] %vm517, %v6275
    %6308 = vst.msk [vmem:[#allocation11 + $0x10] sm:$0xff] %vm517, %v6276
    %6309 = vst.msk [vmem:[#allocation11 + $0x18] sm:$0xff] %vm517, %v6277
    %6310 = vst.msk [vmem:[#allocation11 + $0x20] sm:$0xff] %vm517, %v6278
    %6311 = vst.msk [vmem:[#allocation11 + $0x28] sm:$0xff] %vm517, %v6279
    %6312 = vst.msk [vmem:[#allocation11 + $0x30] sm:$0xff] %vm517, %v6280
    %6313 = vst.msk [vmem:[#allocation11 + $0x38] sm:$0xff] %vm517, %v6281
    %6314 = vst.msk [vmem:[#allocation11 + $0x40] sm:$0xff] %vm517, %v6282
    %6315 = vst.msk [vmem:[#allocation11 + $0x48] sm:$0xff] %vm517, %v6283
    %6316 = vst.msk [vmem:[#allocation11 + $0x50] sm:$0xff] %vm517, %v6284
    %6317 = vst.msk [vmem:[#allocation11 + $0x58] sm:$0xff] %vm517, %v6285
    %6318 = vst.msk [vmem:[#allocation11 + $0x60] sm:$0xff] %vm517, %v6286
    %6319 = vst.msk [vmem:[#allocation11 + $0x68] sm:$0xff] %vm517, %v6287
    %6320 = vst.msk [vmem:[#allocation11 + $0x70] sm:$0xff] %vm517, %v6288
    %6321 = vst.msk [vmem:[#allocation11 + $0x78] sm:$0xff] %vm517, %v6289
    %6322 = vst.msk [vmem:[#allocation11 + $0x80] sm:$0xff] %vm517, %v6290
    %6323 = vst.msk [vmem:[#allocation11 + $0x88] sm:$0xff] %vm517, %v6291
    %6324 = vst.msk [vmem:[#allocation11 + $0x90] sm:$0xff] %vm517, %v6292
    %6325 = vst.msk [vmem:[#allocation11 + $0x98] sm:$0xff] %vm517, %v6293
    %6326 = vst.msk [vmem:[#allocation11 + $0xa0] sm:$0xff] %vm517, %v6294
    %6327 = vst.msk [vmem:[#allocation11 + $0xa8] sm:$0xff] %vm517, %v6295
    %6328 = vst.msk [vmem:[#allocation11 + $0xb0] sm:$0xff] %vm517, %v6296
    %6329 = vst.msk [vmem:[#allocation11 + $0xb8] sm:$0xff] %vm517, %v6297
    %6330 = vst.msk [vmem:[#allocation11 + $0xc0] sm:$0xff] %vm517, %v6298
    %6331 = vst.msk [vmem:[#allocation11 + $0xc8] sm:$0xff] %vm517, %v6299
    %6332 = vst.msk [vmem:[#allocation11 + $0xd0] sm:$0xff] %vm517, %v6300
    %6333 = vst.msk [vmem:[#allocation11 + $0xd8] sm:$0xff] %vm517, %v6301
    %6334 = vst.msk [vmem:[#allocation11 + $0xe0] sm:$0xff] %vm517, %v6302
    %6335 = vst.msk [vmem:[#allocation11 + $0xe8] sm:$0xff] %vm517, %v6303
    %6336 = vst.msk [vmem:[#allocation11 + $0xf0] sm:$0xff] %vm517, %v6304
    %6337 = vst.msk [vmem:[#allocation11 + $0xf8] sm:$0xff] %vm517, %v6305
    // Predicated region
    $region70: #{sepconv_gru_coarsest.1} parent=1 // pred_check
      _
    $region71: #{sepconv_gru_coarsest.1} parent=1 // pred_check_branch
      %6339 = sbr.rel (0) target = $region73
    $region72: #{sepconv_gru_coarsest.1} parent=1 // pred_region
      %s6341 = ssub.s32 4096, 4096
      %6342 = vsyncadd [#allocation4], %s6341
      %s6343 = sshll.u32 [#allocation11], 4
      %s6344 = int_to_ptr.vmem [resolvable:$true] %s6343
      %6349 = dma.vmem_to_hbm [thread:$0]  %s6344, 4096, %s12, [#allocation4], 128, 128, 8
    $region73: #{sepconv_gru_coarsest.1} parent=1 // pred_fallthru
      _
    // Predicated region
    $region74: #{sepconv_gru_coarsest.1} parent=1 // pred_check
      _
    $region75: #{sepconv_gru_coarsest.1} parent=1 // pred_check_branch
      %6351 = sbr.rel (0) target = $region77
    $region76: #{sepconv_gru_coarsest.1} parent=1 // pred_region
      %6352 = dma.done [#allocation4], 4096
    $region77: #{sepconv_gru_coarsest.1} parent=1 // pred_fallthru
      _
    %6353 = vsyncpa [#allocation3], 1
    %6354 = vsyncpa [#allocation6], 1
    %6355 = vsyncpa [#allocation9], 1
    %6356 = vsyncpa [#allocation4], 1

</llo_original>
